<compile_context>
chip_gen: v7x
topology: tpu7x:2x2x1
jax: 0.10.0
libtpu: 0.0.40
codegen_flags: <defaults>
</compile_context>

<pallas_src>
import functools

import jax
import jax.numpy as jnp
from jax.experimental import pallas as pl
from jax.experimental.pallas import tpu as pltpu


def autopad(k, p=None):
    if p is None:
        p = k // 2 if isinstance(k, int) else [x // 2 for x in k]
    return p


def _round_up(x, m):
    return ((x + m - 1) // m) * m


# ---------------------------------------------------------------------------
# Pallas kernel: fused  out = SiLU( sum_q shift_q(x) @ W_q  + bias )
# ---------------------------------------------------------------------------
def _conv_bn_silu_kernel(x_ref, w_ref, b_ref, o_ref, *, k, c1, wpad, nrows, act):
    # x_ref: (1, flat_len, C1)  padded channels-last image, flattened over (Hp, Wp), bf16
    # w_ref: (k*k*C1, tn)       BN-scale-folded conv weights, bf16
    # b_ref: (1, tn)            folded BN bias, f32
    # o_ref: (1, nrows, tn)     "wide" dense (stride-1) conv output incl. pad columns
    tn = o_ref.shape[-1]
    acc = jnp.zeros((nrows, tn), jnp.float32)
    for i in range(k):                       # static unroll over the k*k taps
        for j in range(k):
            q = i * k + j
            off = i * wpad + j               # flat row offset of tap (i, j)
            lhs = x_ref[0, off:off + nrows, :]          # (nrows, C1)
            rhs = w_ref[q * c1:(q + 1) * c1, :]         # (C1, tn)
            acc += jnp.dot(lhs, rhs, preferred_element_type=jnp.float32)
    y = acc + b_ref[...]
    if act:
        # SiLU: exp + approx reciprocal both run on the (otherwise idle) EUP slot.
        y = y * pl.reciprocal(1.0 + jnp.exp(-y), approx=True)
    o_ref[0] = y.astype(o_ref.dtype)


# ---------------------------------------------------------------------------
# Wrapper: equivalent of Conv.forward (inference-mode BatchNorm), groups=1.
# ---------------------------------------------------------------------------
def conv_bn_silu(x, weight, gamma, beta, running_mean, running_var,
                 k=1, s=1, p=None, g=1, act=True, eps=1e-5,
                 compute_dtype=jnp.bfloat16, out_format="NCHW"):
    """x: (N, C1, H, W) f32, weight: (C2, C1, k, k) f32  ->  (N, C2, Ho, Wo) f32."""
    if g != 1:
        # TODO(synk): grouped / depthwise conv (g > 1) not implemented in the Pallas path.
        raise NotImplementedError("groups != 1 not supported")
    p = autopad(k, p)
    n, c1, h, w = x.shape
    c2 = weight.shape[0]

    hp, wp_ = h + 2 * p, w + 2 * p
    ho_d, wo_d = hp - k + 1, wp_ - k + 1            # dense (stride-1) output extents
    ho = (h + 2 * p - k) // s + 1
    wo = (w + 2 * p - k) // s + 1
    nrows = ho_d * wp_                              # wide dense output rows per image
    # TODO(synk): for stride > 1 the wide-dense formulation wastes ~s^2 of the MXU work;
    #             a strided gather path would need manual DMA and is not implemented.

    # ---- activations: NCHW -> padded channels-last, flattened over (Hp, Wp), bf16.
    x_nhwc = jnp.transpose(x, (0, 2, 3, 1))
    x_pad = jnp.pad(x_nhwc, ((0, 0), (p, p), (p, p), (0, 0)))
    flat_len = _round_up(hp * wp_ + (k - 1), 8)     # +k-1 so the last tap's slice is in-range
    x_flat = x_pad.reshape(n, hp * wp_, c1)
    x_flat = jnp.pad(x_flat, ((0, 0), (0, flat_len - hp * wp_), (0, 0))).astype(compute_dtype)

    # ---- fold BatchNorm into weight (scale) and a single bias vector.
    scale = gamma / jnp.sqrt(running_var + eps)      # (C2,)
    bias = beta - running_mean * scale               # (C2,)
    kk = k * k
    # row = (i*k + j)*C1 + c  holds  weight[c2, c, i, j] * scale[c2]
    w_mat = jnp.transpose(weight, (2, 3, 1, 0)).reshape(kk * c1, c2) * scale[None, :]

    # ---- output-channel tiling (lane-dense, MXU-width aligned).
    c2p = _round_up(c2, 128)
    tn = 256 if (c2p > 128 and c2p % 256 == 0) else 128
    # TODO(synk): choose tn per chip (128 on v5e, 256 on v6e/v7x) via pltpu.get_tpu_info().
    n_ct = c2p // tn
    w_mat = jnp.pad(w_mat, ((0, 0), (0, c2p - c2))).astype(compute_dtype)
    bias_p = jnp.pad(bias, (0, c2p - c2)).reshape(1, c2p).astype(jnp.float32)

    # ---- grid order: keep the operand whose re-streaming would cost more HBM traffic
    #      resident across the inner axis.
    itm = jnp.dtype(compute_dtype).itemsize
    act_bytes_per_img = flat_len * c1 * itm
    w_bytes_total = kk * c1 * c2p * itm
    traffic_c2_outer = n_ct * n * act_bytes_per_img + w_bytes_total    # weights resident
    traffic_img_outer = n * act_bytes_per_img + n * w_bytes_total      # activations resident
    c2_outer = traffic_c2_outer <= traffic_img_outer
    if c2_outer:
        grid = (n_ct, n)
        x_map = lambda j, i: (i, 0, 0)
        w_map = lambda j, i: (0, j)
        b_map = lambda j, i: (0, j)
        o_map = lambda j, i: (i, 0, j)
    else:
        grid = (n, n_ct)
        x_map = lambda i, j: (i, 0, 0)
        w_map = lambda i, j: (0, j)
        b_map = lambda i, j: (0, j)
        o_map = lambda i, j: (i, 0, j)

    # ---- VMEM budget: 2x (x slab + w tile + bias) + 2x out tile + f32 accumulator.
    tile_bytes = (2 * flat_len * c1 * itm + 2 * kk * c1 * tn * itm + 2 * tn * 4
                  + 2 * nrows * tn * 4 + nrows * tn * 4)
    vmem_limit = int(min(max(2 * tile_bytes + (1 << 20), 8 << 20), 64 << 20))
    # TODO(synk): for very large Hp*Wp*C1 images add a row-tile grid axis (halo via manual DMA)
    #             instead of whole-image activation blocks.

    kernel = functools.partial(_conv_bn_silu_kernel,
                               k=k, c1=c1, wpad=wp_, nrows=nrows, act=act)
    out_wide = pl.pallas_call(
        kernel,
        out_shape=jax.ShapeDtypeStruct((n, nrows, c2p), jnp.float32),
        grid_spec=pltpu.PrefetchScalarGridSpec(
            num_scalar_prefetch=0,
            grid=grid,
            in_specs=[
                pl.BlockSpec((1, flat_len, c1), x_map),     # activations
                pl.BlockSpec((kk * c1, tn), w_map),          # folded weights
                pl.BlockSpec((1, tn), b_map),                # folded bias
            ],
            out_specs=pl.BlockSpec((1, nrows, tn), o_map),
        ),
        compiler_params=pltpu.CompilerParams(
            dimension_semantics=("parallel", "parallel"),
            vmem_limit_bytes=vmem_limit,
        ),
    )(x_flat, w_mat, bias_p)

    # Strip pad columns, apply stride, drop channel padding; XLA fuses this with the
    # final layout change (return NHWC via out_format to skip the transpose entirely).
    out = out_wide.reshape(n, ho_d, wp_, c2p)[:, ::s, :wo_d:s, :c2]
    out = out[:, :ho, :wo, :]
    if out_format == "NCHW":
        out = jnp.transpose(out, (0, 3, 1, 2))
    return out


# ---------------------------------------------------------------------------
# Pure-JAX references for the correctness check.
# ---------------------------------------------------------------------------
def _reference(x, weight, gamma, beta, running_mean, running_var, k, s, p,
               eps=1e-5, operand_dtype=jnp.float32):
    p = autopad(k, p)
    scale = gamma / jnp.sqrt(running_var + eps)
    bias = beta - running_mean * scale
    w_f = (weight * scale[:, None, None, None]).astype(operand_dtype).astype(jnp.float32)
    x_f = x.astype(operand_dtype).astype(jnp.float32)
    y = jax.lax.conv_general_dilated(
        x_f, w_f, window_strides=(s, s), padding=((p, p), (p, p)),
        dimension_numbers=("NCHW", "OIHW", "NCHW"))
    y = y + bias[None, :, None, None]
    return y * jax.nn.sigmoid(y)


def _check_case(key, N, C1, H, W, C2, K, S):
    kx, kw = jax.random.split(key)
    x = jax.random.normal(kx, (N, C1, H, W), dtype=jnp.float32)
    weight = jax.random.normal(kw, (C2, C1, K, K), dtype=jnp.float32) * 0.1
    gamma = jnp.linspace(0.5, 1.5, C2, dtype=jnp.float32)
    beta = jnp.linspace(-0.2, 0.2, C2, dtype=jnp.float32)
    running_mean = jnp.linspace(-0.1, 0.1, C2, dtype=jnp.float32)
    running_var = jnp.linspace(0.8, 1.2, C2, dtype=jnp.float32)

    fn = jax.jit(functools.partial(conv_bn_silu, k=K, s=S))
    out = jax.block_until_ready(fn(x, weight, gamma, beta, running_mean, running_var))

    p = autopad(K, None)
    ho = (H + 2 * p - K) // S + 1
    wo = (W + 2 * p - K) // S + 1
    assert out.shape == (N, C2, ho, wo), out.shape

    # Check against a bf16-operand reference (matches kernel math) and the f32 module math.
    ref_bf16 = _reference(x, weight, gamma, beta, running_mean, running_var, K, S, None,
                          operand_dtype=jnp.bfloat16)
    ref_f32 = _reference(x, weight, gamma, beta, running_mean, running_var, K, S, None)
    err_b = float(jnp.max(jnp.abs(out - ref_bf16)))
    err_f = float(jnp.max(jnp.abs(out - ref_f32)))
    assert jnp.allclose(out, ref_bf16, atol=2e-2, rtol=2e-2), err_b
    assert jnp.allclose(out, ref_f32, atol=5e-2, rtol=5e-2), err_f


if __name__ == "__main__":
    key = jax.random.PRNGKey(0)
    k0, k1, k2 = jax.random.split(key, 3)

    # Main case: Conv(c1=4, c2=8, k=3, s=1) on a (2, 4, 16, 16) input.
    _check_case(k0, N=2, C1=4, H=16, W=16, C2=8, K=3, S=1)
    # Pointwise conv (module default k=1, s=1).
    _check_case(k1, N=2, C1=4, H=16, W=16, C2=16, K=1, S=1)
    # Strided 3x3 conv.
    _check_case(k2, N=2, C1=4, H=16, W=16, C2=8, K=3, S=2)

    print("KERNEL_OK")
</pallas_src>

<mosaic_0001>
module attributes {stable_mosaic.version = 11 : i64} {
  func.func @_conv_bn_silu_kernel(%arg0: i32, %arg1: i32, %arg2: memref<1x328x4xbf16, #tpu.memory_space<vmem>>, %arg3: memref<36x128xbf16, #tpu.memory_space<vmem>>, %arg4: memref<1x128xf32, #tpu.memory_space<vmem>>, %arg5: memref<1x288x128xf32, #tpu.memory_space<vmem>>) attributes {dimension_semantics = [#tpu.dimension_semantics<parallel>, #tpu.dimension_semantics<parallel>], iteration_bounds = array<i64: 1, 2>, scalar_prefetch = 0 : i64, scratch_operands = 0 : i64, tpu.core_type = #tpu.core_type<tc>, window_params = [{transform_indices = @transform_0, window_bounds = array<i64: 1, 328, 4>}, {transform_indices = @transform_1, window_bounds = array<i64: 36, 128>}, {transform_indices = @transform_2, window_bounds = array<i64: 1, 128>}, {transform_indices = @transform_3, window_bounds = array<i64: 1, 288, 128>}]} {
    %cst = arith.constant 0.000000e+00 : f32
    %0 = vector.broadcast %cst : f32 to vector<288x128xf32>
    %c0 = arith.constant 0 : index
    %c0_0 = arith.constant 0 : index
    %c0_1 = arith.constant 0 : index
    %1 = vector.load %arg2[%c0, %c0_0, %c0_1] : memref<1x328x4xbf16, #tpu.memory_space<vmem>>, vector<1x288x4xbf16>
    %2 = vector.shape_cast %1 : vector<1x288x4xbf16> to vector<288x4xbf16>
    %c0_2 = arith.constant 0 : index
    %c0_3 = arith.constant 0 : index
    %3 = vector.load %arg3[%c0_2, %c0_3] : memref<36x128xbf16, #tpu.memory_space<vmem>>, vector<4x128xbf16>
    %cst_4 = arith.constant dense<0.000000e+00> : vector<288x128xf32>
    %4 = tpu.matmul %2, %3, %cst_4 {dimension_numbers = #tpu.dot_dimension_numbers<[1], [0], [0], [1], [0, 0, 1, 1], [], []>} : vector<288x4xbf16>, vector<4x128xbf16>, vector<288x128xf32> -> vector<288x128xf32>
    %5 = arith.addf %0, %4 : vector<288x128xf32>
    %c0_5 = arith.constant 0 : index
    %c1 = arith.constant 1 : index
    %c0_6 = arith.constant 0 : index
    %6 = vector.load %arg2[%c0_5, %c1, %c0_6] : memref<1x328x4xbf16, #tpu.memory_space<vmem>>, vector<1x288x4xbf16>
    %7 = vector.shape_cast %6 : vector<1x288x4xbf16> to vector<288x4xbf16>
    %c4 = arith.constant 4 : index
    %c0_7 = arith.constant 0 : index
    %8 = vector.load %arg3[%c4, %c0_7] : memref<36x128xbf16, #tpu.memory_space<vmem>>, vector<4x128xbf16>
    %cst_8 = arith.constant dense<0.000000e+00> : vector<288x128xf32>
    %9 = tpu.matmul %7, %8, %cst_8 {dimension_numbers = #tpu.dot_dimension_numbers<[1], [0], [0], [1], [0, 0, 1, 1], [], []>} : vector<288x4xbf16>, vector<4x128xbf16>, vector<288x128xf32> -> vector<288x128xf32>
    %10 = arith.addf %5, %9 : vector<288x128xf32>
    %c0_9 = arith.constant 0 : index
    %c2 = arith.constant 2 : index
    %c0_10 = arith.constant 0 : index
    %11 = vector.load %arg2[%c0_9, %c2, %c0_10] : memref<1x328x4xbf16, #tpu.memory_space<vmem>>, vector<1x288x4xbf16>
    %12 = vector.shape_cast %11 : vector<1x288x4xbf16> to vector<288x4xbf16>
    %c8 = arith.constant 8 : index
    %c0_11 = arith.constant 0 : index
    %13 = vector.load %arg3[%c8, %c0_11] : memref<36x128xbf16, #tpu.memory_space<vmem>>, vector<4x128xbf16>
    %cst_12 = arith.constant dense<0.000000e+00> : vector<288x128xf32>
    %14 = tpu.matmul %12, %13, %cst_12 {dimension_numbers = #tpu.dot_dimension_numbers<[1], [0], [0], [1], [0, 0, 1, 1], [], []>} : vector<288x4xbf16>, vector<4x128xbf16>, vector<288x128xf32> -> vector<288x128xf32>
    %15 = arith.addf %10, %14 : vector<288x128xf32>
    %c0_13 = arith.constant 0 : index
    %c18 = arith.constant 18 : index
    %c0_14 = arith.constant 0 : index
    %16 = vector.load %arg2[%c0_13, %c18, %c0_14] : memref<1x328x4xbf16, #tpu.memory_space<vmem>>, vector<1x288x4xbf16>
    %17 = vector.shape_cast %16 : vector<1x288x4xbf16> to vector<288x4xbf16>
    %c12 = arith.constant 12 : index
    %c0_15 = arith.constant 0 : index
    %18 = vector.load %arg3[%c12, %c0_15] : memref<36x128xbf16, #tpu.memory_space<vmem>>, vector<4x128xbf16>
    %cst_16 = arith.constant dense<0.000000e+00> : vector<288x128xf32>
    %19 = tpu.matmul %17, %18, %cst_16 {dimension_numbers = #tpu.dot_dimension_numbers<[1], [0], [0], [1], [0, 0, 1, 1], [], []>} : vector<288x4xbf16>, vector<4x128xbf16>, vector<288x128xf32> -> vector<288x128xf32>
    %20 = arith.addf %15, %19 : vector<288x128xf32>
    %c0_17 = arith.constant 0 : index
    %c19 = arith.constant 19 : index
    %c0_18 = arith.constant 0 : index
    %21 = vector.load %arg2[%c0_17, %c19, %c0_18] : memref<1x328x4xbf16, #tpu.memory_space<vmem>>, vector<1x288x4xbf16>
    %22 = vector.shape_cast %21 : vector<1x288x4xbf16> to vector<288x4xbf16>
    %c16 = arith.constant 16 : index
    %c0_19 = arith.constant 0 : index
    %23 = vector.load %arg3[%c16, %c0_19] : memref<36x128xbf16, #tpu.memory_space<vmem>>, vector<4x128xbf16>
    %cst_20 = arith.constant dense<0.000000e+00> : vector<288x128xf32>
    %24 = tpu.matmul %22, %23, %cst_20 {dimension_numbers = #tpu.dot_dimension_numbers<[1], [0], [0], [1], [0, 0, 1, 1], [], []>} : vector<288x4xbf16>, vector<4x128xbf16>, vector<288x128xf32> -> vector<288x128xf32>
    %25 = arith.addf %20, %24 : vector<288x128xf32>
    %c0_21 = arith.constant 0 : index
    %c20 = arith.constant 20 : index
    %c0_22 = arith.constant 0 : index
    %26 = vector.load %arg2[%c0_21, %c20, %c0_22] : memref<1x328x4xbf16, #tpu.memory_space<vmem>>, vector<1x288x4xbf16>
    %27 = vector.shape_cast %26 : vector<1x288x4xbf16> to vector<288x4xbf16>
    %c20_23 = arith.constant 20 : index
    %c0_24 = arith.constant 0 : index
    %28 = vector.load %arg3[%c20_23, %c0_24] : memref<36x128xbf16, #tpu.memory_space<vmem>>, vector<4x128xbf16>
    %cst_25 = arith.constant dense<0.000000e+00> : vector<288x128xf32>
    %29 = tpu.matmul %27, %28, %cst_25 {dimension_numbers = #tpu.dot_dimension_numbers<[1], [0], [0], [1], [0, 0, 1, 1], [], []>} : vector<288x4xbf16>, vector<4x128xbf16>, vector<288x128xf32> -> vector<288x128xf32>
    %30 = arith.addf %25, %29 : vector<288x128xf32>
    %c0_26 = arith.constant 0 : index
    %c36 = arith.constant 36 : index
    %c0_27 = arith.constant 0 : index
    %31 = vector.load %arg2[%c0_26, %c36, %c0_27] : memref<1x328x4xbf16, #tpu.memory_space<vmem>>, vector<1x288x4xbf16>
    %32 = vector.shape_cast %31 : vector<1x288x4xbf16> to vector<288x4xbf16>
    %c24 = arith.constant 24 : index
    %c0_28 = arith.constant 0 : index
    %33 = vector.load %arg3[%c24, %c0_28] : memref<36x128xbf16, #tpu.memory_space<vmem>>, vector<4x128xbf16>
    %cst_29 = arith.constant dense<0.000000e+00> : vector<288x128xf32>
    %34 = tpu.matmul %32, %33, %cst_29 {dimension_numbers = #tpu.dot_dimension_numbers<[1], [0], [0], [1], [0, 0, 1, 1], [], []>} : vector<288x4xbf16>, vector<4x128xbf16>, vector<288x128xf32> -> vector<288x128xf32>
    %35 = arith.addf %30, %34 : vector<288x128xf32>
    %c0_30 = arith.constant 0 : index
    %c37 = arith.constant 37 : index
    %c0_31 = arith.constant 0 : index
    %36 = vector.load %arg2[%c0_30, %c37, %c0_31] : memref<1x328x4xbf16, #tpu.memory_space<vmem>>, vector<1x288x4xbf16>
    %37 = vector.shape_cast %36 : vector<1x288x4xbf16> to vector<288x4xbf16>
    %c28 = arith.constant 28 : index
    %c0_32 = arith.constant 0 : index
    %38 = vector.load %arg3[%c28, %c0_32] : memref<36x128xbf16, #tpu.memory_space<vmem>>, vector<4x128xbf16>
    %cst_33 = arith.constant dense<0.000000e+00> : vector<288x128xf32>
    %39 = tpu.matmul %37, %38, %cst_33 {dimension_numbers = #tpu.dot_dimension_numbers<[1], [0], [0], [1], [0, 0, 1, 1], [], []>} : vector<288x4xbf16>, vector<4x128xbf16>, vector<288x128xf32> -> vector<288x128xf32>
    %40 = arith.addf %35, %39 : vector<288x128xf32>
    %c0_34 = arith.constant 0 : index
    %c38 = arith.constant 38 : index
    %c0_35 = arith.constant 0 : index
    %41 = vector.load %arg2[%c0_34, %c38, %c0_35] : memref<1x328x4xbf16, #tpu.memory_space<vmem>>, vector<1x288x4xbf16>
    %42 = vector.shape_cast %41 : vector<1x288x4xbf16> to vector<288x4xbf16>
    %c32 = arith.constant 32 : index
    %c0_36 = arith.constant 0 : index
    %43 = vector.load %arg3[%c32, %c0_36] : memref<36x128xbf16, #tpu.memory_space<vmem>>, vector<4x128xbf16>
    %cst_37 = arith.constant dense<0.000000e+00> : vector<288x128xf32>
    %44 = tpu.matmul %42, %43, %cst_37 {dimension_numbers = #tpu.dot_dimension_numbers<[1], [0], [0], [1], [0, 0, 1, 1], [], []>} : vector<288x4xbf16>, vector<4x128xbf16>, vector<288x128xf32> -> vector<288x128xf32>
    %45 = arith.addf %40, %44 : vector<288x128xf32>
    %c0_38 = arith.constant 0 : index
    %c0_39 = arith.constant 0 : index
    %46 = vector.load %arg4[%c0_38, %c0_39] : memref<1x128xf32, #tpu.memory_space<vmem>>, vector<1x128xf32>
    %47 = vector.broadcast %46 : vector<1x128xf32> to vector<288x128xf32>
    %48 = arith.addf %45, %47 : vector<288x128xf32>
    %cst_40 = arith.constant 0.000000e+00 : f32
    %49 = vector.broadcast %cst_40 : f32 to vector<288x128xf32>
    %50 = arith.subf %49, %48 : vector<288x128xf32>
    %51 = math.exp %50 : vector<288x128xf32>
    %cst_41 = arith.constant 1.000000e+00 : f32
    %52 = vector.broadcast %cst_41 : f32 to vector<288x128xf32>
    %53 = arith.addf %52, %51 : vector<288x128xf32>
    %54 = tpu.reciprocal %53 {approx = true} : vector<288x128xf32> -> vector<288x128xf32>
    %55 = arith.mulf %48, %54 : vector<288x128xf32>
    %c0_42 = arith.constant 0 : index
    %c0_43 = arith.constant 0 : index
    %c0_44 = arith.constant 0 : index
    %56 = vector.load %arg5[%c0_42, %c0_43, %c0_44] : memref<1x288x128xf32, #tpu.memory_space<vmem>>, vector<1x288x128xf32>
    %57 = vector.shape_cast %56 : vector<1x288x128xf32> to vector<288x128xf32>
    %58 = vector.shape_cast %55 : vector<288x128xf32> to vector<1x288x128xf32>
    tpu.vector_store %arg5[%c0_42, %c0_43, %c0_44], %58 {strides = array<i32>} : memref<1x288x128xf32, #tpu.memory_space<vmem>>, vector<1x288x128xf32>,
    return
  }
  func.func @transform_0(%arg0: i32, %arg1: i32) -> (i32, i32, i32) {
    %c0_i32 = arith.constant 0 : i32
    %c0_i32_0 = arith.constant 0 : i32
    %c0_i32_1 = arith.constant 0 : i32
    return %arg1, %c0_i32, %c0_i32_0 : i32, i32, i32
  }
  func.func @transform_1(%arg0: i32, %arg1: i32) -> (i32, i32) {
    %c0_i32 = arith.constant 0 : i32
    %c0_i32_0 = arith.constant 0 : i32
    return %c0_i32, %arg0 : i32, i32
  }
  func.func @transform_2(%arg0: i32, %arg1: i32) -> (i32, i32) {
    %c0_i32 = arith.constant 0 : i32
    %c0_i32_0 = arith.constant 0 : i32
    return %c0_i32, %arg0 : i32, i32
  }
  func.func @transform_3(%arg0: i32, %arg1: i32) -> (i32, i32, i32) {
    %c0_i32 = arith.constant 0 : i32
    %c0_i32_0 = arith.constant 0 : i32
    return %arg1, %c0_i32, %arg0 : i32, i32, i32
  }
}

</mosaic_0001>

<llo_original>
// kernel: conv_bn_silu.1
$region0: #{conv_bn_silu.1}
  #allocation0 [shape = 'u32[]', space=smem, size = 0x4, offset = 0x4, fixed_abs, tag = 'smem constant byte address 0x4 - core index']
  #allocation1 [shape = 'u32[144,128]{1,0:T(1,128)}', space=vmem, size = 0x12000, scoped, tag = 'internal scratch']
  %s0 = inlined_call_operand.vmem [shape: bf16[2,328,4], index: 0, kind: input, shape index: {}]
  %s1 = inlined_call_operand.vmem [shape: bf16[36,128], index: 1, kind: input, shape index: {}]
  %s2 = inlined_call_operand.vmem [shape: f32[1,128], index: 2, kind: input, shape index: {}]
  %s3 = inlined_call_operand.vmem [shape: f32[2,288,128], index: 3, kind: output, shape index: {}]
  %s4 = sld [smem:[#allocation0]]
  $region45: #{conv_bn_silu.1} parent=0
    _
  %s6 = ssub.s32 1, %s4
  %s7 = scalar_select 0, %s6, %s4
  loop: start=0, step=1, limit=4
  $region2: #{conv_bn_silu.1} parent=0 // loop_pre_header
    _
  $region3: #{conv_bn_silu.1} parent=0 // loop_header
    %s9 = sphi 0, %s13
    %p10 = scmp.ge.s32.totalorder %s9, 4
    %s16 = sphi 0, %s28
    %s17 = sphi 0, %s24
    %s18 = sphi 0, %s16
    %s19 = sphi 0, %s17
    %s20 = sphi 0, %s18
    %s21 = sphi 0, %s19
    %s31 = sphi 0, %s33
    %s34 = sphi 0, %s31
    %s35 = sphi 0, %s34
    %s51 = sphi 0, %s35
    %s57 = sphi 0, %s59
    %s60 = sphi 0, %s57
    %s61 = sphi 0, %s60
    %s77 = sphi 0, %s61
    %s83 = sphi 0, %s85
    %s86 = sphi 0, %s83
    %s87 = sphi 0, %s86
    %s103 = sphi 0, %s87
    %s111 = sphi 0, %s113
    %s114 = sphi 0, %s111
    %s115 = sphi 0, %s114
    %s131 = sphi 0, %s115
  $region4: #{conv_bn_silu.1} parent=0 // loop_header_branch
    %12 = sbr.rel (%p10) target = $region8
  $region5: #{conv_bn_silu.1} parent=0 // loop_body
    %s14 = ssub.s32 %s9, 1
    %s15 = ssub.s32 %s9, 2
    %s22 = sadd.s32 1, %s17
    %p23 = scmp.ge.s32.totalorder %s22, 2
    %s24 = scalar_select %p23, 0, %s22
    %s25 = sadd.s32 1, %s16
    %s26 = scalar_select %p23, %s25, %s16
    %p27 = scmp.ge.s32.totalorder %s26, 1
    %s28 = scalar_select %p27, 0, %s26
    %s29 = ssub.s32 %s17, %s24
    %p30 = scmp.eq.s32.totalorder %s29, 0
    %s32 = sadd.s32 %s31, 1
    %s33 = scalar_select %p30, %s31, %s32
    %p36 = pneg %p30
    %p37 = scmp.eq.s32.totalorder %s9, 1
    %p38 = por %p36, %p37
    %p39 = scmp.ne.s32.totalorder %s31, %s34
    %p40 = scmp.eq.s32.totalorder %s9, 0
    %p41 = por %p39, %p40
    %p42 = scmp.ne.s32.totalorder %s31, %s34
    %p43 = scmp.eq.s32.totalorder %s14, 1
    %p44 = por %p42, %p43
    %p45 = scmp.ne.s32.totalorder %s34, %s35
    %p46 = scmp.eq.s32.totalorder %s14, 0
    %p47 = por %p45, %p46
    %p48 = scmp.ne.s32.totalorder %s34, %s35
    %p49 = scmp.eq.s32.totalorder %s15, 1
    %p50 = por %p48, %p49
    %p52 = scmp.ne.s32.totalorder %s35, %s51
    %p53 = scmp.eq.s32.totalorder %s15, 0
    %p54 = por %p52, %p53
    %s55 = ssub.s32 %s16, %s28
    %p56 = scmp.eq.s32.totalorder %s55, 0
    %s58 = sadd.s32 %s57, 1
    %s59 = scalar_select %p56, %s57, %s58
    %p62 = pneg %p56
    %p63 = scmp.eq.s32.totalorder %s9, 1
    %p64 = por %p62, %p63
    %p65 = scmp.ne.s32.totalorder %s57, %s60
    %p66 = scmp.eq.s32.totalorder %s9, 0
    %p67 = por %p65, %p66
    %p68 = scmp.ne.s32.totalorder %s57, %s60
    %p69 = scmp.eq.s32.totalorder %s14, 1
    %p70 = por %p68, %p69
    %p71 = scmp.ne.s32.totalorder %s60, %s61
    %p72 = scmp.eq.s32.totalorder %s14, 0
    %p73 = por %p71, %p72
    %p74 = scmp.ne.s32.totalorder %s60, %s61
    %p75 = scmp.eq.s32.totalorder %s15, 1
    %p76 = por %p74, %p75
    %p78 = scmp.ne.s32.totalorder %s61, %s77
    %p79 = scmp.eq.s32.totalorder %s15, 0
    %p80 = por %p78, %p79
    %s81 = ssub.s32 %s16, %s28
    %p82 = scmp.eq.s32.totalorder %s81, 0
    %s84 = sadd.s32 %s83, 1
    %s85 = scalar_select %p82, %s83, %s84
    %p88 = pneg %p82
    %p89 = scmp.eq.s32.totalorder %s9, 1
    %p90 = por %p88, %p89
    %p91 = scmp.ne.s32.totalorder %s83, %s86
    %p92 = scmp.eq.s32.totalorder %s9, 0
    %p93 = por %p91, %p92
    %p94 = scmp.ne.s32.totalorder %s83, %s86
    %p95 = scmp.eq.s32.totalorder %s14, 1
    %p96 = por %p94, %p95
    %p97 = scmp.ne.s32.totalorder %s86, %s87
    %p98 = scmp.eq.s32.totalorder %s14, 0
    %p99 = por %p97, %p98
    %p100 = scmp.ne.s32.totalorder %s86, %s87
    %p101 = scmp.eq.s32.totalorder %s15, 1
    %p102 = por %p100, %p101
    %p104 = scmp.ne.s32.totalorder %s87, %s103
    %p105 = scmp.eq.s32.totalorder %s15, 0
    %p106 = por %p104, %p105
    %s107 = ssub.s32 %s17, %s24
    %s108 = ssub.s32 %s16, %s28
    %s109 = sor.u32 %s107, %s108
    %p110 = scmp.eq.s32.totalorder %s109, 0
    %s112 = sadd.s32 %s111, 1
    %s113 = scalar_select %p110, %s111, %s112
    %p116 = pneg %p110
    %p117 = scmp.eq.s32.totalorder %s9, 1
    %p118 = por %p116, %p117
    %p119 = scmp.ne.s32.totalorder %s111, %s114
    %p120 = scmp.eq.s32.totalorder %s9, 0
    %p121 = por %p119, %p120
    %p122 = scmp.ne.s32.totalorder %s111, %s114
    %p123 = scmp.eq.s32.totalorder %s14, 1
    %p124 = por %p122, %p123
    %p125 = scmp.ne.s32.totalorder %s114, %s115
    %p126 = scmp.eq.s32.totalorder %s14, 0
    %p127 = por %p125, %p126
    %p128 = scmp.ne.s32.totalorder %s114, %s115
    %p129 = scmp.eq.s32.totalorder %s15, 1
    %p130 = por %p128, %p129
    %p132 = scmp.ne.s32.totalorder %s115, %s131
    %p133 = scmp.eq.s32.totalorder %s15, 0
    %p134 = por %p132, %p133
    %p135 = scmp.le.s32.totalorder 1, %s9
    %p136 = scmp.lt.s32.totalorder %s9, 3
    %p137 = pnand %p135, %p136
    %p138 = pneg %p137
    // Predicated region
    $region9: #{conv_bn_silu.1} parent=5 // pred_check
      _
    $region10: #{conv_bn_silu.1} parent=5 // pred_check_branch
      %140 = sbr.rel (%p137) target = $region12
    $region11: #{conv_bn_silu.1} parent=5 // pred_region
      %s141 = ssub.s32 %s9, 1
      // Predicated region
      $region13: #{conv_bn_silu.1} parent=11 // pred_check
        %p142 = pneg %p73
      $region14: #{conv_bn_silu.1} parent=11 // pred_check_branch
        %144 = sbr.rel (%p142) target = $region16
      $region15: #{conv_bn_silu.1} parent=11 // pred_region
        %p145 = scmp.lt.s32.totalorder %s18, 0
        %s146 = scalar_select %p145, %s18, 0
        %s147 = smul.addr %s146, 4
        %s148 = scalar_lea.vmem %s1, %s147
      $region16: #{conv_bn_silu.1} parent=11 // pred_fallthru
        _
      // Predicated region
      $region17: #{conv_bn_silu.1} parent=11 // pred_check
        %p149 = pneg %p99
      $region18: #{conv_bn_silu.1} parent=11 // pred_check_branch
        %151 = sbr.rel (%p149) target = $region20
      $region19: #{conv_bn_silu.1} parent=11 // pred_region
        %p152 = scmp.lt.s32.totalorder %s18, 0
        %s153 = scalar_select %p152, %s18, 0
        %s154 = scalar_lea.vmem %s2, %s153
      $region20: #{conv_bn_silu.1} parent=11 // pred_fallthru
        _
    $region12: #{conv_bn_silu.1} parent=5 // pred_fallthru
      _
    %p155 = scmp.lt.s32.totalorder %s9, 2
    // Predicated region
    $region21: #{conv_bn_silu.1} parent=5 // pred_check
      %p156 = pneg %p155
    $region22: #{conv_bn_silu.1} parent=5 // pred_check_branch
      %158 = sbr.rel (%p156) target = $region24
    $region23: #{conv_bn_silu.1} parent=5 // pred_region
      // Predicated region
      $region25: #{conv_bn_silu.1} parent=23 // pred_check
        %p159 = pneg %p41
      $region26: #{conv_bn_silu.1} parent=23 // pred_check_branch
        %161 = sbr.rel (%p159) target = $region28
      $region27: #{conv_bn_silu.1} parent=23 // pred_region
        %p162 = scmp.lt.s32.totalorder %s17, 1
        %s163 = scalar_select %p162, %s17, 1
        %s164 = smul.addr %s163, 41
        %s165 = smul.addr %s164, 4
        %s166 = scalar_lea.vmem %s0, %s165
      $region28: #{conv_bn_silu.1} parent=23 // pred_fallthru
        _
    $region24: #{conv_bn_silu.1} parent=5 // pred_fallthru
      _
    %p167 = scmp.le.s32.totalorder 1, %s9
    %p168 = scmp.lt.s32.totalorder %s9, 3
    %p169 = pnand %p167, %p168
    %p170 = pneg %p169
    // Predicated region
    $region29: #{conv_bn_silu.1} parent=5 // pred_check
      _
    $region30: #{conv_bn_silu.1} parent=5 // pred_check_branch
      %172 = sbr.rel (%p169) target = $region32
    $region31: #{conv_bn_silu.1} parent=5 // pred_region
      %s173 = ssub.s32 %s9, 1
      %p174 = scmp.lt.s32.totalorder %s19, 1
      %s175 = scalar_select %p174, %s19, 1
      %s176 = smul.addr %s175, 41
      %s177 = smul.addr %s176, 4
      %s178 = scalar_lea.vmem %s0, %s177
      %p179 = pneg %p47
      %p180 = pneg %p44
      %p181 = scmp.lt.s32.totalorder %s18, 0
      %s182 = scalar_select %p181, %s18, 0
      %s183 = smul.addr %s182, 4
      %s184 = scalar_lea.vmem %s1, %s183
      %p185 = pneg %p73
      %p186 = pneg %p70
      %p187 = scmp.lt.s32.totalorder %s18, 0
      %s188 = scalar_select %p187, %s18, 0
      %s189 = scalar_lea.vmem %s2, %s188
      %p190 = pneg %p99
      %p191 = pneg %p96
      %p192 = pneg %p127
      %p193 = pneg %p124
      %p194 = scmp.lt.s32.totalorder %s19, 1
      %s195 = scalar_select %p194, %s19, 1
      %p196 = scmp.lt.s32.totalorder %s18, 0
      %s197 = scalar_select %p196, %s18, 0
      %s198 = smul.addr %s195, 36
      %s199 = sadd.s32 %s197, %s198
      %s200 = smul.addr %s199, 8
      %s201 = scalar_lea.vmem %s3, %s200
      %p202 = scmp.lt.s32.totalorder %s19, 1
      %s203 = scalar_select %p202, %s19, 1
      %s204 = smul.addr %s203, 41
      %s205 = smul.addr %s204, 4
      %s206 = scalar_lea.vmem %s0, %s205
      %p207 = scmp.lt.s32.totalorder %s18, 0
      %s208 = scalar_select %p207, %s18, 0
      %s209 = smul.addr %s208, 4
      %s210 = scalar_lea.vmem %s1, %s209
      %p211 = scmp.lt.s32.totalorder %s18, 0
      %s212 = scalar_select %p211, %s18, 0
      %s213 = scalar_lea.vmem %s2, %s212
      %p214 = scmp.lt.s32.totalorder %s19, 1
      %s215 = scalar_select %p214, %s19, 1
      %p216 = scmp.lt.s32.totalorder %s18, 0
      %s217 = scalar_select %p216, %s18, 0
      %s218 = smul.addr %s215, 36
      %s219 = sadd.s32 %s217, %s218
      %s220 = smul.addr %s219, 8
      %s221 = scalar_lea.vmem %s3, %s220
      %v223 = vld [vmem:[%s206] sm:$0xf]
      %v224 = vld [vmem:[%s206 + $0x4] sm:$0xf]
      %v225 = vld [vmem:[%s206 + $0x8] sm:$0xf]
      %v226 = vld [vmem:[%s206 + $0xc] sm:$0xf]
      %v227 = vld [vmem:[%s206 + $0x10] sm:$0xf]
      %v228 = vld [vmem:[%s206 + $0x14] sm:$0xf]
      %v229 = vld [vmem:[%s206 + $0x18] sm:$0xf]
      %v230 = vld [vmem:[%s206 + $0x1c] sm:$0xf]
      %v231 = vld [vmem:[%s206 + $0x20] sm:$0xf]
      %v232 = vld [vmem:[%s206 + $0x24] sm:$0xf]
      %v233 = vld [vmem:[%s206 + $0x28] sm:$0xf]
      %v234 = vld [vmem:[%s206 + $0x2c] sm:$0xf]
      %v235 = vld [vmem:[%s206 + $0x30] sm:$0xf]
      %v236 = vld [vmem:[%s206 + $0x34] sm:$0xf]
      %v237 = vld [vmem:[%s206 + $0x38] sm:$0xf]
      %v238 = vld [vmem:[%s206 + $0x3c] sm:$0xf]
      %v239 = vld [vmem:[%s206 + $0x40] sm:$0xf]
      %v240 = vld [vmem:[%s206 + $0x44] sm:$0xf]
      %v241 = vld [vmem:[%s206 + $0x48] sm:$0xf]
      %v242 = vld [vmem:[%s206 + $0x4c] sm:$0xf]
      %v243 = vld [vmem:[%s206 + $0x50] sm:$0xf]
      %v244 = vld [vmem:[%s206 + $0x54] sm:$0xf]
      %v245 = vld [vmem:[%s206 + $0x58] sm:$0xf]
      %v246 = vld [vmem:[%s206 + $0x5c] sm:$0xf]
      %v247 = vld [vmem:[%s206 + $0x60] sm:$0xf]
      %v248 = vld [vmem:[%s206 + $0x64] sm:$0xf]
      %v249 = vld [vmem:[%s206 + $0x68] sm:$0xf]
      %v250 = vld [vmem:[%s206 + $0x6c] sm:$0xf]
      %v251 = vld [vmem:[%s206 + $0x70] sm:$0xf]
      %v252 = vld [vmem:[%s206 + $0x74] sm:$0xf]
      %v253 = vld [vmem:[%s206 + $0x78] sm:$0xf]
      %v254 = vld [vmem:[%s206 + $0x7c] sm:$0xf]
      %v255 = vld [vmem:[%s206 + $0x80] sm:$0xf]
      %v256 = vld [vmem:[%s206 + $0x84] sm:$0xf]
      %v257 = vld [vmem:[%s206 + $0x88] sm:$0xf]
      %v258 = vld [vmem:[%s206 + $0x8c] sm:$0xf]
      %v259 = vld [vmem:[%s210] sm:$0x3]
      %v260 = vld [vmem:[%s206 + $0x90] sm:$0x1]
      %v261 = vld [vmem:[%s210] sm:$0xc]
      %v299 = vunpack.c.l.b16 %v223
      %v300 = vunpack.c.l.b16 %v224
      %v301 = vunpack.c.l.b16 %v225
      %v302 = vunpack.c.l.b16 %v226
      %v303 = vunpack.c.l.b16 %v227
      %v304 = vunpack.c.l.b16 %v228
      %v305 = vunpack.c.l.b16 %v229
      %v306 = vunpack.c.l.b16 %v230
      %v307 = vunpack.c.l.b16 %v231
      %v308 = vunpack.c.l.b16 %v232
      %v309 = vunpack.c.l.b16 %v233
      %v310 = vunpack.c.l.b16 %v234
      %v311 = vunpack.c.l.b16 %v235
      %v312 = vunpack.c.l.b16 %v236
      %v313 = vunpack.c.l.b16 %v237
      %v314 = vunpack.c.l.b16 %v238
      %v315 = vunpack.c.l.b16 %v239
      %v316 = vunpack.c.l.b16 %v240
      %v317 = vunpack.c.l.b16 %v241
      %v318 = vunpack.c.l.b16 %v242
      %v319 = vunpack.c.l.b16 %v243
      %v320 = vunpack.c.l.b16 %v244
      %v321 = vunpack.c.l.b16 %v245
      %v322 = vunpack.c.l.b16 %v246
      %v323 = vunpack.c.l.b16 %v247
      %v324 = vunpack.c.l.b16 %v248
      %v325 = vunpack.c.l.b16 %v249
      %v326 = vunpack.c.l.b16 %v250
      %v327 = vunpack.c.l.b16 %v251
      %v328 = vunpack.c.l.b16 %v252
      %v329 = vunpack.c.l.b16 %v253
      %v330 = vunpack.c.l.b16 %v254
      %v331 = vunpack.c.l.b16 %v255
      %v332 = vunpack.c.l.b16 %v256
      %v333 = vunpack.c.l.b16 %v257
      %v334 = vunpack.c.l.b16 %v258
      %v335 = vunpack.c.l.b16 %v260
      %v336 = vpack.c.b16 %v300, %v299
      %v337 = vpack.c.b16 %v302, %v301
      %v338 = vpack.c.b16 %v304, %v303
      %v339 = vpack.c.b16 %v306, %v305
      %v340 = vpack.c.b16 %v308, %v307
      %v341 = vpack.c.b16 %v310, %v309
      %v342 = vpack.c.b16 %v312, %v311
      %v343 = vpack.c.b16 %v314, %v313
      %v344 = vpack.c.b16 %v316, %v315
      %v345 = vpack.c.b16 %v318, %v317
      %v346 = vpack.c.b16 %v320, %v319
      %v347 = vpack.c.b16 %v322, %v321
      %v348 = vpack.c.b16 %v324, %v323
      %v349 = vpack.c.b16 %v326, %v325
      %v350 = vpack.c.b16 %v328, %v327
      %v351 = vpack.c.b16 %v330, %v329
      %v352 = vpack.c.b16 %v332, %v331
      %v353 = vpack.c.b16 %v334, %v333
      %v354 = vpack.c.b16 %v335, %v335
      %vm355 = vsmask.f32 7424
      %v357 = vshrl.u32 %v336, 16
      %v359 = vshll.u32 %v336, 16
      %v361 = vrot.slane %v359, 1
      %v362 = vor.u32 %v357, %v361
      %v364 = vshll.u32 %v337, 16
      %v366 = vrot.slane %v364, 1
      %v367 = vsel %vm355, %v362, %v366
      %v368 = vshrl.u32 %v337, 16
      %v370 = vor.u32 %v368, %v366
      %v372 = vshll.u32 %v338, 16
      %v374 = vrot.slane %v372, 1
      %v375 = vsel %vm355, %v370, %v374
      %v376 = vshrl.u32 %v338, 16
      %v378 = vor.u32 %v376, %v374
      %v380 = vshll.u32 %v339, 16
      %v382 = vrot.slane %v380, 1
      %v383 = vsel %vm355, %v378, %v382
      %v384 = vshrl.u32 %v339, 16
      %v386 = vor.u32 %v384, %v382
      %v388 = vshll.u32 %v340, 16
      %v390 = vrot.slane %v388, 1
      %v391 = vsel %vm355, %v386, %v390
      %v392 = vshrl.u32 %v340, 16
      %v394 = vor.u32 %v392, %v390
      %v396 = vshll.u32 %v341, 16
      %v398 = vrot.slane %v396, 1
      %v399 = vsel %vm355, %v394, %v398
      %v400 = vshrl.u32 %v341, 16
      %v402 = vor.u32 %v400, %v398
      %v404 = vshll.u32 %v342, 16
      %v406 = vrot.slane %v404, 1
      %v407 = vsel %vm355, %v402, %v406
      %v408 = vshrl.u32 %v342, 16
      %v410 = vor.u32 %v408, %v406
      %v412 = vshll.u32 %v343, 16
      %v414 = vrot.slane %v412, 1
      %v415 = vsel %vm355, %v410, %v414
      %v416 = vshrl.u32 %v343, 16
      %v418 = vor.u32 %v416, %v414
      %v420 = vshll.u32 %v344, 16
      %v422 = vrot.slane %v420, 1
      %v423 = vsel %vm355, %v418, %v422
      %v424 = vshrl.u32 %v344, 16
      %v426 = vor.u32 %v424, %v422
      %v428 = vshll.u32 %v345, 16
      %v430 = vrot.slane %v428, 1
      %v431 = vsel %vm355, %v426, %v430
      %v432 = vshrl.u32 %v345, 16
      %v434 = vor.u32 %v432, %v430
      %v436 = vshll.u32 %v346, 16
      %v438 = vrot.slane %v436, 1
      %v439 = vsel %vm355, %v434, %v438
      %v440 = vshrl.u32 %v346, 16
      %v442 = vor.u32 %v440, %v438
      %v444 = vshll.u32 %v347, 16
      %v446 = vrot.slane %v444, 1
      %v447 = vsel %vm355, %v442, %v446
      %v448 = vshrl.u32 %v347, 16
      %v450 = vor.u32 %v448, %v446
      %v452 = vshll.u32 %v348, 16
      %v454 = vrot.slane %v452, 1
      %v455 = vsel %vm355, %v450, %v454
      %v456 = vshrl.u32 %v348, 16
      %v458 = vor.u32 %v456, %v454
      %v460 = vshll.u32 %v349, 16
      %v462 = vrot.slane %v460, 1
      %v463 = vsel %vm355, %v458, %v462
      %v464 = vshrl.u32 %v349, 16
      %v466 = vor.u32 %v464, %v462
      %v468 = vshll.u32 %v350, 16
      %v470 = vrot.slane %v468, 1
      %v471 = vsel %vm355, %v466, %v470
      %v472 = vshrl.u32 %v350, 16
      %v474 = vor.u32 %v472, %v470
      %v476 = vshll.u32 %v351, 16
      %v478 = vrot.slane %v476, 1
      %v479 = vsel %vm355, %v474, %v478
      %v480 = vshrl.u32 %v351, 16
      %v482 = vor.u32 %v480, %v478
      %v484 = vshll.u32 %v352, 16
      %v486 = vrot.slane %v484, 1
      %v487 = vsel %vm355, %v482, %v486
      %v488 = vshrl.u32 %v352, 16
      %v490 = vor.u32 %v488, %v486
      %v492 = vshll.u32 %v353, 16
      %v494 = vrot.slane %v492, 1
      %v495 = vsel %vm355, %v490, %v494
      %v496 = vshrl.u32 %v353, 16
      %v498 = vor.u32 %v496, %v494
      %v500 = vshll.u32 %v354, 16
      %v502 = vrot.slane %v500, 1
      %v503 = vsel %vm355, %v498, %v502
      %v505 = vunpack.c.l.b16 %v261
      %v506 = vpack.c.b16 %v505, %v505
      %v507 = vrot.slane %v506, 2
      %vm508 = vcmask 31744
      %v510 = vsel %vm508, %v367, 0
      %v513 = vsel %vm508, %v375, 0
      %v516 = vsel %vm508, %v383, 0
      %v519 = vsel %vm508, %v391, 0
      %v522 = vsel %vm508, %v399, 0
      %v525 = vsel %vm508, %v407, 0
      %v528 = vsel %vm508, %v415, 0
      %v531 = vsel %vm508, %v423, 0
      %v534 = vsel %vm508, %v431, 0
      %v537 = vsel %vm508, %v439, 0
      %v540 = vsel %vm508, %v447, 0
      %v543 = vsel %vm508, %v455, 0
      %v546 = vsel %vm508, %v463, 0
      %v549 = vsel %vm508, %v471, 0
      %v552 = vsel %vm508, %v479, 0
      %v555 = vsel %vm508, %v487, 0
      %v558 = vsel %vm508, %v495, 0
      %v561 = vsel %vm508, %v503, 0
      %vm563 = vcmask 1041408
      %v565 = vsel %vm563, %v507, 0
      %567 = vmatprep.subr.bf16.mxu0 0
      %568 = vmatpush1.bf16.msra.mxu0 %v565
      %569 = vmatprep.subr.bf16.mxu0 0
      %570 = vmatpush1.bf16.msra.mxu0 0
      %571 = vmatprep.subr.bf16.mxu0 0
      %572 = vmatpush1.bf16.msra.mxu0 0
      %573 = vmatprep.subr.bf16.mxu0 0
      %574 = vmatpush1.bf16.msra.mxu0 0
      %575 = vmatprep.subr.bf16.mxu0 0
      %576 = vmatpush1.bf16.msra.mxu0 0
      %577 = vmatprep.subr.bf16.mxu0 0
      %578 = vmatpush1.bf16.msra.mxu0 0
      %579 = vmatprep.subr.bf16.mxu0 0
      %580 = vmatpush1.bf16.msra.mxu0 0
      %581 = vmatprep.subr.bf16.mxu0 0
      %582 = vmatpush1.bf16.msra.mxu0 0
      %583 = vmatprep.subr.bf16.mxu0 0
      %584 = vmatpush1.bf16.msra.mxu0 0
      %585 = vmatprep.subr.bf16.mxu0 0
      %586 = vmatpush1.bf16.msra.mxu0 0
      %587 = vmatprep.subr.bf16.mxu0 0
      %588 = vmatpush1.bf16.msra.mxu0 0
      %589 = vmatprep.subr.bf16.mxu0 0
      %590 = vmatpush1.bf16.msra.mxu0 0
      %591 = vmatprep.subr.bf16.mxu0 0
      %592 = vmatpush1.bf16.msra.mxu0 0
      %593 = vmatprep.subr.bf16.mxu0 0
      %594 = vmatpush1.bf16.msra.mxu0 0
      %595 = vmatprep.subr.bf16.mxu0 0
      %596 = vmatpush1.bf16.msra.mxu0 0
      %597 = vmatprep.subr.bf16.mxu0 0
      %598 = vmatpush1.bf16.msra.mxu0 0
      %599 = vmatprep.mubr.bf16.mxu0 0
      %600 = vmatmul.mubr.bf16.gmra.mrb[0].mxu0 %v510
      %v601 = vpop.f32.mrb[0].mxu0
      %v602 = vadd.f32 0.0, %v601
      %v603 = vpop.f32.mrb[0].mxu0
      %v604 = vpop.f32.mrb[0].mxu0
      %v605 = vadd.f32 0.0, %v604
      %v606 = vpop.f32.mrb[0].mxu0
      %607 = vmatprep.mubr.bf16.mxu0 0
      %608 = vmatmul.mubr.bf16.gmra.mrb[0].mxu0 %v513
      %v609 = vpop.f32.mrb[0].mxu0
      %v610 = vadd.f32 0.0, %v609
      %v611 = vpop.f32.mrb[0].mxu0
      %v612 = vpop.f32.mrb[0].mxu0
      %v613 = vadd.f32 0.0, %v612
      %v614 = vpop.f32.mrb[0].mxu0
      %615 = vmatprep.mubr.bf16.mxu0 0
      %616 = vmatmul.mubr.bf16.gmra.mrb[0].mxu0 %v516
      %v617 = vpop.f32.mrb[0].mxu0
      %v618 = vadd.f32 0.0, %v617
      %v619 = vpop.f32.mrb[0].mxu0
      %v620 = vpop.f32.mrb[0].mxu0
      %v621 = vadd.f32 0.0, %v620
      %v622 = vpop.f32.mrb[0].mxu0
      %623 = vmatprep.mubr.bf16.mxu0 0
      %624 = vmatmul.mubr.bf16.gmra.mrb[0].mxu0 %v519
      %v625 = vpop.f32.mrb[0].mxu0
      %v626 = vadd.f32 0.0, %v625
      %v627 = vpop.f32.mrb[0].mxu0
      %v628 = vpop.f32.mrb[0].mxu0
      %v629 = vadd.f32 0.0, %v628
      %v630 = vpop.f32.mrb[0].mxu0
      %631 = vmatprep.mubr.bf16.mxu0 0
      %632 = vmatmul.mubr.bf16.gmra.mrb[0].mxu0 %v522
      %v633 = vpop.f32.mrb[0].mxu0
      %v634 = vadd.f32 0.0, %v633
      %v635 = vpop.f32.mrb[0].mxu0
      %v636 = vpop.f32.mrb[0].mxu0
      %v637 = vadd.f32 0.0, %v636
      %v638 = vpop.f32.mrb[0].mxu0
      %639 = vmatprep.mubr.bf16.mxu0 0
      %640 = vmatmul.mubr.bf16.gmra.mrb[0].mxu0 %v525
      %v641 = vpop.f32.mrb[0].mxu0
      %v642 = vadd.f32 0.0, %v641
      %v643 = vpop.f32.mrb[0].mxu0
      %v644 = vpop.f32.mrb[0].mxu0
      %v645 = vadd.f32 0.0, %v644
      %v646 = vpop.f32.mrb[0].mxu0
      %647 = vmatprep.mubr.bf16.mxu0 0
      %648 = vmatmul.mubr.bf16.gmra.mrb[0].mxu0 %v528
      %v649 = vpop.f32.mrb[0].mxu0
      %v650 = vadd.f32 0.0, %v649
      %v651 = vpop.f32.mrb[0].mxu0
      %v652 = vpop.f32.mrb[0].mxu0
      %v653 = vadd.f32 0.0, %v652
      %v654 = vpop.f32.mrb[0].mxu0
      %655 = vmatprep.mubr.bf16.mxu0 0
      %656 = vmatmul.mubr.bf16.gmra.mrb[0].mxu0 %v531
      %v657 = vpop.f32.mrb[0].mxu0
      %v658 = vadd.f32 0.0, %v657
      %v659 = vpop.f32.mrb[0].mxu0
      %v660 = vpop.f32.mrb[0].mxu0
      %v661 = vadd.f32 0.0, %v660
      %v662 = vpop.f32.mrb[0].mxu0
      %663 = vmatprep.mubr.bf16.mxu0 0
      %664 = vmatmul.mubr.bf16.gmra.mrb[0].mxu0 %v534
      %v665 = vpop.f32.mrb[0].mxu0
      %v666 = vadd.f32 0.0, %v665
      %v667 = vpop.f32.mrb[0].mxu0
      %v668 = vpop.f32.mrb[0].mxu0
      %v669 = vadd.f32 0.0, %v668
      %v670 = vpop.f32.mrb[0].mxu0
      %671 = vmatprep.mubr.bf16.mxu0 0
      %672 = vmatmul.mubr.bf16.gmra.mrb[0].mxu0 %v537
      %v673 = vpop.f32.mrb[0].mxu0
      %v674 = vadd.f32 0.0, %v673
      %v675 = vpop.f32.mrb[0].mxu0
      %v676 = vpop.f32.mrb[0].mxu0
      %v677 = vadd.f32 0.0, %v676
      %v678 = vpop.f32.mrb[0].mxu0
      %679 = vmatprep.mubr.bf16.mxu0 0
      %680 = vmatmul.mubr.bf16.gmra.mrb[0].mxu0 %v540
      %v681 = vpop.f32.mrb[0].mxu0
      %v682 = vadd.f32 0.0, %v681
      %v683 = vpop.f32.mrb[0].mxu0
      %v684 = vpop.f32.mrb[0].mxu0
      %v685 = vadd.f32 0.0, %v684
      %v686 = vpop.f32.mrb[0].mxu0
      %687 = vmatprep.mubr.bf16.mxu0 0
      %688 = vmatmul.mubr.bf16.gmra.mrb[0].mxu0 %v543
      %v689 = vpop.f32.mrb[0].mxu0
      %v690 = vadd.f32 0.0, %v689
      %v691 = vpop.f32.mrb[0].mxu0
      %v692 = vpop.f32.mrb[0].mxu0
      %v693 = vadd.f32 0.0, %v692
      %v694 = vpop.f32.mrb[0].mxu0
      %695 = vmatprep.mubr.bf16.mxu0 0
      %696 = vmatmul.mubr.bf16.gmra.mrb[0].mxu0 %v546
      %v697 = vpop.f32.mrb[0].mxu0
      %v698 = vadd.f32 0.0, %v697
      %v699 = vpop.f32.mrb[0].mxu0
      %v700 = vpop.f32.mrb[0].mxu0
      %v701 = vadd.f32 0.0, %v700
      %v702 = vpop.f32.mrb[0].mxu0
      %703 = vmatprep.mubr.bf16.mxu0 0
      %704 = vmatmul.mubr.bf16.gmra.mrb[0].mxu0 %v549
      %v705 = vpop.f32.mrb[0].mxu0
      %v706 = vadd.f32 0.0, %v705
      %v707 = vpop.f32.mrb[0].mxu0
      %v708 = vpop.f32.mrb[0].mxu0
      %v709 = vadd.f32 0.0, %v708
      %v710 = vpop.f32.mrb[0].mxu0
      %711 = vmatprep.mubr.bf16.mxu0 0
      %712 = vmatmul.mubr.bf16.gmra.mrb[0].mxu0 %v552
      %v713 = vpop.f32.mrb[0].mxu0
      %v714 = vadd.f32 0.0, %v713
      %v715 = vpop.f32.mrb[0].mxu0
      %v716 = vpop.f32.mrb[0].mxu0
      %v717 = vadd.f32 0.0, %v716
      %v718 = vpop.f32.mrb[0].mxu0
      %719 = vmatprep.mubr.bf16.mxu0 0
      %720 = vmatmul.mubr.bf16.gmra.mrb[0].mxu0 %v555
      %v721 = vpop.f32.mrb[0].mxu0
      %v722 = vadd.f32 0.0, %v721
      %v723 = vpop.f32.mrb[0].mxu0
      %v724 = vpop.f32.mrb[0].mxu0
      %v725 = vadd.f32 0.0, %v724
      %v726 = vpop.f32.mrb[0].mxu0
      %727 = vmatprep.mubr.bf16.mxu0 0
      %728 = vmatmul.mubr.bf16.gmra.mrb[0].mxu0 %v558
      %v729 = vpop.f32.mrb[0].mxu0
      %v730 = vadd.f32 0.0, %v729
      %v731 = vpop.f32.mrb[0].mxu0
      %v732 = vpop.f32.mrb[0].mxu0
      %v733 = vadd.f32 0.0, %v732
      %v734 = vpop.f32.mrb[0].mxu0
      %735 = vmatprep.mubr.bf16.mxu0 0
      %736 = vmatmul.mubr.bf16.gmra.mrb[0].mxu0 %v561
      %v737 = vpop.f32.mrb[0].mxu0
      %v738 = vadd.f32 0.0, %v737
      %v739 = vpop.f32.mrb[0].mxu0
      %v740 = vpop.f32.mrb[0].mxu0
      %v741 = vadd.f32 0.0, %v740
      %v742 = vpop.f32.mrb[0].mxu0
      %743 = vdwg.mxu0
      %v744 = vsel %vm508, %v336, 0
      %v746 = vsel %vm508, %v337, 0
      %v748 = vsel %vm508, %v338, 0
      %v750 = vsel %vm508, %v339, 0
      %v752 = vsel %vm508, %v340, 0
      %v754 = vsel %vm508, %v341, 0
      %v756 = vsel %vm508, %v342, 0
      %v758 = vsel %vm508, %v343, 0
      %v760 = vsel %vm508, %v344, 0
      %v762 = vsel %vm508, %v345, 0
      %v764 = vsel %vm508, %v346, 0
      %v766 = vsel %vm508, %v347, 0
      %v768 = vsel %vm508, %v348, 0
      %v770 = vsel %vm508, %v349, 0
      %v772 = vsel %vm508, %v350, 0
      %v774 = vsel %vm508, %v351, 0
      %v776 = vsel %vm508, %v352, 0
      %v778 = vsel %vm508, %v353, 0
      %v781 = vsel %vm563, %v259, 0
      %783 = vmatprep.subr.bf16.mxu0 0
      %784 = vmatpush1.bf16.msra.mxu0 %v781
      %785 = vmatprep.subr.bf16.mxu0 0
      %786 = vmatpush1.bf16.msra.mxu0 0
      %787 = vmatprep.subr.bf16.mxu0 0
      %788 = vmatpush1.bf16.msra.mxu0 0
      %789 = vmatprep.subr.bf16.mxu0 0
      %790 = vmatpush1.bf16.msra.mxu0 0
      %791 = vmatprep.subr.bf16.mxu0 0
      %792 = vmatpush1.bf16.msra.mxu0 0
      %793 = vmatprep.subr.bf16.mxu0 0
      %794 = vmatpush1.bf16.msra.mxu0 0
      %795 = vmatprep.subr.bf16.mxu0 0
      %796 = vmatpush1.bf16.msra.mxu0 0
      %797 = vmatprep.subr.bf16.mxu0 0
      %798 = vmatpush1.bf16.msra.mxu0 0
      %799 = vmatprep.subr.bf16.mxu0 0
      %800 = vmatpush1.bf16.msra.mxu0 0
      %801 = vmatprep.subr.bf16.mxu0 0
      %802 = vmatpush1.bf16.msra.mxu0 0
      %803 = vmatprep.subr.bf16.mxu0 0
      %804 = vmatpush1.bf16.msra.mxu0 0
      %805 = vmatprep.subr.bf16.mxu0 0
      %806 = vmatpush1.bf16.msra.mxu0 0
      %807 = vmatprep.subr.bf16.mxu0 0
      %808 = vmatpush1.bf16.msra.mxu0 0
      %809 = vmatprep.subr.bf16.mxu0 0
      %810 = vmatpush1.bf16.msra.mxu0 0
      %811 = vmatprep.subr.bf16.mxu0 0
      %812 = vmatpush1.bf16.msra.mxu0 0
      %813 = vmatprep.subr.bf16.mxu0 0
      %814 = vmatpush1.bf16.msra.mxu0 0
      %815 = vmatprep.mubr.bf16.mxu0 0
      %816 = vmatmul.mubr.bf16.gmra.mrb[0].mxu0 %v744
      %v817 = vpop.f32.mrb[0].mxu0
      %v818 = vadd.f32 %v602, %v817
      %v819 = vpop.f32.mrb[0].mxu0
      %v820 = vpop.f32.mrb[0].mxu0
      %v821 = vadd.f32 %v605, %v820
      %v822 = vpop.f32.mrb[0].mxu0
      %823 = vmatprep.mubr.bf16.mxu0 0
      %824 = vmatmul.mubr.bf16.gmra.mrb[0].mxu0 %v746
      %v825 = vpop.f32.mrb[0].mxu0
      %v826 = vadd.f32 %v610, %v825
      %v827 = vpop.f32.mrb[0].mxu0
      %v828 = vpop.f32.mrb[0].mxu0
      %v829 = vadd.f32 %v613, %v828
      %v830 = vpop.f32.mrb[0].mxu0
      %831 = vmatprep.mubr.bf16.mxu0 0
      %832 = vmatmul.mubr.bf16.gmra.mrb[0].mxu0 %v748
      %v833 = vpop.f32.mrb[0].mxu0
      %v834 = vadd.f32 %v618, %v833
      %v835 = vpop.f32.mrb[0].mxu0
      %v836 = vpop.f32.mrb[0].mxu0
      %v837 = vadd.f32 %v621, %v836
      %v838 = vpop.f32.mrb[0].mxu0
      %839 = vmatprep.mubr.bf16.mxu0 0
      %840 = vmatmul.mubr.bf16.gmra.mrb[0].mxu0 %v750
      %v841 = vpop.f32.mrb[0].mxu0
      %v842 = vadd.f32 %v626, %v841
      %v843 = vpop.f32.mrb[0].mxu0
      %v844 = vpop.f32.mrb[0].mxu0
      %v845 = vadd.f32 %v629, %v844
      %v846 = vpop.f32.mrb[0].mxu0
      %847 = vmatprep.mubr.bf16.mxu0 0
      %848 = vmatmul.mubr.bf16.gmra.mrb[0].mxu0 %v752
      %v849 = vpop.f32.mrb[0].mxu0
      %v850 = vadd.f32 %v634, %v849
      %v851 = vpop.f32.mrb[0].mxu0
      %v852 = vpop.f32.mrb[0].mxu0
      %v853 = vadd.f32 %v637, %v852
      %v854 = vpop.f32.mrb[0].mxu0
      %855 = vmatprep.mubr.bf16.mxu0 0
      %856 = vmatmul.mubr.bf16.gmra.mrb[0].mxu0 %v754
      %v857 = vpop.f32.mrb[0].mxu0
      %v858 = vadd.f32 %v642, %v857
      %v859 = vpop.f32.mrb[0].mxu0
      %v860 = vpop.f32.mrb[0].mxu0
      %v861 = vadd.f32 %v645, %v860
      %v862 = vpop.f32.mrb[0].mxu0
      %863 = vmatprep.mubr.bf16.mxu0 0
      %864 = vmatmul.mubr.bf16.gmra.mrb[0].mxu0 %v756
      %v865 = vpop.f32.mrb[0].mxu0
      %v866 = vadd.f32 %v650, %v865
      %v867 = vpop.f32.mrb[0].mxu0
      %v868 = vpop.f32.mrb[0].mxu0
      %v869 = vadd.f32 %v653, %v868
      %v870 = vpop.f32.mrb[0].mxu0
      %871 = vmatprep.mubr.bf16.mxu0 0
      %872 = vmatmul.mubr.bf16.gmra.mrb[0].mxu0 %v758
      %v873 = vpop.f32.mrb[0].mxu0
      %v874 = vadd.f32 %v658, %v873
      %v875 = vpop.f32.mrb[0].mxu0
      %v876 = vpop.f32.mrb[0].mxu0
      %v877 = vadd.f32 %v661, %v876
      %v878 = vpop.f32.mrb[0].mxu0
      %879 = vmatprep.mubr.bf16.mxu0 0
      %880 = vmatmul.mubr.bf16.gmra.mrb[0].mxu0 %v760
      %v881 = vpop.f32.mrb[0].mxu0
      %v882 = vadd.f32 %v666, %v881
      %v883 = vpop.f32.mrb[0].mxu0
      %v884 = vpop.f32.mrb[0].mxu0
      %v885 = vadd.f32 %v669, %v884
      %v886 = vpop.f32.mrb[0].mxu0
      %887 = vmatprep.mubr.bf16.mxu0 0
      %888 = vmatmul.mubr.bf16.gmra.mrb[0].mxu0 %v762
      %v889 = vpop.f32.mrb[0].mxu0
      %v890 = vadd.f32 %v674, %v889
      %v891 = vpop.f32.mrb[0].mxu0
      %v892 = vpop.f32.mrb[0].mxu0
      %v893 = vadd.f32 %v677, %v892
      %v894 = vpop.f32.mrb[0].mxu0
      %895 = vmatprep.mubr.bf16.mxu0 0
      %896 = vmatmul.mubr.bf16.gmra.mrb[0].mxu0 %v764
      %v897 = vpop.f32.mrb[0].mxu0
      %v898 = vadd.f32 %v682, %v897
      %v899 = vpop.f32.mrb[0].mxu0
      %v900 = vpop.f32.mrb[0].mxu0
      %v901 = vadd.f32 %v685, %v900
      %v902 = vpop.f32.mrb[0].mxu0
      %903 = vmatprep.mubr.bf16.mxu0 0
      %904 = vmatmul.mubr.bf16.gmra.mrb[0].mxu0 %v766
      %v905 = vpop.f32.mrb[0].mxu0
      %v906 = vadd.f32 %v690, %v905
      %v907 = vpop.f32.mrb[0].mxu0
      %v908 = vpop.f32.mrb[0].mxu0
      %v909 = vadd.f32 %v693, %v908
      %v910 = vpop.f32.mrb[0].mxu0
      %911 = vmatprep.mubr.bf16.mxu0 0
      %912 = vmatmul.mubr.bf16.gmra.mrb[0].mxu0 %v768
      %v913 = vpop.f32.mrb[0].mxu0
      %v914 = vadd.f32 %v698, %v913
      %v915 = vpop.f32.mrb[0].mxu0
      %v916 = vpop.f32.mrb[0].mxu0
      %v917 = vadd.f32 %v701, %v916
      %v918 = vpop.f32.mrb[0].mxu0
      %919 = vmatprep.mubr.bf16.mxu0 0
      %920 = vmatmul.mubr.bf16.gmra.mrb[0].mxu0 %v770
      %v921 = vpop.f32.mrb[0].mxu0
      %v922 = vadd.f32 %v706, %v921
      %v923 = vpop.f32.mrb[0].mxu0
      %v924 = vpop.f32.mrb[0].mxu0
      %v925 = vadd.f32 %v709, %v924
      %v926 = vpop.f32.mrb[0].mxu0
      %927 = vmatprep.mubr.bf16.mxu0 0
      %928 = vmatmul.mubr.bf16.gmra.mrb[0].mxu0 %v772
      %v929 = vpop.f32.mrb[0].mxu0
      %v930 = vadd.f32 %v714, %v929
      %v931 = vpop.f32.mrb[0].mxu0
      %v932 = vpop.f32.mrb[0].mxu0
      %v933 = vadd.f32 %v717, %v932
      %v934 = vpop.f32.mrb[0].mxu0
      %935 = vmatprep.mubr.bf16.mxu0 0
      %936 = vmatmul.mubr.bf16.gmra.mrb[0].mxu0 %v774
      %v937 = vpop.f32.mrb[0].mxu0
      %v938 = vadd.f32 %v722, %v937
      %v939 = vpop.f32.mrb[0].mxu0
      %v940 = vpop.f32.mrb[0].mxu0
      %v941 = vadd.f32 %v725, %v940
      %v942 = vpop.f32.mrb[0].mxu0
      %943 = vmatprep.mubr.bf16.mxu0 0
      %944 = vmatmul.mubr.bf16.gmra.mrb[0].mxu0 %v776
      %v945 = vpop.f32.mrb[0].mxu0
      %v946 = vadd.f32 %v730, %v945
      %v947 = vpop.f32.mrb[0].mxu0
      %v948 = vpop.f32.mrb[0].mxu0
      %v949 = vadd.f32 %v733, %v948
      %v950 = vpop.f32.mrb[0].mxu0
      %951 = vmatprep.mubr.bf16.mxu0 0
      %952 = vmatmul.mubr.bf16.gmra.mrb[0].mxu0 %v778
      %v953 = vpop.f32.mrb[0].mxu0
      %v954 = vadd.f32 %v738, %v953
      %v955 = vpop.f32.mrb[0].mxu0
      %v956 = vpop.f32.mrb[0].mxu0
      %v957 = vadd.f32 %v741, %v956
      %v958 = vpop.f32.mrb[0].mxu0
      %959 = vdwg.mxu0
      %v960 = vld [vmem:[%s206] sm:$0xe]
      %v961 = vld [vmem:[%s210 + $0x4] sm:$0x3]
      %v963 = vunpack.c.l.b16 %v960
      %v964 = vpack.c.b16 %v300, %v963
      %vm965 = vcmask 1046528
      %v966 = vrot.slane %v964, 1
      %v967 = vrot.slane %v337, 1
      %v968 = vsel %vm965, %v966, %v967
      %v969 = vrot.slane %v338, 1
      %v970 = vsel %vm965, %v967, %v969
      %v971 = vrot.slane %v339, 1
      %v972 = vsel %vm965, %v969, %v971
      %v973 = vrot.slane %v340, 1
      %v974 = vsel %vm965, %v971, %v973
      %v975 = vrot.slane %v341, 1
      %v976 = vsel %vm965, %v973, %v975
      %v977 = vrot.slane %v342, 1
      %v978 = vsel %vm965, %v975, %v977
      %v979 = vrot.slane %v343, 1
      %v980 = vsel %vm965, %v977, %v979
      %v981 = vrot.slane %v344, 1
      %v982 = vsel %vm965, %v979, %v981
      %v983 = vrot.slane %v345, 1
      %v984 = vsel %vm965, %v981, %v983
      %v985 = vrot.slane %v346, 1
      %v986 = vsel %vm965, %v983, %v985
      %v987 = vrot.slane %v347, 1
      %v988 = vsel %vm965, %v985, %v987
      %v989 = vrot.slane %v348, 1
      %v990 = vsel %vm965, %v987, %v989
      %v991 = vrot.slane %v349, 1
      %v992 = vsel %vm965, %v989, %v991
      %v993 = vrot.slane %v350, 1
      %v994 = vsel %vm965, %v991, %v993
      %v995 = vrot.slane %v351, 1
      %v996 = vsel %vm965, %v993, %v995
      %v997 = vrot.slane %v352, 1
      %v998 = vsel %vm965, %v995, %v997
      %v999 = vrot.slane %v353, 1
      %v1000 = vsel %vm965, %v997, %v999
      %v1001 = vrot.slane %v354, 1
      %v1002 = vsel %vm965, %v999, %v1001
      %v1004 = vsel %vm508, %v968, 0
      %v1007 = vsel %vm508, %v970, 0
      %v1010 = vsel %vm508, %v972, 0
      %v1013 = vsel %vm508, %v974, 0
      %v1016 = vsel %vm508, %v976, 0
      %v1019 = vsel %vm508, %v978, 0
      %v1022 = vsel %vm508, %v980, 0
      %v1025 = vsel %vm508, %v982, 0
      %v1028 = vsel %vm508, %v984, 0
      %v1031 = vsel %vm508, %v986, 0
      %v1034 = vsel %vm508, %v988, 0
      %v1037 = vsel %vm508, %v990, 0
      %v1040 = vsel %vm508, %v992, 0
      %v1043 = vsel %vm508, %v994, 0
      %v1046 = vsel %vm508, %v996, 0
      %v1049 = vsel %vm508, %v998, 0
      %v1052 = vsel %vm508, %v1000, 0
      %v1055 = vsel %vm508, %v1002, 0
      %v1058 = vsel %vm563, %v961, 0
      %1060 = vmatprep.subr.bf16.mxu0 0
      %1061 = vmatpush1.bf16.msra.mxu0 %v1058
      %1062 = vmatprep.subr.bf16.mxu0 0
      %1063 = vmatpush1.bf16.msra.mxu0 0
      %1064 = vmatprep.subr.bf16.mxu0 0
      %1065 = vmatpush1.bf16.msra.mxu0 0
      %1066 = vmatprep.subr.bf16.mxu0 0
      %1067 = vmatpush1.bf16.msra.mxu0 0
      %1068 = vmatprep.subr.bf16.mxu0 0
      %1069 = vmatpush1.bf16.msra.mxu0 0
      %1070 = vmatprep.subr.bf16.mxu0 0
      %1071 = vmatpush1.bf16.msra.mxu0 0
      %1072 = vmatprep.subr.bf16.mxu0 0
      %1073 = vmatpush1.bf16.msra.mxu0 0
      %1074 = vmatprep.subr.bf16.mxu0 0
      %1075 = vmatpush1.bf16.msra.mxu0 0
      %1076 = vmatprep.subr.bf16.mxu0 0
      %1077 = vmatpush1.bf16.msra.mxu0 0
      %1078 = vmatprep.subr.bf16.mxu0 0
      %1079 = vmatpush1.bf16.msra.mxu0 0
      %1080 = vmatprep.subr.bf16.mxu0 0
      %1081 = vmatpush1.bf16.msra.mxu0 0
      %1082 = vmatprep.subr.bf16.mxu0 0
      %1083 = vmatpush1.bf16.msra.mxu0 0
      %1084 = vmatprep.subr.bf16.mxu0 0
      %1085 = vmatpush1.bf16.msra.mxu0 0
      %1086 = vmatprep.subr.bf16.mxu0 0
      %1087 = vmatpush1.bf16.msra.mxu0 0
      %1088 = vmatprep.subr.bf16.mxu0 0
      %1089 = vmatpush1.bf16.msra.mxu0 0
      %1090 = vmatprep.subr.bf16.mxu0 0
      %1091 = vmatpush1.bf16.msra.mxu0 0
      %1092 = vmatprep.mubr.bf16.mxu0 0
      %1093 = vmatmul.mubr.bf16.gmra.mrb[0].mxu0 %v1004
      %v1094 = vpop.f32.mrb[0].mxu0
      %v1095 = vadd.f32 0.0, %v1094
      %v1096 = vpop.f32.mrb[0].mxu0
      %v1097 = vpop.f32.mrb[0].mxu0
      %v1098 = vadd.f32 0.0, %v1097
      %v1099 = vpop.f32.mrb[0].mxu0
      %1100 = vmatprep.mubr.bf16.mxu0 0
      %1101 = vmatmul.mubr.bf16.gmra.mrb[0].mxu0 %v1007
      %v1102 = vpop.f32.mrb[0].mxu0
      %v1103 = vadd.f32 0.0, %v1102
      %v1104 = vpop.f32.mrb[0].mxu0
      %v1105 = vpop.f32.mrb[0].mxu0
      %v1106 = vadd.f32 0.0, %v1105
      %v1107 = vpop.f32.mrb[0].mxu0
      %1108 = vmatprep.mubr.bf16.mxu0 0
      %1109 = vmatmul.mubr.bf16.gmra.mrb[0].mxu0 %v1010
      %v1110 = vpop.f32.mrb[0].mxu0
      %v1111 = vadd.f32 0.0, %v1110
      %v1112 = vpop.f32.mrb[0].mxu0
      %v1113 = vpop.f32.mrb[0].mxu0
      %v1114 = vadd.f32 0.0, %v1113
      %v1115 = vpop.f32.mrb[0].mxu0
      %1116 = vmatprep.mubr.bf16.mxu0 0
      %1117 = vmatmul.mubr.bf16.gmra.mrb[0].mxu0 %v1013
      %v1118 = vpop.f32.mrb[0].mxu0
      %v1119 = vadd.f32 0.0, %v1118
      %v1120 = vpop.f32.mrb[0].mxu0
      %v1121 = vpop.f32.mrb[0].mxu0
      %v1122 = vadd.f32 0.0, %v1121
      %v1123 = vpop.f32.mrb[0].mxu0
      %1124 = vmatprep.mubr.bf16.mxu0 0
      %1125 = vmatmul.mubr.bf16.gmra.mrb[0].mxu0 %v1016
      %v1126 = vpop.f32.mrb[0].mxu0
      %v1127 = vadd.f32 0.0, %v1126
      %v1128 = vpop.f32.mrb[0].mxu0
      %v1129 = vpop.f32.mrb[0].mxu0
      %v1130 = vadd.f32 0.0, %v1129
      %v1131 = vpop.f32.mrb[0].mxu0
      %1132 = vmatprep.mubr.bf16.mxu0 0
      %1133 = vmatmul.mubr.bf16.gmra.mrb[0].mxu0 %v1019
      %v1134 = vpop.f32.mrb[0].mxu0
      %v1135 = vadd.f32 0.0, %v1134
      %v1136 = vpop.f32.mrb[0].mxu0
      %v1137 = vpop.f32.mrb[0].mxu0
      %v1138 = vadd.f32 0.0, %v1137
      %v1139 = vpop.f32.mrb[0].mxu0
      %1140 = vmatprep.mubr.bf16.mxu0 0
      %1141 = vmatmul.mubr.bf16.gmra.mrb[0].mxu0 %v1022
      %v1142 = vpop.f32.mrb[0].mxu0
      %v1143 = vadd.f32 0.0, %v1142
      %v1144 = vpop.f32.mrb[0].mxu0
      %v1145 = vpop.f32.mrb[0].mxu0
      %v1146 = vadd.f32 0.0, %v1145
      %v1147 = vpop.f32.mrb[0].mxu0
      %1148 = vmatprep.mubr.bf16.mxu0 0
      %1149 = vmatmul.mubr.bf16.gmra.mrb[0].mxu0 %v1025
      %v1150 = vpop.f32.mrb[0].mxu0
      %v1151 = vadd.f32 0.0, %v1150
      %v1152 = vpop.f32.mrb[0].mxu0
      %v1153 = vpop.f32.mrb[0].mxu0
      %v1154 = vadd.f32 0.0, %v1153
      %v1155 = vpop.f32.mrb[0].mxu0
      %1156 = vmatprep.mubr.bf16.mxu0 0
      %1157 = vmatmul.mubr.bf16.gmra.mrb[0].mxu0 %v1028
      %v1158 = vpop.f32.mrb[0].mxu0
      %v1159 = vadd.f32 0.0, %v1158
      %v1160 = vpop.f32.mrb[0].mxu0
      %v1161 = vpop.f32.mrb[0].mxu0
      %v1162 = vadd.f32 0.0, %v1161
      %v1163 = vpop.f32.mrb[0].mxu0
      %1164 = vmatprep.mubr.bf16.mxu0 0
      %1165 = vmatmul.mubr.bf16.gmra.mrb[0].mxu0 %v1031
      %v1166 = vpop.f32.mrb[0].mxu0
      %v1167 = vadd.f32 0.0, %v1166
      %v1168 = vpop.f32.mrb[0].mxu0
      %v1169 = vpop.f32.mrb[0].mxu0
      %v1170 = vadd.f32 0.0, %v1169
      %v1171 = vpop.f32.mrb[0].mxu0
      %1172 = vmatprep.mubr.bf16.mxu0 0
      %1173 = vmatmul.mubr.bf16.gmra.mrb[0].mxu0 %v1034
      %v1174 = vpop.f32.mrb[0].mxu0
      %v1175 = vadd.f32 0.0, %v1174
      %v1176 = vpop.f32.mrb[0].mxu0
      %v1177 = vpop.f32.mrb[0].mxu0
      %v1178 = vadd.f32 0.0, %v1177
      %v1179 = vpop.f32.mrb[0].mxu0
      %1180 = vmatprep.mubr.bf16.mxu0 0
      %1181 = vmatmul.mubr.bf16.gmra.mrb[0].mxu0 %v1037
      %v1182 = vpop.f32.mrb[0].mxu0
      %v1183 = vadd.f32 0.0, %v1182
      %v1184 = vpop.f32.mrb[0].mxu0
      %v1185 = vpop.f32.mrb[0].mxu0
      %v1186 = vadd.f32 0.0, %v1185
      %v1187 = vpop.f32.mrb[0].mxu0
      %1188 = vmatprep.mubr.bf16.mxu0 0
      %1189 = vmatmul.mubr.bf16.gmra.mrb[0].mxu0 %v1040
      %v1190 = vpop.f32.mrb[0].mxu0
      %v1191 = vadd.f32 0.0, %v1190
      %v1192 = vpop.f32.mrb[0].mxu0
      %v1193 = vpop.f32.mrb[0].mxu0
      %v1194 = vadd.f32 0.0, %v1193
      %v1195 = vpop.f32.mrb[0].mxu0
      %1196 = vmatprep.mubr.bf16.mxu0 0
      %1197 = vmatmul.mubr.bf16.gmra.mrb[0].mxu0 %v1043
      %v1198 = vpop.f32.mrb[0].mxu0
      %v1199 = vadd.f32 0.0, %v1198
      %v1200 = vpop.f32.mrb[0].mxu0
      %v1201 = vpop.f32.mrb[0].mxu0
      %v1202 = vadd.f32 0.0, %v1201
      %v1203 = vpop.f32.mrb[0].mxu0
      %1204 = vmatprep.mubr.bf16.mxu0 0
      %1205 = vmatmul.mubr.bf16.gmra.mrb[0].mxu0 %v1046
      %v1206 = vpop.f32.mrb[0].mxu0
      %v1207 = vadd.f32 0.0, %v1206
      %v1208 = vpop.f32.mrb[0].mxu0
      %v1209 = vpop.f32.mrb[0].mxu0
      %v1210 = vadd.f32 0.0, %v1209
      %v1211 = vpop.f32.mrb[0].mxu0
      %1212 = vmatprep.mubr.bf16.mxu0 0
      %1213 = vmatmul.mubr.bf16.gmra.mrb[0].mxu0 %v1049
      %v1214 = vpop.f32.mrb[0].mxu0
      %v1215 = vadd.f32 0.0, %v1214
      %v1216 = vpop.f32.mrb[0].mxu0
      %v1217 = vpop.f32.mrb[0].mxu0
      %v1218 = vadd.f32 0.0, %v1217
      %v1219 = vpop.f32.mrb[0].mxu0
      %1220 = vmatprep.mubr.bf16.mxu0 0
      %1221 = vmatmul.mubr.bf16.gmra.mrb[0].mxu0 %v1052
      %v1222 = vpop.f32.mrb[0].mxu0
      %v1223 = vadd.f32 0.0, %v1222
      %v1224 = vpop.f32.mrb[0].mxu0
      %v1225 = vpop.f32.mrb[0].mxu0
      %v1226 = vadd.f32 0.0, %v1225
      %v1227 = vpop.f32.mrb[0].mxu0
      %1228 = vmatprep.mubr.bf16.mxu0 0
      %1229 = vmatmul.mubr.bf16.gmra.mrb[0].mxu0 %v1055
      %v1230 = vpop.f32.mrb[0].mxu0
      %v1231 = vadd.f32 0.0, %v1230
      %v1232 = vpop.f32.mrb[0].mxu0
      %v1233 = vpop.f32.mrb[0].mxu0
      %v1234 = vadd.f32 0.0, %v1233
      %v1235 = vpop.f32.mrb[0].mxu0
      %1236 = vdwg.mxu0
      %v1237 = vadd.f32 %v818, %v1095
      %v1238 = vadd.f32 %v821, %v1098
      %v1239 = vadd.f32 %v826, %v1103
      %v1240 = vadd.f32 %v829, %v1106
      %v1241 = vadd.f32 %v834, %v1111
      %v1242 = vadd.f32 %v837, %v1114
      %v1243 = vadd.f32 %v842, %v1119
      %v1244 = vadd.f32 %v845, %v1122
      %v1245 = vadd.f32 %v850, %v1127
      %v1246 = vadd.f32 %v853, %v1130
      %v1247 = vadd.f32 %v858, %v1135
      %v1248 = vadd.f32 %v861, %v1138
      %v1249 = vadd.f32 %v866, %v1143
      %v1250 = vadd.f32 %v869, %v1146
      %v1251 = vadd.f32 %v874, %v1151
      %v1252 = vadd.f32 %v877, %v1154
      %v1253 = vadd.f32 %v882, %v1159
      %v1254 = vadd.f32 %v885, %v1162
      %v1255 = vadd.f32 %v890, %v1167
      %v1256 = vadd.f32 %v893, %v1170
      %v1257 = vadd.f32 %v898, %v1175
      %v1258 = vadd.f32 %v901, %v1178
      %v1259 = vadd.f32 %v906, %v1183
      %v1260 = vadd.f32 %v909, %v1186
      %v1261 = vadd.f32 %v914, %v1191
      %v1262 = vadd.f32 %v917, %v1194
      %v1263 = vadd.f32 %v922, %v1199
      %v1264 = vadd.f32 %v925, %v1202
      %v1265 = vadd.f32 %v930, %v1207
      %v1266 = vadd.f32 %v933, %v1210
      %v1267 = vadd.f32 %v938, %v1215
      %v1268 = vadd.f32 %v941, %v1218
      %v1269 = vadd.f32 %v946, %v1223
      %v1270 = vadd.f32 %v949, %v1226
      %v1271 = vadd.f32 %v954, %v1231
      %v1272 = vadd.f32 %v957, %v1234
      %v1273 = vld [vmem:[%s206 + $0x8] sm:$0xe]
      %v1274 = vld [vmem:[%s206 + $0xc] sm:$0xf]
      %v1275 = vld [vmem:[%s206 + $0x10] sm:$0xf]
      %v1276 = vld [vmem:[%s206 + $0x14] sm:$0xf]
      %v1277 = vld [vmem:[%s206 + $0x18] sm:$0xf]
      %v1278 = vld [vmem:[%s206 + $0x1c] sm:$0xf]
      %v1279 = vld [vmem:[%s206 + $0x20] sm:$0xf]
      %v1280 = vld [vmem:[%s206 + $0x24] sm:$0xf]
      %v1281 = vld [vmem:[%s206 + $0x28] sm:$0xf]
      %v1282 = vld [vmem:[%s206 + $0x2c] sm:$0xf]
      %v1283 = vld [vmem:[%s206 + $0x30] sm:$0xf]
      %v1284 = vld [vmem:[%s206 + $0x34] sm:$0xf]
      %v1285 = vld [vmem:[%s206 + $0x38] sm:$0xf]
      %v1286 = vld [vmem:[%s206 + $0x3c] sm:$0xf]
      %v1287 = vld [vmem:[%s206 + $0x40] sm:$0xf]
      %v1288 = vld [vmem:[%s206 + $0x44] sm:$0xf]
      %v1289 = vld [vmem:[%s206 + $0x48] sm:$0xf]
      %v1290 = vld [vmem:[%s206 + $0x4c] sm:$0xf]
      %v1291 = vld [vmem:[%s206 + $0x50] sm:$0xf]
      %v1292 = vld [vmem:[%s206 + $0x54] sm:$0xf]
      %v1293 = vld [vmem:[%s206 + $0x58] sm:$0xf]
      %v1294 = vld [vmem:[%s206 + $0x5c] sm:$0xf]
      %v1295 = vld [vmem:[%s206 + $0x60] sm:$0xf]
      %v1296 = vld [vmem:[%s206 + $0x64] sm:$0xf]
      %v1297 = vld [vmem:[%s206 + $0x68] sm:$0xf]
      %v1298 = vld [vmem:[%s206 + $0x6c] sm:$0xf]
      %v1299 = vld [vmem:[%s206 + $0x70] sm:$0xf]
      %v1300 = vld [vmem:[%s206 + $0x74] sm:$0xf]
      %v1301 = vld [vmem:[%s206 + $0x78] sm:$0xf]
      %v1302 = vld [vmem:[%s206 + $0x7c] sm:$0xf]
      %v1303 = vld [vmem:[%s206 + $0x80] sm:$0xf]
      %v1304 = vld [vmem:[%s206 + $0x84] sm:$0xf]
      %v1305 = vld [vmem:[%s206 + $0x88] sm:$0xf]
      %v1306 = vld [vmem:[%s206 + $0x8c] sm:$0xf]
      %v1307 = vld [vmem:[%s206 + $0x90] sm:$0xf]
      %v1308 = vld [vmem:[%s206 + $0x94] sm:$0xf]
      %v1309 = vld [vmem:[%s206 + $0x98] sm:$0x1]
      %v1310 = vld [vmem:[%s210 + $0x4] sm:$0xc]
      %v1348 = vunpack.c.l.b16 %v1273
      %v1349 = vunpack.c.l.b16 %v1274
      %v1350 = vunpack.c.l.b16 %v1275
      %v1351 = vunpack.c.l.b16 %v1276
      %v1352 = vunpack.c.l.b16 %v1277
      %v1353 = vunpack.c.l.b16 %v1278
      %v1354 = vunpack.c.l.b16 %v1279
      %v1355 = vunpack.c.l.b16 %v1280
      %v1356 = vunpack.c.l.b16 %v1281
      %v1357 = vunpack.c.l.b16 %v1282
      %v1358 = vunpack.c.l.b16 %v1283
      %v1359 = vunpack.c.l.b16 %v1284
      %v1360 = vunpack.c.l.b16 %v1285
      %v1361 = vunpack.c.l.b16 %v1286
      %v1362 = vunpack.c.l.b16 %v1287
      %v1363 = vunpack.c.l.b16 %v1288
      %v1364 = vunpack.c.l.b16 %v1289
      %v1365 = vunpack.c.l.b16 %v1290
      %v1366 = vunpack.c.l.b16 %v1291
      %v1367 = vunpack.c.l.b16 %v1292
      %v1368 = vunpack.c.l.b16 %v1293
      %v1369 = vunpack.c.l.b16 %v1294
      %v1370 = vunpack.c.l.b16 %v1295
      %v1371 = vunpack.c.l.b16 %v1296
      %v1372 = vunpack.c.l.b16 %v1297
      %v1373 = vunpack.c.l.b16 %v1298
      %v1374 = vunpack.c.l.b16 %v1299
      %v1375 = vunpack.c.l.b16 %v1300
      %v1376 = vunpack.c.l.b16 %v1301
      %v1377 = vunpack.c.l.b16 %v1302
      %v1378 = vunpack.c.l.b16 %v1303
      %v1379 = vunpack.c.l.b16 %v1304
      %v1380 = vunpack.c.l.b16 %v1305
      %v1381 = vunpack.c.l.b16 %v1306
      %v1382 = vunpack.c.l.b16 %v1307
      %v1383 = vunpack.c.l.b16 %v1308
      %v1384 = vunpack.c.l.b16 %v1309
      %v1385 = vpack.c.b16 %v1349, %v1348
      %v1386 = vpack.c.b16 %v1351, %v1350
      %v1387 = vpack.c.b16 %v1353, %v1352
      %v1388 = vpack.c.b16 %v1355, %v1354
      %v1389 = vpack.c.b16 %v1357, %v1356
      %v1390 = vpack.c.b16 %v1359, %v1358
      %v1391 = vpack.c.b16 %v1361, %v1360
      %v1392 = vpack.c.b16 %v1363, %v1362
      %v1393 = vpack.c.b16 %v1365, %v1364
      %v1394 = vpack.c.b16 %v1367, %v1366
      %v1395 = vpack.c.b16 %v1369, %v1368
      %v1396 = vpack.c.b16 %v1371, %v1370
      %v1397 = vpack.c.b16 %v1373, %v1372
      %v1398 = vpack.c.b16 %v1375, %v1374
      %v1399 = vpack.c.b16 %v1377, %v1376
      %v1400 = vpack.c.b16 %v1379, %v1378
      %v1401 = vpack.c.b16 %v1381, %v1380
      %v1402 = vpack.c.b16 %v1383, %v1382
      %v1403 = vpack.c.b16 %v1384, %v1384
      %v1404 = vrot.slane %v1385, 1
      %v1405 = vrot.slane %v1386, 1
      %v1406 = vsel %vm965, %v1404, %v1405
      %v1407 = vrot.slane %v1387, 1
      %v1408 = vsel %vm965, %v1405, %v1407
      %v1409 = vrot.slane %v1388, 1
      %v1410 = vsel %vm965, %v1407, %v1409
      %v1411 = vrot.slane %v1389, 1
      %v1412 = vsel %vm965, %v1409, %v1411
      %v1413 = vrot.slane %v1390, 1
      %v1414 = vsel %vm965, %v1411, %v1413
      %v1415 = vrot.slane %v1391, 1
      %v1416 = vsel %vm965, %v1413, %v1415
      %v1417 = vrot.slane %v1392, 1
      %v1418 = vsel %vm965, %v1415, %v1417
      %v1419 = vrot.slane %v1393, 1
      %v1420 = vsel %vm965, %v1417, %v1419
      %v1421 = vrot.slane %v1394, 1
      %v1422 = vsel %vm965, %v1419, %v1421
      %v1423 = vrot.slane %v1395, 1
      %v1424 = vsel %vm965, %v1421, %v1423
      %v1425 = vrot.slane %v1396, 1
      %v1426 = vsel %vm965, %v1423, %v1425
      %v1427 = vrot.slane %v1397, 1
      %v1428 = vsel %vm965, %v1425, %v1427
      %v1429 = vrot.slane %v1398, 1
      %v1430 = vsel %vm965, %v1427, %v1429
      %v1431 = vrot.slane %v1399, 1
      %v1432 = vsel %vm965, %v1429, %v1431
      %v1433 = vrot.slane %v1400, 1
      %v1434 = vsel %vm965, %v1431, %v1433
      %v1435 = vrot.slane %v1401, 1
      %v1436 = vsel %vm965, %v1433, %v1435
      %v1437 = vrot.slane %v1402, 1
      %v1438 = vsel %vm965, %v1435, %v1437
      %v1439 = vrot.slane %v1403, 1
      %v1440 = vsel %vm965, %v1437, %v1439
      %v1442 = vunpack.c.l.b16 %v1310
      %v1443 = vpack.c.b16 %v1442, %v1442
      %v1444 = vrot.slane %v1443, 2
      %v1446 = vsel %vm508, %v1406, 0
      %v1449 = vsel %vm508, %v1408, 0
      %v1452 = vsel %vm508, %v1410, 0
      %v1455 = vsel %vm508, %v1412, 0
      %v1458 = vsel %vm508, %v1414, 0
      %v1461 = vsel %vm508, %v1416, 0
      %v1464 = vsel %vm508, %v1418, 0
      %v1467 = vsel %vm508, %v1420, 0
      %v1470 = vsel %vm508, %v1422, 0
      %v1473 = vsel %vm508, %v1424, 0
      %v1476 = vsel %vm508, %v1426, 0
      %v1479 = vsel %vm508, %v1428, 0
      %v1482 = vsel %vm508, %v1430, 0
      %v1485 = vsel %vm508, %v1432, 0
      %v1488 = vsel %vm508, %v1434, 0
      %v1491 = vsel %vm508, %v1436, 0
      %v1494 = vsel %vm508, %v1438, 0
      %v1497 = vsel %vm508, %v1440, 0
      %v1500 = vsel %vm563, %v1444, 0
      %1502 = vmatprep.subr.bf16.mxu0 0
      %1503 = vmatpush1.bf16.msra.mxu0 %v1500
      %1504 = vmatprep.subr.bf16.mxu0 0
      %1505 = vmatpush1.bf16.msra.mxu0 0
      %1506 = vmatprep.subr.bf16.mxu0 0
      %1507 = vmatpush1.bf16.msra.mxu0 0
      %1508 = vmatprep.subr.bf16.mxu0 0
      %1509 = vmatpush1.bf16.msra.mxu0 0
      %1510 = vmatprep.subr.bf16.mxu0 0
      %1511 = vmatpush1.bf16.msra.mxu0 0
      %1512 = vmatprep.subr.bf16.mxu0 0
      %1513 = vmatpush1.bf16.msra.mxu0 0
      %1514 = vmatprep.subr.bf16.mxu0 0
      %1515 = vmatpush1.bf16.msra.mxu0 0
      %1516 = vmatprep.subr.bf16.mxu0 0
      %1517 = vmatpush1.bf16.msra.mxu0 0
      %1518 = vmatprep.subr.bf16.mxu0 0
      %1519 = vmatpush1.bf16.msra.mxu0 0
      %1520 = vmatprep.subr.bf16.mxu0 0
      %1521 = vmatpush1.bf16.msra.mxu0 0
      %1522 = vmatprep.subr.bf16.mxu0 0
      %1523 = vmatpush1.bf16.msra.mxu0 0
      %1524 = vmatprep.subr.bf16.mxu0 0
      %1525 = vmatpush1.bf16.msra.mxu0 0
      %1526 = vmatprep.subr.bf16.mxu0 0
      %1527 = vmatpush1.bf16.msra.mxu0 0
      %1528 = vmatprep.subr.bf16.mxu0 0
      %1529 = vmatpush1.bf16.msra.mxu0 0
      %1530 = vmatprep.subr.bf16.mxu0 0
      %1531 = vmatpush1.bf16.msra.mxu0 0
      %1532 = vmatprep.subr.bf16.mxu0 0
      %1533 = vmatpush1.bf16.msra.mxu0 0
      %1534 = vmatprep.mubr.bf16.mxu0 0
      %1535 = vmatmul.mubr.bf16.gmra.mrb[0].mxu0 %v1446
      %v1536 = vpop.f32.mrb[0].mxu0
      %v1537 = vadd.f32 0.0, %v1536
      %v1538 = vpop.f32.mrb[0].mxu0
      %v1539 = vpop.f32.mrb[0].mxu0
      %v1540 = vadd.f32 0.0, %v1539
      %v1541 = vpop.f32.mrb[0].mxu0
      %1542 = vmatprep.mubr.bf16.mxu0 0
      %1543 = vmatmul.mubr.bf16.gmra.mrb[0].mxu0 %v1449
      %v1544 = vpop.f32.mrb[0].mxu0
      %v1545 = vadd.f32 0.0, %v1544
      %v1546 = vpop.f32.mrb[0].mxu0
      %v1547 = vpop.f32.mrb[0].mxu0
      %v1548 = vadd.f32 0.0, %v1547
      %v1549 = vpop.f32.mrb[0].mxu0
      %1550 = vmatprep.mubr.bf16.mxu0 0
      %1551 = vmatmul.mubr.bf16.gmra.mrb[0].mxu0 %v1452
      %v1552 = vpop.f32.mrb[0].mxu0
      %v1553 = vadd.f32 0.0, %v1552
      %v1554 = vpop.f32.mrb[0].mxu0
      %v1555 = vpop.f32.mrb[0].mxu0
      %v1556 = vadd.f32 0.0, %v1555
      %v1557 = vpop.f32.mrb[0].mxu0
      %1558 = vmatprep.mubr.bf16.mxu0 0
      %1559 = vmatmul.mubr.bf16.gmra.mrb[0].mxu0 %v1455
      %v1560 = vpop.f32.mrb[0].mxu0
      %v1561 = vadd.f32 0.0, %v1560
      %v1562 = vpop.f32.mrb[0].mxu0
      %v1563 = vpop.f32.mrb[0].mxu0
      %v1564 = vadd.f32 0.0, %v1563
      %v1565 = vpop.f32.mrb[0].mxu0
      %1566 = vmatprep.mubr.bf16.mxu0 0
      %1567 = vmatmul.mubr.bf16.gmra.mrb[0].mxu0 %v1458
      %v1568 = vpop.f32.mrb[0].mxu0
      %v1569 = vadd.f32 0.0, %v1568
      %v1570 = vpop.f32.mrb[0].mxu0
      %v1571 = vpop.f32.mrb[0].mxu0
      %v1572 = vadd.f32 0.0, %v1571
      %v1573 = vpop.f32.mrb[0].mxu0
      %1574 = vmatprep.mubr.bf16.mxu0 0
      %1575 = vmatmul.mubr.bf16.gmra.mrb[0].mxu0 %v1461
      %v1576 = vpop.f32.mrb[0].mxu0
      %v1577 = vadd.f32 0.0, %v1576
      %v1578 = vpop.f32.mrb[0].mxu0
      %v1579 = vpop.f32.mrb[0].mxu0
      %v1580 = vadd.f32 0.0, %v1579
      %v1581 = vpop.f32.mrb[0].mxu0
      %1582 = vmatprep.mubr.bf16.mxu0 0
      %1583 = vmatmul.mubr.bf16.gmra.mrb[0].mxu0 %v1464
      %v1584 = vpop.f32.mrb[0].mxu0
      %v1585 = vadd.f32 0.0, %v1584
      %v1586 = vpop.f32.mrb[0].mxu0
      %v1587 = vpop.f32.mrb[0].mxu0
      %v1588 = vadd.f32 0.0, %v1587
      %v1589 = vpop.f32.mrb[0].mxu0
      %1590 = vmatprep.mubr.bf16.mxu0 0
      %1591 = vmatmul.mubr.bf16.gmra.mrb[0].mxu0 %v1467
      %v1592 = vpop.f32.mrb[0].mxu0
      %v1593 = vadd.f32 0.0, %v1592
      %v1594 = vpop.f32.mrb[0].mxu0
      %v1595 = vpop.f32.mrb[0].mxu0
      %v1596 = vadd.f32 0.0, %v1595
      %v1597 = vpop.f32.mrb[0].mxu0
      %1598 = vmatprep.mubr.bf16.mxu0 0
      %1599 = vmatmul.mubr.bf16.gmra.mrb[0].mxu0 %v1470
      %v1600 = vpop.f32.mrb[0].mxu0
      %v1601 = vadd.f32 0.0, %v1600
      %v1602 = vpop.f32.mrb[0].mxu0
      %v1603 = vpop.f32.mrb[0].mxu0
      %v1604 = vadd.f32 0.0, %v1603
      %v1605 = vpop.f32.mrb[0].mxu0
      %1606 = vmatprep.mubr.bf16.mxu0 0
      %1607 = vmatmul.mubr.bf16.gmra.mrb[0].mxu0 %v1473
      %v1608 = vpop.f32.mrb[0].mxu0
      %v1609 = vadd.f32 0.0, %v1608
      %v1610 = vpop.f32.mrb[0].mxu0
      %v1611 = vpop.f32.mrb[0].mxu0
      %v1612 = vadd.f32 0.0, %v1611
      %v1613 = vpop.f32.mrb[0].mxu0
      %1614 = vmatprep.mubr.bf16.mxu0 0
      %1615 = vmatmul.mubr.bf16.gmra.mrb[0].mxu0 %v1476
      %v1616 = vpop.f32.mrb[0].mxu0
      %v1617 = vadd.f32 0.0, %v1616
      %v1618 = vpop.f32.mrb[0].mxu0
      %v1619 = vpop.f32.mrb[0].mxu0
      %v1620 = vadd.f32 0.0, %v1619
      %v1621 = vpop.f32.mrb[0].mxu0
      %1622 = vmatprep.mubr.bf16.mxu0 0
      %1623 = vmatmul.mubr.bf16.gmra.mrb[0].mxu0 %v1479
      %v1624 = vpop.f32.mrb[0].mxu0
      %v1625 = vadd.f32 0.0, %v1624
      %v1626 = vpop.f32.mrb[0].mxu0
      %v1627 = vpop.f32.mrb[0].mxu0
      %v1628 = vadd.f32 0.0, %v1627
      %v1629 = vpop.f32.mrb[0].mxu0
      %1630 = vmatprep.mubr.bf16.mxu0 0
      %1631 = vmatmul.mubr.bf16.gmra.mrb[0].mxu0 %v1482
      %v1632 = vpop.f32.mrb[0].mxu0
      %v1633 = vadd.f32 0.0, %v1632
      %v1634 = vpop.f32.mrb[0].mxu0
      %v1635 = vpop.f32.mrb[0].mxu0
      %v1636 = vadd.f32 0.0, %v1635
      %v1637 = vpop.f32.mrb[0].mxu0
      %1638 = vmatprep.mubr.bf16.mxu0 0
      %1639 = vmatmul.mubr.bf16.gmra.mrb[0].mxu0 %v1485
      %v1640 = vpop.f32.mrb[0].mxu0
      %v1641 = vadd.f32 0.0, %v1640
      %v1642 = vpop.f32.mrb[0].mxu0
      %v1643 = vpop.f32.mrb[0].mxu0
      %v1644 = vadd.f32 0.0, %v1643
      %v1645 = vpop.f32.mrb[0].mxu0
      %1646 = vmatprep.mubr.bf16.mxu0 0
      %1647 = vmatmul.mubr.bf16.gmra.mrb[0].mxu0 %v1488
      %v1648 = vpop.f32.mrb[0].mxu0
      %v1649 = vadd.f32 0.0, %v1648
      %v1650 = vpop.f32.mrb[0].mxu0
      %v1651 = vpop.f32.mrb[0].mxu0
      %v1652 = vadd.f32 0.0, %v1651
      %v1653 = vpop.f32.mrb[0].mxu0
      %1654 = vmatprep.mubr.bf16.mxu0 0
      %1655 = vmatmul.mubr.bf16.gmra.mrb[0].mxu0 %v1491
      %v1656 = vpop.f32.mrb[0].mxu0
      %v1657 = vadd.f32 0.0, %v1656
      %v1658 = vpop.f32.mrb[0].mxu0
      %v1659 = vpop.f32.mrb[0].mxu0
      %v1660 = vadd.f32 0.0, %v1659
      %v1661 = vpop.f32.mrb[0].mxu0
      %1662 = vmatprep.mubr.bf16.mxu0 0
      %1663 = vmatmul.mubr.bf16.gmra.mrb[0].mxu0 %v1494
      %v1664 = vpop.f32.mrb[0].mxu0
      %v1665 = vadd.f32 0.0, %v1664
      %v1666 = vpop.f32.mrb[0].mxu0
      %v1667 = vpop.f32.mrb[0].mxu0
      %v1668 = vadd.f32 0.0, %v1667
      %v1669 = vpop.f32.mrb[0].mxu0
      %1670 = vmatprep.mubr.bf16.mxu0 0
      %1671 = vmatmul.mubr.bf16.gmra.mrb[0].mxu0 %v1497
      %v1672 = vpop.f32.mrb[0].mxu0
      %v1673 = vadd.f32 0.0, %v1672
      %v1674 = vpop.f32.mrb[0].mxu0
      %v1675 = vpop.f32.mrb[0].mxu0
      %v1676 = vadd.f32 0.0, %v1675
      %v1677 = vpop.f32.mrb[0].mxu0
      %1678 = vdwg.mxu0
      %v1679 = vadd.f32 %v1237, %v1537
      %v1680 = vadd.f32 %v1238, %v1540
      %v1681 = vadd.f32 %v1239, %v1545
      %v1682 = vadd.f32 %v1240, %v1548
      %v1683 = vadd.f32 %v1241, %v1553
      %v1684 = vadd.f32 %v1242, %v1556
      %v1685 = vadd.f32 %v1243, %v1561
      %v1686 = vadd.f32 %v1244, %v1564
      %v1687 = vadd.f32 %v1245, %v1569
      %v1688 = vadd.f32 %v1246, %v1572
      %v1689 = vadd.f32 %v1247, %v1577
      %v1690 = vadd.f32 %v1248, %v1580
      %v1691 = vadd.f32 %v1249, %v1585
      %v1692 = vadd.f32 %v1250, %v1588
      %v1693 = vadd.f32 %v1251, %v1593
      %v1694 = vadd.f32 %v1252, %v1596
      %v1695 = vadd.f32 %v1253, %v1601
      %v1696 = vadd.f32 %v1254, %v1604
      %v1697 = vadd.f32 %v1255, %v1609
      %v1698 = vadd.f32 %v1256, %v1612
      %v1699 = vadd.f32 %v1257, %v1617
      %v1700 = vadd.f32 %v1258, %v1620
      %v1701 = vadd.f32 %v1259, %v1625
      %v1702 = vadd.f32 %v1260, %v1628
      %v1703 = vadd.f32 %v1261, %v1633
      %v1704 = vadd.f32 %v1262, %v1636
      %v1705 = vadd.f32 %v1263, %v1641
      %v1706 = vadd.f32 %v1264, %v1644
      %v1707 = vadd.f32 %v1265, %v1649
      %v1708 = vadd.f32 %v1266, %v1652
      %v1709 = vadd.f32 %v1267, %v1657
      %v1710 = vadd.f32 %v1268, %v1660
      %v1711 = vadd.f32 %v1269, %v1665
      %v1712 = vadd.f32 %v1270, %v1668
      %v1713 = vadd.f32 %v1271, %v1673
      %v1714 = vadd.f32 %v1272, %v1676
      %v1715 = vld [vmem:[%s206 + $0x98] sm:$0x3]
      %v1716 = vld [vmem:[%s210 + $0x8] sm:$0x3]
      %v1718 = vunpack.c.l.b16 %v1715
      %v1719 = vpack.c.b16 %v1718, %v1718
      %vm1720 = vsmask.f32 6400
      %v1722 = vshrl.u32 %v1385, 16
      %v1724 = vrot.slane %v1722, 1
      %v1725 = vshll.u32 %v1385, 16
      %v1727 = vrot.slane %v1725, 2
      %v1728 = vor.u32 %v1724, %v1727
      %v1730 = vshrl.u32 %v1386, 16
      %v1732 = vrot.slane %v1730, 1
      %v1733 = vshll.u32 %v1386, 16
      %v1735 = vrot.slane %v1733, 2
      %v1736 = vor.u32 %v1732, %v1735
      %v1737 = vsel %vm1720, %v1728, %v1736
      %v1739 = vshrl.u32 %v1387, 16
      %v1741 = vrot.slane %v1739, 1
      %v1742 = vshll.u32 %v1387, 16
      %v1744 = vrot.slane %v1742, 2
      %v1745 = vor.u32 %v1741, %v1744
      %v1746 = vsel %vm1720, %v1736, %v1745
      %v1748 = vshrl.u32 %v1388, 16
      %v1750 = vrot.slane %v1748, 1
      %v1751 = vshll.u32 %v1388, 16
      %v1753 = vrot.slane %v1751, 2
      %v1754 = vor.u32 %v1750, %v1753
      %v1755 = vsel %vm1720, %v1745, %v1754
      %v1757 = vshrl.u32 %v1389, 16
      %v1759 = vrot.slane %v1757, 1
      %v1760 = vshll.u32 %v1389, 16
      %v1762 = vrot.slane %v1760, 2
      %v1763 = vor.u32 %v1759, %v1762
      %v1764 = vsel %vm1720, %v1754, %v1763
      %v1766 = vshrl.u32 %v1390, 16
      %v1768 = vrot.slane %v1766, 1
      %v1769 = vshll.u32 %v1390, 16
      %v1771 = vrot.slane %v1769, 2
      %v1772 = vor.u32 %v1768, %v1771
      %v1773 = vsel %vm1720, %v1763, %v1772
      %v1775 = vshrl.u32 %v1391, 16
      %v1777 = vrot.slane %v1775, 1
      %v1778 = vshll.u32 %v1391, 16
      %v1780 = vrot.slane %v1778, 2
      %v1781 = vor.u32 %v1777, %v1780
      %v1782 = vsel %vm1720, %v1772, %v1781
      %v1784 = vshrl.u32 %v1392, 16
      %v1786 = vrot.slane %v1784, 1
      %v1787 = vshll.u32 %v1392, 16
      %v1789 = vrot.slane %v1787, 2
      %v1790 = vor.u32 %v1786, %v1789
      %v1791 = vsel %vm1720, %v1781, %v1790
      %v1793 = vshrl.u32 %v1393, 16
      %v1795 = vrot.slane %v1793, 1
      %v1796 = vshll.u32 %v1393, 16
      %v1798 = vrot.slane %v1796, 2
      %v1799 = vor.u32 %v1795, %v1798
      %v1800 = vsel %vm1720, %v1790, %v1799
      %v1802 = vshrl.u32 %v1394, 16
      %v1804 = vrot.slane %v1802, 1
      %v1805 = vshll.u32 %v1394, 16
      %v1807 = vrot.slane %v1805, 2
      %v1808 = vor.u32 %v1804, %v1807
      %v1809 = vsel %vm1720, %v1799, %v1808
      %v1811 = vshrl.u32 %v1395, 16
      %v1813 = vrot.slane %v1811, 1
      %v1814 = vshll.u32 %v1395, 16
      %v1816 = vrot.slane %v1814, 2
      %v1817 = vor.u32 %v1813, %v1816
      %v1818 = vsel %vm1720, %v1808, %v1817
      %v1820 = vshrl.u32 %v1396, 16
      %v1822 = vrot.slane %v1820, 1
      %v1823 = vshll.u32 %v1396, 16
      %v1825 = vrot.slane %v1823, 2
      %v1826 = vor.u32 %v1822, %v1825
      %v1827 = vsel %vm1720, %v1817, %v1826
      %v1829 = vshrl.u32 %v1397, 16
      %v1831 = vrot.slane %v1829, 1
      %v1832 = vshll.u32 %v1397, 16
      %v1834 = vrot.slane %v1832, 2
      %v1835 = vor.u32 %v1831, %v1834
      %v1836 = vsel %vm1720, %v1826, %v1835
      %v1838 = vshrl.u32 %v1398, 16
      %v1840 = vrot.slane %v1838, 1
      %v1841 = vshll.u32 %v1398, 16
      %v1843 = vrot.slane %v1841, 2
      %v1844 = vor.u32 %v1840, %v1843
      %v1845 = vsel %vm1720, %v1835, %v1844
      %v1847 = vshrl.u32 %v1399, 16
      %v1849 = vrot.slane %v1847, 1
      %v1850 = vshll.u32 %v1399, 16
      %v1852 = vrot.slane %v1850, 2
      %v1853 = vor.u32 %v1849, %v1852
      %v1854 = vsel %vm1720, %v1844, %v1853
      %v1856 = vshrl.u32 %v1400, 16
      %v1858 = vrot.slane %v1856, 1
      %v1859 = vshll.u32 %v1400, 16
      %v1861 = vrot.slane %v1859, 2
      %v1862 = vor.u32 %v1858, %v1861
      %v1863 = vsel %vm1720, %v1853, %v1862
      %v1865 = vshrl.u32 %v1401, 16
      %v1867 = vrot.slane %v1865, 1
      %v1868 = vshll.u32 %v1401, 16
      %v1870 = vrot.slane %v1868, 2
      %v1871 = vor.u32 %v1867, %v1870
      %v1872 = vsel %vm1720, %v1862, %v1871
      %v1874 = vshrl.u32 %v1402, 16
      %v1876 = vrot.slane %v1874, 1
      %v1877 = vshll.u32 %v1402, 16
      %v1879 = vrot.slane %v1877, 2
      %v1880 = vor.u32 %v1876, %v1879
      %v1881 = vsel %vm1720, %v1871, %v1880
      %v1883 = vshrl.u32 %v1719, 16
      %v1885 = vrot.slane %v1883, 1
      %v1886 = vshll.u32 %v1719, 16
      %v1888 = vrot.slane %v1886, 2
      %v1889 = vor.u32 %v1885, %v1888
      %v1890 = vsel %vm1720, %v1880, %v1889
      %v1892 = vsel %vm508, %v1737, 0
      %v1895 = vsel %vm508, %v1746, 0
      %v1898 = vsel %vm508, %v1755, 0
      %v1901 = vsel %vm508, %v1764, 0
      %v1904 = vsel %vm508, %v1773, 0
      %v1907 = vsel %vm508, %v1782, 0
      %v1910 = vsel %vm508, %v1791, 0
      %v1913 = vsel %vm508, %v1800, 0
      %v1916 = vsel %vm508, %v1809, 0
      %v1919 = vsel %vm508, %v1818, 0
      %v1922 = vsel %vm508, %v1827, 0
      %v1925 = vsel %vm508, %v1836, 0
      %v1928 = vsel %vm508, %v1845, 0
      %v1931 = vsel %vm508, %v1854, 0
      %v1934 = vsel %vm508, %v1863, 0
      %v1937 = vsel %vm508, %v1872, 0
      %v1940 = vsel %vm508, %v1881, 0
      %v1943 = vsel %vm508, %v1890, 0
      %v1946 = vsel %vm563, %v1716, 0
      %1948 = vmatprep.subr.bf16.mxu0 0
      %1949 = vmatpush1.bf16.msra.mxu0 %v1946
      %1950 = vmatprep.subr.bf16.mxu0 0
      %1951 = vmatpush1.bf16.msra.mxu0 0
      %1952 = vmatprep.subr.bf16.mxu0 0
      %1953 = vmatpush1.bf16.msra.mxu0 0
      %1954 = vmatprep.subr.bf16.mxu0 0
      %1955 = vmatpush1.bf16.msra.mxu0 0
      %1956 = vmatprep.subr.bf16.mxu0 0
      %1957 = vmatpush1.bf16.msra.mxu0 0
      %1958 = vmatprep.subr.bf16.mxu0 0
      %1959 = vmatpush1.bf16.msra.mxu0 0
      %1960 = vmatprep.subr.bf16.mxu0 0
      %1961 = vmatpush1.bf16.msra.mxu0 0
      %1962 = vmatprep.subr.bf16.mxu0 0
      %1963 = vmatpush1.bf16.msra.mxu0 0
      %1964 = vmatprep.subr.bf16.mxu0 0
      %1965 = vmatpush1.bf16.msra.mxu0 0
      %1966 = vmatprep.subr.bf16.mxu0 0
      %1967 = vmatpush1.bf16.msra.mxu0 0
      %1968 = vmatprep.subr.bf16.mxu0 0
      %1969 = vmatpush1.bf16.msra.mxu0 0
      %1970 = vmatprep.subr.bf16.mxu0 0
      %1971 = vmatpush1.bf16.msra.mxu0 0
      %1972 = vmatprep.subr.bf16.mxu0 0
      %1973 = vmatpush1.bf16.msra.mxu0 0
      %1974 = vmatprep.subr.bf16.mxu0 0
      %1975 = vmatpush1.bf16.msra.mxu0 0
      %1976 = vmatprep.subr.bf16.mxu0 0
      %1977 = vmatpush1.bf16.msra.mxu0 0
      %1978 = vmatprep.subr.bf16.mxu0 0
      %1979 = vmatpush1.bf16.msra.mxu0 0
      %1980 = vmatprep.mubr.bf16.mxu0 0
      %1981 = vmatmul.mubr.bf16.gmra.mrb[0].mxu0 %v1892
      %v1982 = vpop.f32.mrb[0].mxu0
      %v1983 = vadd.f32 0.0, %v1982
      %v1984 = vpop.f32.mrb[0].mxu0
      %v1985 = vpop.f32.mrb[0].mxu0
      %v1986 = vadd.f32 0.0, %v1985
      %v1987 = vpop.f32.mrb[0].mxu0
      %1988 = vmatprep.mubr.bf16.mxu0 0
      %1989 = vmatmul.mubr.bf16.gmra.mrb[0].mxu0 %v1895
      %v1990 = vpop.f32.mrb[0].mxu0
      %v1991 = vadd.f32 0.0, %v1990
      %v1992 = vpop.f32.mrb[0].mxu0
      %v1993 = vpop.f32.mrb[0].mxu0
      %v1994 = vadd.f32 0.0, %v1993
      %v1995 = vpop.f32.mrb[0].mxu0
      %1996 = vmatprep.mubr.bf16.mxu0 0
      %1997 = vmatmul.mubr.bf16.gmra.mrb[0].mxu0 %v1898
      %v1998 = vpop.f32.mrb[0].mxu0
      %v1999 = vadd.f32 0.0, %v1998
      %v2000 = vpop.f32.mrb[0].mxu0
      %v2001 = vpop.f32.mrb[0].mxu0
      %v2002 = vadd.f32 0.0, %v2001
      %v2003 = vpop.f32.mrb[0].mxu0
      %2004 = vmatprep.mubr.bf16.mxu0 0
      %2005 = vmatmul.mubr.bf16.gmra.mrb[0].mxu0 %v1901
      %v2006 = vpop.f32.mrb[0].mxu0
      %v2007 = vadd.f32 0.0, %v2006
      %v2008 = vpop.f32.mrb[0].mxu0
      %v2009 = vpop.f32.mrb[0].mxu0
      %v2010 = vadd.f32 0.0, %v2009
      %v2011 = vpop.f32.mrb[0].mxu0
      %2012 = vmatprep.mubr.bf16.mxu0 0
      %2013 = vmatmul.mubr.bf16.gmra.mrb[0].mxu0 %v1904
      %v2014 = vpop.f32.mrb[0].mxu0
      %v2015 = vadd.f32 0.0, %v2014
      %v2016 = vpop.f32.mrb[0].mxu0
      %v2017 = vpop.f32.mrb[0].mxu0
      %v2018 = vadd.f32 0.0, %v2017
      %v2019 = vpop.f32.mrb[0].mxu0
      %2020 = vmatprep.mubr.bf16.mxu0 0
      %2021 = vmatmul.mubr.bf16.gmra.mrb[0].mxu0 %v1907
      %v2022 = vpop.f32.mrb[0].mxu0
      %v2023 = vadd.f32 0.0, %v2022
      %v2024 = vpop.f32.mrb[0].mxu0
      %v2025 = vpop.f32.mrb[0].mxu0
      %v2026 = vadd.f32 0.0, %v2025
      %v2027 = vpop.f32.mrb[0].mxu0
      %2028 = vmatprep.mubr.bf16.mxu0 0
      %2029 = vmatmul.mubr.bf16.gmra.mrb[0].mxu0 %v1910
      %v2030 = vpop.f32.mrb[0].mxu0
      %v2031 = vadd.f32 0.0, %v2030
      %v2032 = vpop.f32.mrb[0].mxu0
      %v2033 = vpop.f32.mrb[0].mxu0
      %v2034 = vadd.f32 0.0, %v2033
      %v2035 = vpop.f32.mrb[0].mxu0
      %2036 = vmatprep.mubr.bf16.mxu0 0
      %2037 = vmatmul.mubr.bf16.gmra.mrb[0].mxu0 %v1913
      %v2038 = vpop.f32.mrb[0].mxu0
      %v2039 = vadd.f32 0.0, %v2038
      %v2040 = vpop.f32.mrb[0].mxu0
      %v2041 = vpop.f32.mrb[0].mxu0
      %v2042 = vadd.f32 0.0, %v2041
      %v2043 = vpop.f32.mrb[0].mxu0
      %2044 = vmatprep.mubr.bf16.mxu0 0
      %2045 = vmatmul.mubr.bf16.gmra.mrb[0].mxu0 %v1916
      %v2046 = vpop.f32.mrb[0].mxu0
      %v2047 = vadd.f32 0.0, %v2046
      %v2048 = vpop.f32.mrb[0].mxu0
      %v2049 = vpop.f32.mrb[0].mxu0
      %v2050 = vadd.f32 0.0, %v2049
      %v2051 = vpop.f32.mrb[0].mxu0
      %2052 = vmatprep.mubr.bf16.mxu0 0
      %2053 = vmatmul.mubr.bf16.gmra.mrb[0].mxu0 %v1919
      %v2054 = vpop.f32.mrb[0].mxu0
      %v2055 = vadd.f32 0.0, %v2054
      %v2056 = vpop.f32.mrb[0].mxu0
      %v2057 = vpop.f32.mrb[0].mxu0
      %v2058 = vadd.f32 0.0, %v2057
      %v2059 = vpop.f32.mrb[0].mxu0
      %2060 = vmatprep.mubr.bf16.mxu0 0
      %2061 = vmatmul.mubr.bf16.gmra.mrb[0].mxu0 %v1922
      %v2062 = vpop.f32.mrb[0].mxu0
      %v2063 = vadd.f32 0.0, %v2062
      %v2064 = vpop.f32.mrb[0].mxu0
      %v2065 = vpop.f32.mrb[0].mxu0
      %v2066 = vadd.f32 0.0, %v2065
      %v2067 = vpop.f32.mrb[0].mxu0
      %2068 = vmatprep.mubr.bf16.mxu0 0
      %2069 = vmatmul.mubr.bf16.gmra.mrb[0].mxu0 %v1925
      %v2070 = vpop.f32.mrb[0].mxu0
      %v2071 = vadd.f32 0.0, %v2070
      %v2072 = vpop.f32.mrb[0].mxu0
      %v2073 = vpop.f32.mrb[0].mxu0
      %v2074 = vadd.f32 0.0, %v2073
      %v2075 = vpop.f32.mrb[0].mxu0
      %2076 = vmatprep.mubr.bf16.mxu0 0
      %2077 = vmatmul.mubr.bf16.gmra.mrb[0].mxu0 %v1928
      %v2078 = vpop.f32.mrb[0].mxu0
      %v2079 = vadd.f32 0.0, %v2078
      %v2080 = vpop.f32.mrb[0].mxu0
      %v2081 = vpop.f32.mrb[0].mxu0
      %v2082 = vadd.f32 0.0, %v2081
      %v2083 = vpop.f32.mrb[0].mxu0
      %2084 = vmatprep.mubr.bf16.mxu0 0
      %2085 = vmatmul.mubr.bf16.gmra.mrb[0].mxu0 %v1931
      %v2086 = vpop.f32.mrb[0].mxu0
      %v2087 = vadd.f32 0.0, %v2086
      %v2088 = vpop.f32.mrb[0].mxu0
      %v2089 = vpop.f32.mrb[0].mxu0
      %v2090 = vadd.f32 0.0, %v2089
      %v2091 = vpop.f32.mrb[0].mxu0
      %2092 = vmatprep.mubr.bf16.mxu0 0
      %2093 = vmatmul.mubr.bf16.gmra.mrb[0].mxu0 %v1934
      %v2094 = vpop.f32.mrb[0].mxu0
      %v2095 = vadd.f32 0.0, %v2094
      %v2096 = vpop.f32.mrb[0].mxu0
      %v2097 = vpop.f32.mrb[0].mxu0
      %v2098 = vadd.f32 0.0, %v2097
      %v2099 = vpop.f32.mrb[0].mxu0
      %2100 = vmatprep.mubr.bf16.mxu0 0
      %2101 = vmatmul.mubr.bf16.gmra.mrb[0].mxu0 %v1937
      %v2102 = vpop.f32.mrb[0].mxu0
      %v2103 = vadd.f32 0.0, %v2102
      %v2104 = vpop.f32.mrb[0].mxu0
      %v2105 = vpop.f32.mrb[0].mxu0
      %v2106 = vadd.f32 0.0, %v2105
      %v2107 = vpop.f32.mrb[0].mxu0
      %2108 = vmatprep.mubr.bf16.mxu0 0
      %2109 = vmatmul.mubr.bf16.gmra.mrb[0].mxu0 %v1940
      %v2110 = vpop.f32.mrb[0].mxu0
      %v2111 = vadd.f32 0.0, %v2110
      %v2112 = vpop.f32.mrb[0].mxu0
      %v2113 = vpop.f32.mrb[0].mxu0
      %v2114 = vadd.f32 0.0, %v2113
      %v2115 = vpop.f32.mrb[0].mxu0
      %2116 = vmatprep.mubr.bf16.mxu0 0
      %2117 = vmatmul.mubr.bf16.gmra.mrb[0].mxu0 %v1943
      %v2118 = vpop.f32.mrb[0].mxu0
      %v2119 = vadd.f32 0.0, %v2118
      %v2120 = vpop.f32.mrb[0].mxu0
      %v2121 = vpop.f32.mrb[0].mxu0
      %v2122 = vadd.f32 0.0, %v2121
      %v2123 = vpop.f32.mrb[0].mxu0
      %2124 = vdwg.mxu0
      %v2125 = vadd.f32 %v1679, %v1983
      %v2126 = vadd.f32 %v1680, %v1986
      %v2127 = vadd.f32 %v1681, %v1991
      %v2128 = vadd.f32 %v1682, %v1994
      %v2129 = vadd.f32 %v1683, %v1999
      %v2130 = vadd.f32 %v1684, %v2002
      %v2131 = vadd.f32 %v1685, %v2007
      %v2132 = vadd.f32 %v1686, %v2010
      %v2133 = vadd.f32 %v1687, %v2015
      %v2134 = vadd.f32 %v1688, %v2018
      %v2135 = vadd.f32 %v1689, %v2023
      %v2136 = vadd.f32 %v1690, %v2026
      %v2137 = vadd.f32 %v1691, %v2031
      %v2138 = vadd.f32 %v1692, %v2034
      %v2139 = vadd.f32 %v1693, %v2039
      %v2140 = vadd.f32 %v1694, %v2042
      %v2141 = vadd.f32 %v1695, %v2047
      %v2142 = vadd.f32 %v1696, %v2050
      %v2143 = vadd.f32 %v1697, %v2055
      %v2144 = vadd.f32 %v1698, %v2058
      %v2145 = vadd.f32 %v1699, %v2063
      %v2146 = vadd.f32 %v1700, %v2066
      %v2147 = vadd.f32 %v1701, %v2071
      %v2148 = vadd.f32 %v1702, %v2074
      %v2149 = vadd.f32 %v1703, %v2079
      %v2150 = vadd.f32 %v1704, %v2082
      %v2151 = vadd.f32 %v1705, %v2087
      %v2152 = vadd.f32 %v1706, %v2090
      %v2153 = vadd.f32 %v1707, %v2095
      %v2154 = vadd.f32 %v1708, %v2098
      %v2155 = vadd.f32 %v1709, %v2103
      %v2156 = vadd.f32 %v1710, %v2106
      %v2157 = vadd.f32 %v1711, %v2111
      %v2158 = vadd.f32 %v1712, %v2114
      %v2159 = vadd.f32 %v1713, %v2119
      %v2160 = vadd.f32 %v1714, %v2122
      %v2161 = vld [vmem:[%s206 + $0x8] sm:$0xc]
      %v2162 = vld [vmem:[%s210 + $0x8] sm:$0xc]
      %v2164 = vunpack.c.l.b16 %v2161
      %v2165 = vpack.c.b16 %v1349, %v2164
      %vm2166 = vcmask 1045504
      %v2167 = vrot.slane %v2165, 2
      %v2168 = vrot.slane %v1386, 2
      %v2169 = vsel %vm2166, %v2167, %v2168
      %v2170 = vrot.slane %v1387, 2
      %v2171 = vsel %vm2166, %v2168, %v2170
      %v2172 = vrot.slane %v1388, 2
      %v2173 = vsel %vm2166, %v2170, %v2172
      %v2174 = vrot.slane %v1389, 2
      %v2175 = vsel %vm2166, %v2172, %v2174
      %v2176 = vrot.slane %v1390, 2
      %v2177 = vsel %vm2166, %v2174, %v2176
      %v2178 = vrot.slane %v1391, 2
      %v2179 = vsel %vm2166, %v2176, %v2178
      %v2180 = vrot.slane %v1392, 2
      %v2181 = vsel %vm2166, %v2178, %v2180
      %v2182 = vrot.slane %v1393, 2
      %v2183 = vsel %vm2166, %v2180, %v2182
      %v2184 = vrot.slane %v1394, 2
      %v2185 = vsel %vm2166, %v2182, %v2184
      %v2186 = vrot.slane %v1395, 2
      %v2187 = vsel %vm2166, %v2184, %v2186
      %v2188 = vrot.slane %v1396, 2
      %v2189 = vsel %vm2166, %v2186, %v2188
      %v2190 = vrot.slane %v1397, 2
      %v2191 = vsel %vm2166, %v2188, %v2190
      %v2192 = vrot.slane %v1398, 2
      %v2193 = vsel %vm2166, %v2190, %v2192
      %v2194 = vrot.slane %v1399, 2
      %v2195 = vsel %vm2166, %v2192, %v2194
      %v2196 = vrot.slane %v1400, 2
      %v2197 = vsel %vm2166, %v2194, %v2196
      %v2198 = vrot.slane %v1401, 2
      %v2199 = vsel %vm2166, %v2196, %v2198
      %v2200 = vrot.slane %v1402, 2
      %v2201 = vsel %vm2166, %v2198, %v2200
      %v2202 = vrot.slane %v1719, 2
      %v2203 = vsel %vm2166, %v2200, %v2202
      %v2205 = vunpack.c.l.b16 %v2162
      %v2206 = vpack.c.b16 %v2205, %v2205
      %v2207 = vrot.slane %v2206, 2
      %v2209 = vsel %vm508, %v2169, 0
      %v2212 = vsel %vm508, %v2171, 0
      %v2215 = vsel %vm508, %v2173, 0
      %v2218 = vsel %vm508, %v2175, 0
      %v2221 = vsel %vm508, %v2177, 0
      %v2224 = vsel %vm508, %v2179, 0
      %v2227 = vsel %vm508, %v2181, 0
      %v2230 = vsel %vm508, %v2183, 0
      %v2233 = vsel %vm508, %v2185, 0
      %v2236 = vsel %vm508, %v2187, 0
      %v2239 = vsel %vm508, %v2189, 0
      %v2242 = vsel %vm508, %v2191, 0
      %v2245 = vsel %vm508, %v2193, 0
      %v2248 = vsel %vm508, %v2195, 0
      %v2251 = vsel %vm508, %v2197, 0
      %v2254 = vsel %vm508, %v2199, 0
      %v2257 = vsel %vm508, %v2201, 0
      %v2260 = vsel %vm508, %v2203, 0
      %v2263 = vsel %vm563, %v2207, 0
      %2265 = vmatprep.subr.bf16.mxu0 0
      %2266 = vmatpush1.bf16.msra.mxu0 %v2263
      %2267 = vmatprep.subr.bf16.mxu0 0
      %2268 = vmatpush1.bf16.msra.mxu0 0
      %2269 = vmatprep.subr.bf16.mxu0 0
      %2270 = vmatpush1.bf16.msra.mxu0 0
      %2271 = vmatprep.subr.bf16.mxu0 0
      %2272 = vmatpush1.bf16.msra.mxu0 0
      %2273 = vmatprep.subr.bf16.mxu0 0
      %2274 = vmatpush1.bf16.msra.mxu0 0
      %2275 = vmatprep.subr.bf16.mxu0 0
      %2276 = vmatpush1.bf16.msra.mxu0 0
      %2277 = vmatprep.subr.bf16.mxu0 0
      %2278 = vmatpush1.bf16.msra.mxu0 0
      %2279 = vmatprep.subr.bf16.mxu0 0
      %2280 = vmatpush1.bf16.msra.mxu0 0
      %2281 = vmatprep.subr.bf16.mxu0 0
      %2282 = vmatpush1.bf16.msra.mxu0 0
      %2283 = vmatprep.subr.bf16.mxu0 0
      %2284 = vmatpush1.bf16.msra.mxu0 0
      %2285 = vmatprep.subr.bf16.mxu0 0
      %2286 = vmatpush1.bf16.msra.mxu0 0
      %2287 = vmatprep.subr.bf16.mxu0 0
      %2288 = vmatpush1.bf16.msra.mxu0 0
      %2289 = vmatprep.subr.bf16.mxu0 0
      %2290 = vmatpush1.bf16.msra.mxu0 0
      %2291 = vmatprep.subr.bf16.mxu0 0
      %2292 = vmatpush1.bf16.msra.mxu0 0
      %2293 = vmatprep.subr.bf16.mxu0 0
      %2294 = vmatpush1.bf16.msra.mxu0 0
      %2295 = vmatprep.subr.bf16.mxu0 0
      %2296 = vmatpush1.bf16.msra.mxu0 0
      %2297 = vmatprep.mubr.bf16.mxu0 0
      %2298 = vmatmul.mubr.bf16.gmra.mrb[0].mxu0 %v2209
      %v2299 = vpop.f32.mrb[0].mxu0
      %v2300 = vadd.f32 0.0, %v2299
      %v2301 = vpop.f32.mrb[0].mxu0
      %v2302 = vpop.f32.mrb[0].mxu0
      %v2303 = vadd.f32 0.0, %v2302
      %v2304 = vpop.f32.mrb[0].mxu0
      %2305 = vmatprep.mubr.bf16.mxu0 0
      %2306 = vmatmul.mubr.bf16.gmra.mrb[0].mxu0 %v2212
      %v2307 = vpop.f32.mrb[0].mxu0
      %v2308 = vadd.f32 0.0, %v2307
      %v2309 = vpop.f32.mrb[0].mxu0
      %v2310 = vpop.f32.mrb[0].mxu0
      %v2311 = vadd.f32 0.0, %v2310
      %v2312 = vpop.f32.mrb[0].mxu0
      %2313 = vmatprep.mubr.bf16.mxu0 0
      %2314 = vmatmul.mubr.bf16.gmra.mrb[0].mxu0 %v2215
      %v2315 = vpop.f32.mrb[0].mxu0
      %v2316 = vadd.f32 0.0, %v2315
      %v2317 = vpop.f32.mrb[0].mxu0
      %v2318 = vpop.f32.mrb[0].mxu0
      %v2319 = vadd.f32 0.0, %v2318
      %v2320 = vpop.f32.mrb[0].mxu0
      %2321 = vmatprep.mubr.bf16.mxu0 0
      %2322 = vmatmul.mubr.bf16.gmra.mrb[0].mxu0 %v2218
      %v2323 = vpop.f32.mrb[0].mxu0
      %v2324 = vadd.f32 0.0, %v2323
      %v2325 = vpop.f32.mrb[0].mxu0
      %v2326 = vpop.f32.mrb[0].mxu0
      %v2327 = vadd.f32 0.0, %v2326
      %v2328 = vpop.f32.mrb[0].mxu0
      %2329 = vmatprep.mubr.bf16.mxu0 0
      %2330 = vmatmul.mubr.bf16.gmra.mrb[0].mxu0 %v2221
      %v2331 = vpop.f32.mrb[0].mxu0
      %v2332 = vadd.f32 0.0, %v2331
      %v2333 = vpop.f32.mrb[0].mxu0
      %v2334 = vpop.f32.mrb[0].mxu0
      %v2335 = vadd.f32 0.0, %v2334
      %v2336 = vpop.f32.mrb[0].mxu0
      %2337 = vmatprep.mubr.bf16.mxu0 0
      %2338 = vmatmul.mubr.bf16.gmra.mrb[0].mxu0 %v2224
      %v2339 = vpop.f32.mrb[0].mxu0
      %v2340 = vadd.f32 0.0, %v2339
      %v2341 = vpop.f32.mrb[0].mxu0
      %v2342 = vpop.f32.mrb[0].mxu0
      %v2343 = vadd.f32 0.0, %v2342
      %v2344 = vpop.f32.mrb[0].mxu0
      %2345 = vmatprep.mubr.bf16.mxu0 0
      %2346 = vmatmul.mubr.bf16.gmra.mrb[0].mxu0 %v2227
      %v2347 = vpop.f32.mrb[0].mxu0
      %v2348 = vadd.f32 0.0, %v2347
      %v2349 = vpop.f32.mrb[0].mxu0
      %v2350 = vpop.f32.mrb[0].mxu0
      %v2351 = vadd.f32 0.0, %v2350
      %v2352 = vpop.f32.mrb[0].mxu0
      %2353 = vmatprep.mubr.bf16.mxu0 0
      %2354 = vmatmul.mubr.bf16.gmra.mrb[0].mxu0 %v2230
      %v2355 = vpop.f32.mrb[0].mxu0
      %v2356 = vadd.f32 0.0, %v2355
      %v2357 = vpop.f32.mrb[0].mxu0
      %v2358 = vpop.f32.mrb[0].mxu0
      %v2359 = vadd.f32 0.0, %v2358
      %v2360 = vpop.f32.mrb[0].mxu0
      %2361 = vmatprep.mubr.bf16.mxu0 0
      %2362 = vmatmul.mubr.bf16.gmra.mrb[0].mxu0 %v2233
      %v2363 = vpop.f32.mrb[0].mxu0
      %v2364 = vadd.f32 0.0, %v2363
      %v2365 = vpop.f32.mrb[0].mxu0
      %v2366 = vpop.f32.mrb[0].mxu0
      %v2367 = vadd.f32 0.0, %v2366
      %v2368 = vpop.f32.mrb[0].mxu0
      %2369 = vmatprep.mubr.bf16.mxu0 0
      %2370 = vmatmul.mubr.bf16.gmra.mrb[0].mxu0 %v2236
      %v2371 = vpop.f32.mrb[0].mxu0
      %v2372 = vadd.f32 0.0, %v2371
      %v2373 = vpop.f32.mrb[0].mxu0
      %v2374 = vpop.f32.mrb[0].mxu0
      %v2375 = vadd.f32 0.0, %v2374
      %v2376 = vpop.f32.mrb[0].mxu0
      %2377 = vmatprep.mubr.bf16.mxu0 0
      %2378 = vmatmul.mubr.bf16.gmra.mrb[0].mxu0 %v2239
      %v2379 = vpop.f32.mrb[0].mxu0
      %v2380 = vadd.f32 0.0, %v2379
      %v2381 = vpop.f32.mrb[0].mxu0
      %v2382 = vpop.f32.mrb[0].mxu0
      %v2383 = vadd.f32 0.0, %v2382
      %v2384 = vpop.f32.mrb[0].mxu0
      %2385 = vmatprep.mubr.bf16.mxu0 0
      %2386 = vmatmul.mubr.bf16.gmra.mrb[0].mxu0 %v2242
      %v2387 = vpop.f32.mrb[0].mxu0
      %v2388 = vadd.f32 0.0, %v2387
      %v2389 = vpop.f32.mrb[0].mxu0
      %v2390 = vpop.f32.mrb[0].mxu0
      %v2391 = vadd.f32 0.0, %v2390
      %v2392 = vpop.f32.mrb[0].mxu0
      %2393 = vmatprep.mubr.bf16.mxu0 0
      %2394 = vmatmul.mubr.bf16.gmra.mrb[0].mxu0 %v2245
      %v2395 = vpop.f32.mrb[0].mxu0
      %v2396 = vadd.f32 0.0, %v2395
      %v2397 = vpop.f32.mrb[0].mxu0
      %v2398 = vpop.f32.mrb[0].mxu0
      %v2399 = vadd.f32 0.0, %v2398
      %v2400 = vpop.f32.mrb[0].mxu0
      %2401 = vmatprep.mubr.bf16.mxu0 0
      %2402 = vmatmul.mubr.bf16.gmra.mrb[0].mxu0 %v2248
      %v2403 = vpop.f32.mrb[0].mxu0
      %v2404 = vadd.f32 0.0, %v2403
      %v2405 = vpop.f32.mrb[0].mxu0
      %v2406 = vpop.f32.mrb[0].mxu0
      %v2407 = vadd.f32 0.0, %v2406
      %v2408 = vpop.f32.mrb[0].mxu0
      %2409 = vmatprep.mubr.bf16.mxu0 0
      %2410 = vmatmul.mubr.bf16.gmra.mrb[0].mxu0 %v2251
      %v2411 = vpop.f32.mrb[0].mxu0
      %v2412 = vadd.f32 0.0, %v2411
      %v2413 = vpop.f32.mrb[0].mxu0
      %v2414 = vpop.f32.mrb[0].mxu0
      %v2415 = vadd.f32 0.0, %v2414
      %v2416 = vpop.f32.mrb[0].mxu0
      %2417 = vmatprep.mubr.bf16.mxu0 0
      %2418 = vmatmul.mubr.bf16.gmra.mrb[0].mxu0 %v2254
      %v2419 = vpop.f32.mrb[0].mxu0
      %v2420 = vadd.f32 0.0, %v2419
      %v2421 = vpop.f32.mrb[0].mxu0
      %v2422 = vpop.f32.mrb[0].mxu0
      %v2423 = vadd.f32 0.0, %v2422
      %v2424 = vpop.f32.mrb[0].mxu0
      %2425 = vmatprep.mubr.bf16.mxu0 0
      %2426 = vmatmul.mubr.bf16.gmra.mrb[0].mxu0 %v2257
      %v2427 = vpop.f32.mrb[0].mxu0
      %v2428 = vadd.f32 0.0, %v2427
      %v2429 = vpop.f32.mrb[0].mxu0
      %v2430 = vpop.f32.mrb[0].mxu0
      %v2431 = vadd.f32 0.0, %v2430
      %v2432 = vpop.f32.mrb[0].mxu0
      %2433 = vmatprep.mubr.bf16.mxu0 0
      %2434 = vmatmul.mubr.bf16.gmra.mrb[0].mxu0 %v2260
      %v2435 = vpop.f32.mrb[0].mxu0
      %v2436 = vadd.f32 0.0, %v2435
      %v2437 = vpop.f32.mrb[0].mxu0
      %v2438 = vpop.f32.mrb[0].mxu0
      %v2439 = vadd.f32 0.0, %v2438
      %v2440 = vpop.f32.mrb[0].mxu0
      %2441 = vdwg.mxu0
      %v2442 = vadd.f32 %v2125, %v2300
      %v2443 = vadd.f32 %v2126, %v2303
      %v2444 = vadd.f32 %v2127, %v2308
      %v2445 = vadd.f32 %v2128, %v2311
      %v2446 = vadd.f32 %v2129, %v2316
      %v2447 = vadd.f32 %v2130, %v2319
      %v2448 = vadd.f32 %v2131, %v2324
      %v2449 = vadd.f32 %v2132, %v2327
      %v2450 = vadd.f32 %v2133, %v2332
      %v2451 = vadd.f32 %v2134, %v2335
      %v2452 = vadd.f32 %v2135, %v2340
      %v2453 = vadd.f32 %v2136, %v2343
      %v2454 = vadd.f32 %v2137, %v2348
      %v2455 = vadd.f32 %v2138, %v2351
      %v2456 = vadd.f32 %v2139, %v2356
      %v2457 = vadd.f32 %v2140, %v2359
      %v2458 = vadd.f32 %v2141, %v2364
      %v2459 = vadd.f32 %v2142, %v2367
      %v2460 = vadd.f32 %v2143, %v2372
      %v2461 = vadd.f32 %v2144, %v2375
      %v2462 = vadd.f32 %v2145, %v2380
      %v2463 = vadd.f32 %v2146, %v2383
      %v2464 = vadd.f32 %v2147, %v2388
      %v2465 = vadd.f32 %v2148, %v2391
      %v2466 = vadd.f32 %v2149, %v2396
      %v2467 = vadd.f32 %v2150, %v2399
      %v2468 = vadd.f32 %v2151, %v2404
      %v2469 = vadd.f32 %v2152, %v2407
      %v2470 = vadd.f32 %v2153, %v2412
      %v2471 = vadd.f32 %v2154, %v2415
      %v2472 = vadd.f32 %v2155, %v2420
      %v2473 = vadd.f32 %v2156, %v2423
      %v2474 = vadd.f32 %v2157, %v2428
      %v2475 = vadd.f32 %v2158, %v2431
      %v2476 = vadd.f32 %v2159, %v2436
      %v2477 = vadd.f32 %v2160, %v2439
      %v2478 = vld [vmem:[%s206 + $0x10] sm:$0xc]
      %v2479 = vld [vmem:[%s206 + $0x14] sm:$0xf]
      %v2480 = vld [vmem:[%s206 + $0x18] sm:$0xf]
      %v2481 = vld [vmem:[%s206 + $0x1c] sm:$0xf]
      %v2482 = vld [vmem:[%s206 + $0x20] sm:$0xf]
      %v2483 = vld [vmem:[%s206 + $0x24] sm:$0xf]
      %v2484 = vld [vmem:[%s206 + $0x28] sm:$0xf]
      %v2485 = vld [vmem:[%s206 + $0x2c] sm:$0xf]
      %v2486 = vld [vmem:[%s206 + $0x30] sm:$0xf]
      %v2487 = vld [vmem:[%s206 + $0x34] sm:$0xf]
      %v2488 = vld [vmem:[%s206 + $0x38] sm:$0xf]
      %v2489 = vld [vmem:[%s206 + $0x3c] sm:$0xf]
      %v2490 = vld [vmem:[%s206 + $0x40] sm:$0xf]
      %v2491 = vld [vmem:[%s206 + $0x44] sm:$0xf]
      %v2492 = vld [vmem:[%s206 + $0x48] sm:$0xf]
      %v2493 = vld [vmem:[%s206 + $0x4c] sm:$0xf]
      %v2494 = vld [vmem:[%s206 + $0x50] sm:$0xf]
      %v2495 = vld [vmem:[%s206 + $0x54] sm:$0xf]
      %v2496 = vld [vmem:[%s206 + $0x58] sm:$0xf]
      %v2497 = vld [vmem:[%s206 + $0x5c] sm:$0xf]
      %v2498 = vld [vmem:[%s206 + $0x60] sm:$0xf]
      %v2499 = vld [vmem:[%s206 + $0x64] sm:$0xf]
      %v2500 = vld [vmem:[%s206 + $0x68] sm:$0xf]
      %v2501 = vld [vmem:[%s206 + $0x6c] sm:$0xf]
      %v2502 = vld [vmem:[%s206 + $0x70] sm:$0xf]
      %v2503 = vld [vmem:[%s206 + $0x74] sm:$0xf]
      %v2504 = vld [vmem:[%s206 + $0x78] sm:$0xf]
      %v2505 = vld [vmem:[%s206 + $0x7c] sm:$0xf]
      %v2506 = vld [vmem:[%s206 + $0x80] sm:$0xf]
      %v2507 = vld [vmem:[%s206 + $0x84] sm:$0xf]
      %v2508 = vld [vmem:[%s206 + $0x88] sm:$0xf]
      %v2509 = vld [vmem:[%s206 + $0x8c] sm:$0xf]
      %v2510 = vld [vmem:[%s206 + $0x90] sm:$0xf]
      %v2511 = vld [vmem:[%s206 + $0x94] sm:$0xf]
      %v2512 = vld [vmem:[%s206 + $0x98] sm:$0xf]
      %v2513 = vld [vmem:[%s206 + $0x9c] sm:$0xf]
      %v2514 = vld [vmem:[%s206 + $0xa0] sm:$0x3]
      %v2515 = vld [vmem:[%s210 + $0xc] sm:$0x3]
      %v2553 = vunpack.c.l.b16 %v2478
      %v2554 = vunpack.c.l.b16 %v2479
      %v2555 = vunpack.c.l.b16 %v2480
      %v2556 = vunpack.c.l.b16 %v2481
      %v2557 = vunpack.c.l.b16 %v2482
      %v2558 = vunpack.c.l.b16 %v2483
      %v2559 = vunpack.c.l.b16 %v2484
      %v2560 = vunpack.c.l.b16 %v2485
      %v2561 = vunpack.c.l.b16 %v2486
      %v2562 = vunpack.c.l.b16 %v2487
      %v2563 = vunpack.c.l.b16 %v2488
      %v2564 = vunpack.c.l.b16 %v2489
      %v2565 = vunpack.c.l.b16 %v2490
      %v2566 = vunpack.c.l.b16 %v2491
      %v2567 = vunpack.c.l.b16 %v2492
      %v2568 = vunpack.c.l.b16 %v2493
      %v2569 = vunpack.c.l.b16 %v2494
      %v2570 = vunpack.c.l.b16 %v2495
      %v2571 = vunpack.c.l.b16 %v2496
      %v2572 = vunpack.c.l.b16 %v2497
      %v2573 = vunpack.c.l.b16 %v2498
      %v2574 = vunpack.c.l.b16 %v2499
      %v2575 = vunpack.c.l.b16 %v2500
      %v2576 = vunpack.c.l.b16 %v2501
      %v2577 = vunpack.c.l.b16 %v2502
      %v2578 = vunpack.c.l.b16 %v2503
      %v2579 = vunpack.c.l.b16 %v2504
      %v2580 = vunpack.c.l.b16 %v2505
      %v2581 = vunpack.c.l.b16 %v2506
      %v2582 = vunpack.c.l.b16 %v2507
      %v2583 = vunpack.c.l.b16 %v2508
      %v2584 = vunpack.c.l.b16 %v2509
      %v2585 = vunpack.c.l.b16 %v2510
      %v2586 = vunpack.c.l.b16 %v2511
      %v2587 = vunpack.c.l.b16 %v2512
      %v2588 = vunpack.c.l.b16 %v2513
      %v2589 = vunpack.c.l.b16 %v2514
      %v2590 = vpack.c.b16 %v2554, %v2553
      %v2591 = vpack.c.b16 %v2556, %v2555
      %v2592 = vpack.c.b16 %v2558, %v2557
      %v2593 = vpack.c.b16 %v2560, %v2559
      %v2594 = vpack.c.b16 %v2562, %v2561
      %v2595 = vpack.c.b16 %v2564, %v2563
      %v2596 = vpack.c.b16 %v2566, %v2565
      %v2597 = vpack.c.b16 %v2568, %v2567
      %v2598 = vpack.c.b16 %v2570, %v2569
      %v2599 = vpack.c.b16 %v2572, %v2571
      %v2600 = vpack.c.b16 %v2574, %v2573
      %v2601 = vpack.c.b16 %v2576, %v2575
      %v2602 = vpack.c.b16 %v2578, %v2577
      %v2603 = vpack.c.b16 %v2580, %v2579
      %v2604 = vpack.c.b16 %v2582, %v2581
      %v2605 = vpack.c.b16 %v2584, %v2583
      %v2606 = vpack.c.b16 %v2586, %v2585
      %v2607 = vpack.c.b16 %v2588, %v2587
      %v2608 = vpack.c.b16 %v2589, %v2589
      %v2609 = vrot.slane %v2590, 2
      %v2610 = vrot.slane %v2591, 2
      %v2611 = vsel %vm2166, %v2609, %v2610
      %v2612 = vrot.slane %v2592, 2
      %v2613 = vsel %vm2166, %v2610, %v2612
      %v2614 = vrot.slane %v2593, 2
      %v2615 = vsel %vm2166, %v2612, %v2614
      %v2616 = vrot.slane %v2594, 2
      %v2617 = vsel %vm2166, %v2614, %v2616
      %v2618 = vrot.slane %v2595, 2
      %v2619 = vsel %vm2166, %v2616, %v2618
      %v2620 = vrot.slane %v2596, 2
      %v2621 = vsel %vm2166, %v2618, %v2620
      %v2622 = vrot.slane %v2597, 2
      %v2623 = vsel %vm2166, %v2620, %v2622
      %v2624 = vrot.slane %v2598, 2
      %v2625 = vsel %vm2166, %v2622, %v2624
      %v2626 = vrot.slane %v2599, 2
      %v2627 = vsel %vm2166, %v2624, %v2626
      %v2628 = vrot.slane %v2600, 2
      %v2629 = vsel %vm2166, %v2626, %v2628
      %v2630 = vrot.slane %v2601, 2
      %v2631 = vsel %vm2166, %v2628, %v2630
      %v2632 = vrot.slane %v2602, 2
      %v2633 = vsel %vm2166, %v2630, %v2632
      %v2634 = vrot.slane %v2603, 2
      %v2635 = vsel %vm2166, %v2632, %v2634
      %v2636 = vrot.slane %v2604, 2
      %v2637 = vsel %vm2166, %v2634, %v2636
      %v2638 = vrot.slane %v2605, 2
      %v2639 = vsel %vm2166, %v2636, %v2638
      %v2640 = vrot.slane %v2606, 2
      %v2641 = vsel %vm2166, %v2638, %v2640
      %v2642 = vrot.slane %v2607, 2
      %v2643 = vsel %vm2166, %v2640, %v2642
      %v2644 = vrot.slane %v2608, 2
      %v2645 = vsel %vm2166, %v2642, %v2644
      %v2647 = vsel %vm508, %v2611, 0
      %v2650 = vsel %vm508, %v2613, 0
      %v2653 = vsel %vm508, %v2615, 0
      %v2656 = vsel %vm508, %v2617, 0
      %v2659 = vsel %vm508, %v2619, 0
      %v2662 = vsel %vm508, %v2621, 0
      %v2665 = vsel %vm508, %v2623, 0
      %v2668 = vsel %vm508, %v2625, 0
      %v2671 = vsel %vm508, %v2627, 0
      %v2674 = vsel %vm508, %v2629, 0
      %v2677 = vsel %vm508, %v2631, 0
      %v2680 = vsel %vm508, %v2633, 0
      %v2683 = vsel %vm508, %v2635, 0
      %v2686 = vsel %vm508, %v2637, 0
      %v2689 = vsel %vm508, %v2639, 0
      %v2692 = vsel %vm508, %v2641, 0
      %v2695 = vsel %vm508, %v2643, 0
      %v2698 = vsel %vm508, %v2645, 0
      %v2701 = vsel %vm563, %v2515, 0
      %2703 = vmatprep.subr.bf16.mxu0 0
      %2704 = vmatpush1.bf16.msra.mxu0 %v2701
      %2705 = vmatprep.subr.bf16.mxu0 0
      %2706 = vmatpush1.bf16.msra.mxu0 0
      %2707 = vmatprep.subr.bf16.mxu0 0
      %2708 = vmatpush1.bf16.msra.mxu0 0
      %2709 = vmatprep.subr.bf16.mxu0 0
      %2710 = vmatpush1.bf16.msra.mxu0 0
      %2711 = vmatprep.subr.bf16.mxu0 0
      %2712 = vmatpush1.bf16.msra.mxu0 0
      %2713 = vmatprep.subr.bf16.mxu0 0
      %2714 = vmatpush1.bf16.msra.mxu0 0
      %2715 = vmatprep.subr.bf16.mxu0 0
      %2716 = vmatpush1.bf16.msra.mxu0 0
      %2717 = vmatprep.subr.bf16.mxu0 0
      %2718 = vmatpush1.bf16.msra.mxu0 0
      %2719 = vmatprep.subr.bf16.mxu0 0
      %2720 = vmatpush1.bf16.msra.mxu0 0
      %2721 = vmatprep.subr.bf16.mxu0 0
      %2722 = vmatpush1.bf16.msra.mxu0 0
      %2723 = vmatprep.subr.bf16.mxu0 0
      %2724 = vmatpush1.bf16.msra.mxu0 0
      %2725 = vmatprep.subr.bf16.mxu0 0
      %2726 = vmatpush1.bf16.msra.mxu0 0
      %2727 = vmatprep.subr.bf16.mxu0 0
      %2728 = vmatpush1.bf16.msra.mxu0 0
      %2729 = vmatprep.subr.bf16.mxu0 0
      %2730 = vmatpush1.bf16.msra.mxu0 0
      %2731 = vmatprep.subr.bf16.mxu0 0
      %2732 = vmatpush1.bf16.msra.mxu0 0
      %2733 = vmatprep.subr.bf16.mxu0 0
      %2734 = vmatpush1.bf16.msra.mxu0 0
      %2735 = vmatprep.mubr.bf16.mxu0 0
      %2736 = vmatmul.mubr.bf16.gmra.mrb[0].mxu0 %v2647
      %v2737 = vpop.f32.mrb[0].mxu0
      %v2738 = vadd.f32 0.0, %v2737
      %v2739 = vpop.f32.mrb[0].mxu0
      %v2740 = vpop.f32.mrb[0].mxu0
      %v2741 = vadd.f32 0.0, %v2740
      %v2742 = vpop.f32.mrb[0].mxu0
      %2743 = vmatprep.mubr.bf16.mxu0 0
      %2744 = vmatmul.mubr.bf16.gmra.mrb[0].mxu0 %v2650
      %v2745 = vpop.f32.mrb[0].mxu0
      %v2746 = vadd.f32 0.0, %v2745
      %v2747 = vpop.f32.mrb[0].mxu0
      %v2748 = vpop.f32.mrb[0].mxu0
      %v2749 = vadd.f32 0.0, %v2748
      %v2750 = vpop.f32.mrb[0].mxu0
      %2751 = vmatprep.mubr.bf16.mxu0 0
      %2752 = vmatmul.mubr.bf16.gmra.mrb[0].mxu0 %v2653
      %v2753 = vpop.f32.mrb[0].mxu0
      %v2754 = vadd.f32 0.0, %v2753
      %v2755 = vpop.f32.mrb[0].mxu0
      %v2756 = vpop.f32.mrb[0].mxu0
      %v2757 = vadd.f32 0.0, %v2756
      %v2758 = vpop.f32.mrb[0].mxu0
      %2759 = vmatprep.mubr.bf16.mxu0 0
      %2760 = vmatmul.mubr.bf16.gmra.mrb[0].mxu0 %v2656
      %v2761 = vpop.f32.mrb[0].mxu0
      %v2762 = vadd.f32 0.0, %v2761
      %v2763 = vpop.f32.mrb[0].mxu0
      %v2764 = vpop.f32.mrb[0].mxu0
      %v2765 = vadd.f32 0.0, %v2764
      %v2766 = vpop.f32.mrb[0].mxu0
      %2767 = vmatprep.mubr.bf16.mxu0 0
      %2768 = vmatmul.mubr.bf16.gmra.mrb[0].mxu0 %v2659
      %v2769 = vpop.f32.mrb[0].mxu0
      %v2770 = vadd.f32 0.0, %v2769
      %v2771 = vpop.f32.mrb[0].mxu0
      %v2772 = vpop.f32.mrb[0].mxu0
      %v2773 = vadd.f32 0.0, %v2772
      %v2774 = vpop.f32.mrb[0].mxu0
      %2775 = vmatprep.mubr.bf16.mxu0 0
      %2776 = vmatmul.mubr.bf16.gmra.mrb[0].mxu0 %v2662
      %v2777 = vpop.f32.mrb[0].mxu0
      %v2778 = vadd.f32 0.0, %v2777
      %v2779 = vpop.f32.mrb[0].mxu0
      %v2780 = vpop.f32.mrb[0].mxu0
      %v2781 = vadd.f32 0.0, %v2780
      %v2782 = vpop.f32.mrb[0].mxu0
      %2783 = vmatprep.mubr.bf16.mxu0 0
      %2784 = vmatmul.mubr.bf16.gmra.mrb[0].mxu0 %v2665
      %v2785 = vpop.f32.mrb[0].mxu0
      %v2786 = vadd.f32 0.0, %v2785
      %v2787 = vpop.f32.mrb[0].mxu0
      %v2788 = vpop.f32.mrb[0].mxu0
      %v2789 = vadd.f32 0.0, %v2788
      %v2790 = vpop.f32.mrb[0].mxu0
      %2791 = vmatprep.mubr.bf16.mxu0 0
      %2792 = vmatmul.mubr.bf16.gmra.mrb[0].mxu0 %v2668
      %v2793 = vpop.f32.mrb[0].mxu0
      %v2794 = vadd.f32 0.0, %v2793
      %v2795 = vpop.f32.mrb[0].mxu0
      %v2796 = vpop.f32.mrb[0].mxu0
      %v2797 = vadd.f32 0.0, %v2796
      %v2798 = vpop.f32.mrb[0].mxu0
      %2799 = vmatprep.mubr.bf16.mxu0 0
      %2800 = vmatmul.mubr.bf16.gmra.mrb[0].mxu0 %v2671
      %v2801 = vpop.f32.mrb[0].mxu0
      %v2802 = vadd.f32 0.0, %v2801
      %v2803 = vpop.f32.mrb[0].mxu0
      %v2804 = vpop.f32.mrb[0].mxu0
      %v2805 = vadd.f32 0.0, %v2804
      %v2806 = vpop.f32.mrb[0].mxu0
      %2807 = vmatprep.mubr.bf16.mxu0 0
      %2808 = vmatmul.mubr.bf16.gmra.mrb[0].mxu0 %v2674
      %v2809 = vpop.f32.mrb[0].mxu0
      %v2810 = vadd.f32 0.0, %v2809
      %v2811 = vpop.f32.mrb[0].mxu0
      %v2812 = vpop.f32.mrb[0].mxu0
      %v2813 = vadd.f32 0.0, %v2812
      %v2814 = vpop.f32.mrb[0].mxu0
      %2815 = vmatprep.mubr.bf16.mxu0 0
      %2816 = vmatmul.mubr.bf16.gmra.mrb[0].mxu0 %v2677
      %v2817 = vpop.f32.mrb[0].mxu0
      %v2818 = vadd.f32 0.0, %v2817
      %v2819 = vpop.f32.mrb[0].mxu0
      %v2820 = vpop.f32.mrb[0].mxu0
      %v2821 = vadd.f32 0.0, %v2820
      %v2822 = vpop.f32.mrb[0].mxu0
      %2823 = vmatprep.mubr.bf16.mxu0 0
      %2824 = vmatmul.mubr.bf16.gmra.mrb[0].mxu0 %v2680
      %v2825 = vpop.f32.mrb[0].mxu0
      %v2826 = vadd.f32 0.0, %v2825
      %v2827 = vpop.f32.mrb[0].mxu0
      %v2828 = vpop.f32.mrb[0].mxu0
      %v2829 = vadd.f32 0.0, %v2828
      %v2830 = vpop.f32.mrb[0].mxu0
      %2831 = vmatprep.mubr.bf16.mxu0 0
      %2832 = vmatmul.mubr.bf16.gmra.mrb[0].mxu0 %v2683
      %v2833 = vpop.f32.mrb[0].mxu0
      %v2834 = vadd.f32 0.0, %v2833
      %v2835 = vpop.f32.mrb[0].mxu0
      %v2836 = vpop.f32.mrb[0].mxu0
      %v2837 = vadd.f32 0.0, %v2836
      %v2838 = vpop.f32.mrb[0].mxu0
      %2839 = vmatprep.mubr.bf16.mxu0 0
      %2840 = vmatmul.mubr.bf16.gmra.mrb[0].mxu0 %v2686
      %v2841 = vpop.f32.mrb[0].mxu0
      %v2842 = vadd.f32 0.0, %v2841
      %v2843 = vpop.f32.mrb[0].mxu0
      %v2844 = vpop.f32.mrb[0].mxu0
      %v2845 = vadd.f32 0.0, %v2844
      %v2846 = vpop.f32.mrb[0].mxu0
      %2847 = vmatprep.mubr.bf16.mxu0 0
      %2848 = vmatmul.mubr.bf16.gmra.mrb[0].mxu0 %v2689
      %v2849 = vpop.f32.mrb[0].mxu0
      %v2850 = vadd.f32 0.0, %v2849
      %v2851 = vpop.f32.mrb[0].mxu0
      %v2852 = vpop.f32.mrb[0].mxu0
      %v2853 = vadd.f32 0.0, %v2852
      %v2854 = vpop.f32.mrb[0].mxu0
      %2855 = vmatprep.mubr.bf16.mxu0 0
      %2856 = vmatmul.mubr.bf16.gmra.mrb[0].mxu0 %v2692
      %v2857 = vpop.f32.mrb[0].mxu0
      %v2858 = vadd.f32 0.0, %v2857
      %v2859 = vpop.f32.mrb[0].mxu0
      %v2860 = vpop.f32.mrb[0].mxu0
      %v2861 = vadd.f32 0.0, %v2860
      %v2862 = vpop.f32.mrb[0].mxu0
      %2863 = vmatprep.mubr.bf16.mxu0 0
      %2864 = vmatmul.mubr.bf16.gmra.mrb[0].mxu0 %v2695
      %v2865 = vpop.f32.mrb[0].mxu0
      %v2866 = vadd.f32 0.0, %v2865
      %v2867 = vpop.f32.mrb[0].mxu0
      %v2868 = vpop.f32.mrb[0].mxu0
      %v2869 = vadd.f32 0.0, %v2868
      %v2870 = vpop.f32.mrb[0].mxu0
      %2871 = vmatprep.mubr.bf16.mxu0 0
      %2872 = vmatmul.mubr.bf16.gmra.mrb[0].mxu0 %v2698
      %v2873 = vpop.f32.mrb[0].mxu0
      %v2874 = vadd.f32 0.0, %v2873
      %v2875 = vpop.f32.mrb[0].mxu0
      %v2876 = vpop.f32.mrb[0].mxu0
      %v2877 = vadd.f32 0.0, %v2876
      %v2878 = vpop.f32.mrb[0].mxu0
      %2879 = vdwg.mxu0
      %v2880 = vadd.f32 %v2442, %v2738
      %v2881 = vadd.f32 %v2443, %v2741
      %v2882 = vadd.f32 %v2444, %v2746
      %v2883 = vadd.f32 %v2445, %v2749
      %v2884 = vadd.f32 %v2446, %v2754
      %v2885 = vadd.f32 %v2447, %v2757
      %v2886 = vadd.f32 %v2448, %v2762
      %v2887 = vadd.f32 %v2449, %v2765
      %v2888 = vadd.f32 %v2450, %v2770
      %v2889 = vadd.f32 %v2451, %v2773
      %v2890 = vadd.f32 %v2452, %v2778
      %v2891 = vadd.f32 %v2453, %v2781
      %v2892 = vadd.f32 %v2454, %v2786
      %v2893 = vadd.f32 %v2455, %v2789
      %v2894 = vadd.f32 %v2456, %v2794
      %v2895 = vadd.f32 %v2457, %v2797
      %v2896 = vadd.f32 %v2458, %v2802
      %v2897 = vadd.f32 %v2459, %v2805
      %v2898 = vadd.f32 %v2460, %v2810
      %v2899 = vadd.f32 %v2461, %v2813
      %v2900 = vadd.f32 %v2462, %v2818
      %v2901 = vadd.f32 %v2463, %v2821
      %v2902 = vadd.f32 %v2464, %v2826
      %v2903 = vadd.f32 %v2465, %v2829
      %v2904 = vadd.f32 %v2466, %v2834
      %v2905 = vadd.f32 %v2467, %v2837
      %v2906 = vadd.f32 %v2468, %v2842
      %v2907 = vadd.f32 %v2469, %v2845
      %v2908 = vadd.f32 %v2470, %v2850
      %v2909 = vadd.f32 %v2471, %v2853
      %v2910 = vadd.f32 %v2472, %v2858
      %v2911 = vadd.f32 %v2473, %v2861
      %v2912 = vadd.f32 %v2474, %v2866
      %v2913 = vadd.f32 %v2475, %v2869
      %v2914 = vadd.f32 %v2476, %v2874
      %v2915 = vadd.f32 %v2477, %v2877
      %v2916 = vld [vmem:[%s206 + $0xa0] sm:$0x7]
      %v2917 = vld [vmem:[%s210 + $0xc] sm:$0xc]
      %v2919 = vunpack.c.l.b16 %v2916
      %v2920 = vpack.c.b16 %v2919, %v2919
      %vm2921 = vsmask.f32 5376
      %v2923 = vshrl.u32 %v2590, 16
      %v2925 = vrot.slane %v2923, 2
      %v2926 = vshll.u32 %v2590, 16
      %v2928 = vrot.slane %v2926, 3
      %v2929 = vor.u32 %v2925, %v2928
      %v2931 = vshrl.u32 %v2591, 16
      %v2933 = vrot.slane %v2931, 2
      %v2934 = vshll.u32 %v2591, 16
      %v2936 = vrot.slane %v2934, 3
      %v2937 = vor.u32 %v2933, %v2936
      %v2938 = vsel %vm2921, %v2929, %v2937
      %v2940 = vshrl.u32 %v2592, 16
      %v2942 = vrot.slane %v2940, 2
      %v2943 = vshll.u32 %v2592, 16
      %v2945 = vrot.slane %v2943, 3
      %v2946 = vor.u32 %v2942, %v2945
      %v2947 = vsel %vm2921, %v2937, %v2946
      %v2949 = vshrl.u32 %v2593, 16
      %v2951 = vrot.slane %v2949, 2
      %v2952 = vshll.u32 %v2593, 16
      %v2954 = vrot.slane %v2952, 3
      %v2955 = vor.u32 %v2951, %v2954
      %v2956 = vsel %vm2921, %v2946, %v2955
      %v2958 = vshrl.u32 %v2594, 16
      %v2960 = vrot.slane %v2958, 2
      %v2961 = vshll.u32 %v2594, 16
      %v2963 = vrot.slane %v2961, 3
      %v2964 = vor.u32 %v2960, %v2963
      %v2965 = vsel %vm2921, %v2955, %v2964
      %v2967 = vshrl.u32 %v2595, 16
      %v2969 = vrot.slane %v2967, 2
      %v2970 = vshll.u32 %v2595, 16
      %v2972 = vrot.slane %v2970, 3
      %v2973 = vor.u32 %v2969, %v2972
      %v2974 = vsel %vm2921, %v2964, %v2973
      %v2976 = vshrl.u32 %v2596, 16
      %v2978 = vrot.slane %v2976, 2
      %v2979 = vshll.u32 %v2596, 16
      %v2981 = vrot.slane %v2979, 3
      %v2982 = vor.u32 %v2978, %v2981
      %v2983 = vsel %vm2921, %v2973, %v2982
      %v2985 = vshrl.u32 %v2597, 16
      %v2987 = vrot.slane %v2985, 2
      %v2988 = vshll.u32 %v2597, 16
      %v2990 = vrot.slane %v2988, 3
      %v2991 = vor.u32 %v2987, %v2990
      %v2992 = vsel %vm2921, %v2982, %v2991
      %v2994 = vshrl.u32 %v2598, 16
      %v2996 = vrot.slane %v2994, 2
      %v2997 = vshll.u32 %v2598, 16
      %v2999 = vrot.slane %v2997, 3
      %v3000 = vor.u32 %v2996, %v2999
      %v3001 = vsel %vm2921, %v2991, %v3000
      %v3003 = vshrl.u32 %v2599, 16
      %v3005 = vrot.slane %v3003, 2
      %v3006 = vshll.u32 %v2599, 16
      %v3008 = vrot.slane %v3006, 3
      %v3009 = vor.u32 %v3005, %v3008
      %v3010 = vsel %vm2921, %v3000, %v3009
      %v3012 = vshrl.u32 %v2600, 16
      %v3014 = vrot.slane %v3012, 2
      %v3015 = vshll.u32 %v2600, 16
      %v3017 = vrot.slane %v3015, 3
      %v3018 = vor.u32 %v3014, %v3017
      %v3019 = vsel %vm2921, %v3009, %v3018
      %v3021 = vshrl.u32 %v2601, 16
      %v3023 = vrot.slane %v3021, 2
      %v3024 = vshll.u32 %v2601, 16
      %v3026 = vrot.slane %v3024, 3
      %v3027 = vor.u32 %v3023, %v3026
      %v3028 = vsel %vm2921, %v3018, %v3027
      %v3030 = vshrl.u32 %v2602, 16
      %v3032 = vrot.slane %v3030, 2
      %v3033 = vshll.u32 %v2602, 16
      %v3035 = vrot.slane %v3033, 3
      %v3036 = vor.u32 %v3032, %v3035
      %v3037 = vsel %vm2921, %v3027, %v3036
      %v3039 = vshrl.u32 %v2603, 16
      %v3041 = vrot.slane %v3039, 2
      %v3042 = vshll.u32 %v2603, 16
      %v3044 = vrot.slane %v3042, 3
      %v3045 = vor.u32 %v3041, %v3044
      %v3046 = vsel %vm2921, %v3036, %v3045
      %v3048 = vshrl.u32 %v2604, 16
      %v3050 = vrot.slane %v3048, 2
      %v3051 = vshll.u32 %v2604, 16
      %v3053 = vrot.slane %v3051, 3
      %v3054 = vor.u32 %v3050, %v3053
      %v3055 = vsel %vm2921, %v3045, %v3054
      %v3057 = vshrl.u32 %v2605, 16
      %v3059 = vrot.slane %v3057, 2
      %v3060 = vshll.u32 %v2605, 16
      %v3062 = vrot.slane %v3060, 3
      %v3063 = vor.u32 %v3059, %v3062
      %v3064 = vsel %vm2921, %v3054, %v3063
      %v3066 = vshrl.u32 %v2606, 16
      %v3068 = vrot.slane %v3066, 2
      %v3069 = vshll.u32 %v2606, 16
      %v3071 = vrot.slane %v3069, 3
      %v3072 = vor.u32 %v3068, %v3071
      %v3073 = vsel %vm2921, %v3063, %v3072
      %v3075 = vshrl.u32 %v2607, 16
      %v3077 = vrot.slane %v3075, 2
      %v3078 = vshll.u32 %v2607, 16
      %v3080 = vrot.slane %v3078, 3
      %v3081 = vor.u32 %v3077, %v3080
      %v3082 = vsel %vm2921, %v3072, %v3081
      %v3084 = vshrl.u32 %v2920, 16
      %v3086 = vrot.slane %v3084, 2
      %v3087 = vshll.u32 %v2920, 16
      %v3089 = vrot.slane %v3087, 3
      %v3090 = vor.u32 %v3086, %v3089
      %v3091 = vsel %vm2921, %v3081, %v3090
      %v3093 = vunpack.c.l.b16 %v2917
      %v3094 = vpack.c.b16 %v3093, %v3093
      %v3095 = vrot.slane %v3094, 2
      %v3097 = vsel %vm508, %v2938, 0
      %v3100 = vsel %vm508, %v2947, 0
      %v3103 = vsel %vm508, %v2956, 0
      %v3106 = vsel %vm508, %v2965, 0
      %v3109 = vsel %vm508, %v2974, 0
      %v3112 = vsel %vm508, %v2983, 0
      %v3115 = vsel %vm508, %v2992, 0
      %v3118 = vsel %vm508, %v3001, 0
      %v3121 = vsel %vm508, %v3010, 0
      %v3124 = vsel %vm508, %v3019, 0
      %v3127 = vsel %vm508, %v3028, 0
      %v3130 = vsel %vm508, %v3037, 0
      %v3133 = vsel %vm508, %v3046, 0
      %v3136 = vsel %vm508, %v3055, 0
      %v3139 = vsel %vm508, %v3064, 0
      %v3142 = vsel %vm508, %v3073, 0
      %v3145 = vsel %vm508, %v3082, 0
      %v3148 = vsel %vm508, %v3091, 0
      %v3151 = vsel %vm563, %v3095, 0
      %3153 = vmatprep.subr.bf16.mxu0 0
      %3154 = vmatpush1.bf16.msra.mxu0 %v3151
      %3155 = vmatprep.subr.bf16.mxu0 0
      %3156 = vmatpush1.bf16.msra.mxu0 0
      %3157 = vmatprep.subr.bf16.mxu0 0
      %3158 = vmatpush1.bf16.msra.mxu0 0
      %3159 = vmatprep.subr.bf16.mxu0 0
      %3160 = vmatpush1.bf16.msra.mxu0 0
      %3161 = vmatprep.subr.bf16.mxu0 0
      %3162 = vmatpush1.bf16.msra.mxu0 0
      %3163 = vmatprep.subr.bf16.mxu0 0
      %3164 = vmatpush1.bf16.msra.mxu0 0
      %3165 = vmatprep.subr.bf16.mxu0 0
      %3166 = vmatpush1.bf16.msra.mxu0 0
      %3167 = vmatprep.subr.bf16.mxu0 0
      %3168 = vmatpush1.bf16.msra.mxu0 0
      %3169 = vmatprep.subr.bf16.mxu0 0
      %3170 = vmatpush1.bf16.msra.mxu0 0
      %3171 = vmatprep.subr.bf16.mxu0 0
      %3172 = vmatpush1.bf16.msra.mxu0 0
      %3173 = vmatprep.subr.bf16.mxu0 0
      %3174 = vmatpush1.bf16.msra.mxu0 0
      %3175 = vmatprep.subr.bf16.mxu0 0
      %3176 = vmatpush1.bf16.msra.mxu0 0
      %3177 = vmatprep.subr.bf16.mxu0 0
      %3178 = vmatpush1.bf16.msra.mxu0 0
      %3179 = vmatprep.subr.bf16.mxu0 0
      %3180 = vmatpush1.bf16.msra.mxu0 0
      %3181 = vmatprep.subr.bf16.mxu0 0
      %3182 = vmatpush1.bf16.msra.mxu0 0
      %3183 = vmatprep.subr.bf16.mxu0 0
      %3184 = vmatpush1.bf16.msra.mxu0 0
      %3185 = vmatprep.mubr.bf16.mxu0 0
      %3186 = vmatmul.mubr.bf16.gmra.mrb[0].mxu0 %v3097
      %v3187 = vpop.f32.mrb[0].mxu0
      %v3188 = vadd.f32 0.0, %v3187
      %v3189 = vpop.f32.mrb[0].mxu0
      %v3190 = vpop.f32.mrb[0].mxu0
      %v3191 = vadd.f32 0.0, %v3190
      %v3192 = vpop.f32.mrb[0].mxu0
      %3193 = vmatprep.mubr.bf16.mxu0 0
      %3194 = vmatmul.mubr.bf16.gmra.mrb[0].mxu0 %v3100
      %v3195 = vpop.f32.mrb[0].mxu0
      %v3196 = vadd.f32 0.0, %v3195
      %v3197 = vpop.f32.mrb[0].mxu0
      %v3198 = vpop.f32.mrb[0].mxu0
      %v3199 = vadd.f32 0.0, %v3198
      %v3200 = vpop.f32.mrb[0].mxu0
      %3201 = vmatprep.mubr.bf16.mxu0 0
      %3202 = vmatmul.mubr.bf16.gmra.mrb[0].mxu0 %v3103
      %v3203 = vpop.f32.mrb[0].mxu0
      %v3204 = vadd.f32 0.0, %v3203
      %v3205 = vpop.f32.mrb[0].mxu0
      %v3206 = vpop.f32.mrb[0].mxu0
      %v3207 = vadd.f32 0.0, %v3206
      %v3208 = vpop.f32.mrb[0].mxu0
      %3209 = vmatprep.mubr.bf16.mxu0 0
      %3210 = vmatmul.mubr.bf16.gmra.mrb[0].mxu0 %v3106
      %v3211 = vpop.f32.mrb[0].mxu0
      %v3212 = vadd.f32 0.0, %v3211
      %v3213 = vpop.f32.mrb[0].mxu0
      %v3214 = vpop.f32.mrb[0].mxu0
      %v3215 = vadd.f32 0.0, %v3214
      %v3216 = vpop.f32.mrb[0].mxu0
      %3217 = vmatprep.mubr.bf16.mxu0 0
      %3218 = vmatmul.mubr.bf16.gmra.mrb[0].mxu0 %v3109
      %v3219 = vpop.f32.mrb[0].mxu0
      %v3220 = vadd.f32 0.0, %v3219
      %v3221 = vpop.f32.mrb[0].mxu0
      %v3222 = vpop.f32.mrb[0].mxu0
      %v3223 = vadd.f32 0.0, %v3222
      %v3224 = vpop.f32.mrb[0].mxu0
      %3225 = vmatprep.mubr.bf16.mxu0 0
      %3226 = vmatmul.mubr.bf16.gmra.mrb[0].mxu0 %v3112
      %v3227 = vpop.f32.mrb[0].mxu0
      %v3228 = vadd.f32 0.0, %v3227
      %v3229 = vpop.f32.mrb[0].mxu0
      %v3230 = vpop.f32.mrb[0].mxu0
      %v3231 = vadd.f32 0.0, %v3230
      %v3232 = vpop.f32.mrb[0].mxu0
      %3233 = vmatprep.mubr.bf16.mxu0 0
      %3234 = vmatmul.mubr.bf16.gmra.mrb[0].mxu0 %v3115
      %v3235 = vpop.f32.mrb[0].mxu0
      %v3236 = vadd.f32 0.0, %v3235
      %v3237 = vpop.f32.mrb[0].mxu0
      %v3238 = vpop.f32.mrb[0].mxu0
      %v3239 = vadd.f32 0.0, %v3238
      %v3240 = vpop.f32.mrb[0].mxu0
      %3241 = vmatprep.mubr.bf16.mxu0 0
      %3242 = vmatmul.mubr.bf16.gmra.mrb[0].mxu0 %v3118
      %v3243 = vpop.f32.mrb[0].mxu0
      %v3244 = vadd.f32 0.0, %v3243
      %v3245 = vpop.f32.mrb[0].mxu0
      %v3246 = vpop.f32.mrb[0].mxu0
      %v3247 = vadd.f32 0.0, %v3246
      %v3248 = vpop.f32.mrb[0].mxu0
      %3249 = vmatprep.mubr.bf16.mxu0 0
      %3250 = vmatmul.mubr.bf16.gmra.mrb[0].mxu0 %v3121
      %v3251 = vpop.f32.mrb[0].mxu0
      %v3252 = vadd.f32 0.0, %v3251
      %v3253 = vpop.f32.mrb[0].mxu0
      %v3254 = vpop.f32.mrb[0].mxu0
      %v3255 = vadd.f32 0.0, %v3254
      %v3256 = vpop.f32.mrb[0].mxu0
      %3257 = vmatprep.mubr.bf16.mxu0 0
      %3258 = vmatmul.mubr.bf16.gmra.mrb[0].mxu0 %v3124
      %v3259 = vpop.f32.mrb[0].mxu0
      %v3260 = vadd.f32 0.0, %v3259
      %v3261 = vpop.f32.mrb[0].mxu0
      %v3262 = vpop.f32.mrb[0].mxu0
      %v3263 = vadd.f32 0.0, %v3262
      %v3264 = vpop.f32.mrb[0].mxu0
      %3265 = vmatprep.mubr.bf16.mxu0 0
      %3266 = vmatmul.mubr.bf16.gmra.mrb[0].mxu0 %v3127
      %v3267 = vpop.f32.mrb[0].mxu0
      %v3268 = vadd.f32 0.0, %v3267
      %v3269 = vpop.f32.mrb[0].mxu0
      %v3270 = vpop.f32.mrb[0].mxu0
      %v3271 = vadd.f32 0.0, %v3270
      %v3272 = vpop.f32.mrb[0].mxu0
      %3273 = vmatprep.mubr.bf16.mxu0 0
      %3274 = vmatmul.mubr.bf16.gmra.mrb[0].mxu0 %v3130
      %v3275 = vpop.f32.mrb[0].mxu0
      %v3276 = vadd.f32 0.0, %v3275
      %v3277 = vpop.f32.mrb[0].mxu0
      %v3278 = vpop.f32.mrb[0].mxu0
      %v3279 = vadd.f32 0.0, %v3278
      %v3280 = vpop.f32.mrb[0].mxu0
      %3281 = vmatprep.mubr.bf16.mxu0 0
      %3282 = vmatmul.mubr.bf16.gmra.mrb[0].mxu0 %v3133
      %v3283 = vpop.f32.mrb[0].mxu0
      %v3284 = vadd.f32 0.0, %v3283
      %v3285 = vpop.f32.mrb[0].mxu0
      %v3286 = vpop.f32.mrb[0].mxu0
      %v3287 = vadd.f32 0.0, %v3286
      %v3288 = vpop.f32.mrb[0].mxu0
      %3289 = vmatprep.mubr.bf16.mxu0 0
      %3290 = vmatmul.mubr.bf16.gmra.mrb[0].mxu0 %v3136
      %v3291 = vpop.f32.mrb[0].mxu0
      %v3292 = vadd.f32 0.0, %v3291
      %v3293 = vpop.f32.mrb[0].mxu0
      %v3294 = vpop.f32.mrb[0].mxu0
      %v3295 = vadd.f32 0.0, %v3294
      %v3296 = vpop.f32.mrb[0].mxu0
      %3297 = vmatprep.mubr.bf16.mxu0 0
      %3298 = vmatmul.mubr.bf16.gmra.mrb[0].mxu0 %v3139
      %v3299 = vpop.f32.mrb[0].mxu0
      %v3300 = vadd.f32 0.0, %v3299
      %v3301 = vpop.f32.mrb[0].mxu0
      %v3302 = vpop.f32.mrb[0].mxu0
      %v3303 = vadd.f32 0.0, %v3302
      %v3304 = vpop.f32.mrb[0].mxu0
      %3305 = vmatprep.mubr.bf16.mxu0 0
      %3306 = vmatmul.mubr.bf16.gmra.mrb[0].mxu0 %v3142
      %v3307 = vpop.f32.mrb[0].mxu0
      %v3308 = vadd.f32 0.0, %v3307
      %v3309 = vpop.f32.mrb[0].mxu0
      %v3310 = vpop.f32.mrb[0].mxu0
      %v3311 = vadd.f32 0.0, %v3310
      %v3312 = vpop.f32.mrb[0].mxu0
      %3313 = vmatprep.mubr.bf16.mxu0 0
      %3314 = vmatmul.mubr.bf16.gmra.mrb[0].mxu0 %v3145
      %v3315 = vpop.f32.mrb[0].mxu0
      %v3316 = vadd.f32 0.0, %v3315
      %v3317 = vpop.f32.mrb[0].mxu0
      %v3318 = vpop.f32.mrb[0].mxu0
      %v3319 = vadd.f32 0.0, %v3318
      %v3320 = vpop.f32.mrb[0].mxu0
      %3321 = vmatprep.mubr.bf16.mxu0 0
      %3322 = vmatmul.mubr.bf16.gmra.mrb[0].mxu0 %v3148
      %v3323 = vpop.f32.mrb[0].mxu0
      %v3324 = vadd.f32 0.0, %v3323
      %v3325 = vpop.f32.mrb[0].mxu0
      %v3326 = vpop.f32.mrb[0].mxu0
      %v3327 = vadd.f32 0.0, %v3326
      %v3328 = vpop.f32.mrb[0].mxu0
      %3329 = vdwg.mxu0
      %v3330 = vadd.f32 %v2880, %v3188
      %v3331 = vadd.f32 %v2881, %v3191
      %v3332 = vadd.f32 %v2882, %v3196
      %v3333 = vadd.f32 %v2883, %v3199
      %v3334 = vadd.f32 %v2884, %v3204
      %v3335 = vadd.f32 %v2885, %v3207
      %v3336 = vadd.f32 %v2886, %v3212
      %v3337 = vadd.f32 %v2887, %v3215
      %v3338 = vadd.f32 %v2888, %v3220
      %v3339 = vadd.f32 %v2889, %v3223
      %v3340 = vadd.f32 %v2890, %v3228
      %v3341 = vadd.f32 %v2891, %v3231
      %v3342 = vadd.f32 %v2892, %v3236
      %v3343 = vadd.f32 %v2893, %v3239
      %v3344 = vadd.f32 %v2894, %v3244
      %v3345 = vadd.f32 %v2895, %v3247
      %v3346 = vadd.f32 %v2896, %v3252
      %v3347 = vadd.f32 %v2897, %v3255
      %v3348 = vadd.f32 %v2898, %v3260
      %v3349 = vadd.f32 %v2899, %v3263
      %v3350 = vadd.f32 %v2900, %v3268
      %v3351 = vadd.f32 %v2901, %v3271
      %v3352 = vadd.f32 %v2902, %v3276
      %v3353 = vadd.f32 %v2903, %v3279
      %v3354 = vadd.f32 %v2904, %v3284
      %v3355 = vadd.f32 %v2905, %v3287
      %v3356 = vadd.f32 %v2906, %v3292
      %v3357 = vadd.f32 %v2907, %v3295
      %v3358 = vadd.f32 %v2908, %v3300
      %v3359 = vadd.f32 %v2909, %v3303
      %v3360 = vadd.f32 %v2910, %v3308
      %v3361 = vadd.f32 %v2911, %v3311
      %v3362 = vadd.f32 %v2912, %v3316
      %v3363 = vadd.f32 %v2913, %v3319
      %v3364 = vadd.f32 %v2914, %v3324
      %v3365 = vadd.f32 %v2915, %v3327
      %v3366 = vld [vmem:[%s206 + $0x10] sm:$0x8]
      %v3367 = vld [vmem:[%s210 + $0x10] sm:$0x3]
      %v3369 = vunpack.c.l.b16 %v3366
      %v3370 = vpack.c.b16 %v2554, %v3369
      %vm3371 = vcmask 1044480
      %v3372 = vrot.slane %v3370, 3
      %v3373 = vrot.slane %v2591, 3
      %v3374 = vsel %vm3371, %v3372, %v3373
      %v3375 = vrot.slane %v2592, 3
      %v3376 = vsel %vm3371, %v3373, %v3375
      %v3377 = vrot.slane %v2593, 3
      %v3378 = vsel %vm3371, %v3375, %v3377
      %v3379 = vrot.slane %v2594, 3
      %v3380 = vsel %vm3371, %v3377, %v3379
      %v3381 = vrot.slane %v2595, 3
      %v3382 = vsel %vm3371, %v3379, %v3381
      %v3383 = vrot.slane %v2596, 3
      %v3384 = vsel %vm3371, %v3381, %v3383
      %v3385 = vrot.slane %v2597, 3
      %v3386 = vsel %vm3371, %v3383, %v3385
      %v3387 = vrot.slane %v2598, 3
      %v3388 = vsel %vm3371, %v3385, %v3387
      %v3389 = vrot.slane %v2599, 3
      %v3390 = vsel %vm3371, %v3387, %v3389
      %v3391 = vrot.slane %v2600, 3
      %v3392 = vsel %vm3371, %v3389, %v3391
      %v3393 = vrot.slane %v2601, 3
      %v3394 = vsel %vm3371, %v3391, %v3393
      %v3395 = vrot.slane %v2602, 3
      %v3396 = vsel %vm3371, %v3393, %v3395
      %v3397 = vrot.slane %v2603, 3
      %v3398 = vsel %vm3371, %v3395, %v3397
      %v3399 = vrot.slane %v2604, 3
      %v3400 = vsel %vm3371, %v3397, %v3399
      %v3401 = vrot.slane %v2605, 3
      %v3402 = vsel %vm3371, %v3399, %v3401
      %v3403 = vrot.slane %v2606, 3
      %v3404 = vsel %vm3371, %v3401, %v3403
      %v3405 = vrot.slane %v2607, 3
      %v3406 = vsel %vm3371, %v3403, %v3405
      %v3407 = vrot.slane %v2920, 3
      %v3408 = vsel %vm3371, %v3405, %v3407
      %v3410 = vsel %vm508, %v3374, 0
      %v3413 = vsel %vm508, %v3376, 0
      %v3416 = vsel %vm508, %v3378, 0
      %v3419 = vsel %vm508, %v3380, 0
      %v3422 = vsel %vm508, %v3382, 0
      %v3425 = vsel %vm508, %v3384, 0
      %v3428 = vsel %vm508, %v3386, 0
      %v3431 = vsel %vm508, %v3388, 0
      %v3434 = vsel %vm508, %v3390, 0
      %v3437 = vsel %vm508, %v3392, 0
      %v3440 = vsel %vm508, %v3394, 0
      %v3443 = vsel %vm508, %v3396, 0
      %v3446 = vsel %vm508, %v3398, 0
      %v3449 = vsel %vm508, %v3400, 0
      %v3452 = vsel %vm508, %v3402, 0
      %v3455 = vsel %vm508, %v3404, 0
      %v3458 = vsel %vm508, %v3406, 0
      %v3461 = vsel %vm508, %v3408, 0
      %v3464 = vsel %vm563, %v3367, 0
      %3466 = vmatprep.subr.bf16.mxu0 0
      %3467 = vmatpush1.bf16.msra.mxu0 %v3464
      %3468 = vmatprep.subr.bf16.mxu0 0
      %3469 = vmatpush1.bf16.msra.mxu0 0
      %3470 = vmatprep.subr.bf16.mxu0 0
      %3471 = vmatpush1.bf16.msra.mxu0 0
      %3472 = vmatprep.subr.bf16.mxu0 0
      %3473 = vmatpush1.bf16.msra.mxu0 0
      %3474 = vmatprep.subr.bf16.mxu0 0
      %3475 = vmatpush1.bf16.msra.mxu0 0
      %3476 = vmatprep.subr.bf16.mxu0 0
      %3477 = vmatpush1.bf16.msra.mxu0 0
      %3478 = vmatprep.subr.bf16.mxu0 0
      %3479 = vmatpush1.bf16.msra.mxu0 0
      %3480 = vmatprep.subr.bf16.mxu0 0
      %3481 = vmatpush1.bf16.msra.mxu0 0
      %3482 = vmatprep.subr.bf16.mxu0 0
      %3483 = vmatpush1.bf16.msra.mxu0 0
      %3484 = vmatprep.subr.bf16.mxu0 0
      %3485 = vmatpush1.bf16.msra.mxu0 0
      %3486 = vmatprep.subr.bf16.mxu0 0
      %3487 = vmatpush1.bf16.msra.mxu0 0
      %3488 = vmatprep.subr.bf16.mxu0 0
      %3489 = vmatpush1.bf16.msra.mxu0 0
      %3490 = vmatprep.subr.bf16.mxu0 0
      %3491 = vmatpush1.bf16.msra.mxu0 0
      %3492 = vmatprep.subr.bf16.mxu0 0
      %3493 = vmatpush1.bf16.msra.mxu0 0
      %3494 = vmatprep.subr.bf16.mxu0 0
      %3495 = vmatpush1.bf16.msra.mxu0 0
      %3496 = vmatprep.subr.bf16.mxu0 0
      %3497 = vmatpush1.bf16.msra.mxu0 0
      %3498 = vmatprep.mubr.bf16.mxu0 0
      %3499 = vmatmul.mubr.bf16.gmra.mrb[0].mxu0 %v3410
      %v3500 = vpop.f32.mrb[0].mxu0
      %v3501 = vadd.f32 0.0, %v3500
      %v3502 = vpop.f32.mrb[0].mxu0
      %v3503 = vpop.f32.mrb[0].mxu0
      %v3504 = vadd.f32 0.0, %v3503
      %v3505 = vpop.f32.mrb[0].mxu0
      %3506 = vmatprep.mubr.bf16.mxu0 0
      %3507 = vmatmul.mubr.bf16.gmra.mrb[0].mxu0 %v3413
      %v3508 = vpop.f32.mrb[0].mxu0
      %v3509 = vadd.f32 0.0, %v3508
      %v3510 = vpop.f32.mrb[0].mxu0
      %v3511 = vpop.f32.mrb[0].mxu0
      %v3512 = vadd.f32 0.0, %v3511
      %v3513 = vpop.f32.mrb[0].mxu0
      %3514 = vmatprep.mubr.bf16.mxu0 0
      %3515 = vmatmul.mubr.bf16.gmra.mrb[0].mxu0 %v3416
      %v3516 = vpop.f32.mrb[0].mxu0
      %v3517 = vadd.f32 0.0, %v3516
      %v3518 = vpop.f32.mrb[0].mxu0
      %v3519 = vpop.f32.mrb[0].mxu0
      %v3520 = vadd.f32 0.0, %v3519
      %v3521 = vpop.f32.mrb[0].mxu0
      %3522 = vmatprep.mubr.bf16.mxu0 0
      %3523 = vmatmul.mubr.bf16.gmra.mrb[0].mxu0 %v3419
      %v3524 = vpop.f32.mrb[0].mxu0
      %v3525 = vadd.f32 0.0, %v3524
      %v3526 = vpop.f32.mrb[0].mxu0
      %v3527 = vpop.f32.mrb[0].mxu0
      %v3528 = vadd.f32 0.0, %v3527
      %v3529 = vpop.f32.mrb[0].mxu0
      %3530 = vmatprep.mubr.bf16.mxu0 0
      %3531 = vmatmul.mubr.bf16.gmra.mrb[0].mxu0 %v3422
      %v3532 = vpop.f32.mrb[0].mxu0
      %v3533 = vadd.f32 0.0, %v3532
      %v3534 = vpop.f32.mrb[0].mxu0
      %v3535 = vpop.f32.mrb[0].mxu0
      %v3536 = vadd.f32 0.0, %v3535
      %v3537 = vpop.f32.mrb[0].mxu0
      %3538 = vmatprep.mubr.bf16.mxu0 0
      %3539 = vmatmul.mubr.bf16.gmra.mrb[0].mxu0 %v3425
      %v3540 = vpop.f32.mrb[0].mxu0
      %v3541 = vadd.f32 0.0, %v3540
      %v3542 = vpop.f32.mrb[0].mxu0
      %v3543 = vpop.f32.mrb[0].mxu0
      %v3544 = vadd.f32 0.0, %v3543
      %v3545 = vpop.f32.mrb[0].mxu0
      %3546 = vmatprep.mubr.bf16.mxu0 0
      %3547 = vmatmul.mubr.bf16.gmra.mrb[0].mxu0 %v3428
      %v3548 = vpop.f32.mrb[0].mxu0
      %v3549 = vadd.f32 0.0, %v3548
      %v3550 = vpop.f32.mrb[0].mxu0
      %v3551 = vpop.f32.mrb[0].mxu0
      %v3552 = vadd.f32 0.0, %v3551
      %v3553 = vpop.f32.mrb[0].mxu0
      %3554 = vmatprep.mubr.bf16.mxu0 0
      %3555 = vmatmul.mubr.bf16.gmra.mrb[0].mxu0 %v3431
      %v3556 = vpop.f32.mrb[0].mxu0
      %v3557 = vadd.f32 0.0, %v3556
      %v3558 = vpop.f32.mrb[0].mxu0
      %v3559 = vpop.f32.mrb[0].mxu0
      %v3560 = vadd.f32 0.0, %v3559
      %v3561 = vpop.f32.mrb[0].mxu0
      %3562 = vmatprep.mubr.bf16.mxu0 0
      %3563 = vmatmul.mubr.bf16.gmra.mrb[0].mxu0 %v3434
      %v3564 = vpop.f32.mrb[0].mxu0
      %v3565 = vadd.f32 0.0, %v3564
      %v3566 = vpop.f32.mrb[0].mxu0
      %v3567 = vpop.f32.mrb[0].mxu0
      %v3568 = vadd.f32 0.0, %v3567
      %v3569 = vpop.f32.mrb[0].mxu0
      %3570 = vmatprep.mubr.bf16.mxu0 0
      %3571 = vmatmul.mubr.bf16.gmra.mrb[0].mxu0 %v3437
      %v3572 = vpop.f32.mrb[0].mxu0
      %v3573 = vadd.f32 0.0, %v3572
      %v3574 = vpop.f32.mrb[0].mxu0
      %v3575 = vpop.f32.mrb[0].mxu0
      %v3576 = vadd.f32 0.0, %v3575
      %v3577 = vpop.f32.mrb[0].mxu0
      %3578 = vmatprep.mubr.bf16.mxu0 0
      %3579 = vmatmul.mubr.bf16.gmra.mrb[0].mxu0 %v3440
      %v3580 = vpop.f32.mrb[0].mxu0
      %v3581 = vadd.f32 0.0, %v3580
      %v3582 = vpop.f32.mrb[0].mxu0
      %v3583 = vpop.f32.mrb[0].mxu0
      %v3584 = vadd.f32 0.0, %v3583
      %v3585 = vpop.f32.mrb[0].mxu0
      %3586 = vmatprep.mubr.bf16.mxu0 0
      %3587 = vmatmul.mubr.bf16.gmra.mrb[0].mxu0 %v3443
      %v3588 = vpop.f32.mrb[0].mxu0
      %v3589 = vadd.f32 0.0, %v3588
      %v3590 = vpop.f32.mrb[0].mxu0
      %v3591 = vpop.f32.mrb[0].mxu0
      %v3592 = vadd.f32 0.0, %v3591
      %v3593 = vpop.f32.mrb[0].mxu0
      %3594 = vmatprep.mubr.bf16.mxu0 0
      %3595 = vmatmul.mubr.bf16.gmra.mrb[0].mxu0 %v3446
      %v3596 = vpop.f32.mrb[0].mxu0
      %v3597 = vadd.f32 0.0, %v3596
      %v3598 = vpop.f32.mrb[0].mxu0
      %v3599 = vpop.f32.mrb[0].mxu0
      %v3600 = vadd.f32 0.0, %v3599
      %v3601 = vpop.f32.mrb[0].mxu0
      %3602 = vmatprep.mubr.bf16.mxu0 0
      %3603 = vmatmul.mubr.bf16.gmra.mrb[0].mxu0 %v3449
      %v3604 = vpop.f32.mrb[0].mxu0
      %v3605 = vadd.f32 0.0, %v3604
      %v3606 = vpop.f32.mrb[0].mxu0
      %v3607 = vpop.f32.mrb[0].mxu0
      %v3608 = vadd.f32 0.0, %v3607
      %v3609 = vpop.f32.mrb[0].mxu0
      %3610 = vmatprep.mubr.bf16.mxu0 0
      %3611 = vmatmul.mubr.bf16.gmra.mrb[0].mxu0 %v3452
      %v3612 = vpop.f32.mrb[0].mxu0
      %v3613 = vadd.f32 0.0, %v3612
      %v3614 = vpop.f32.mrb[0].mxu0
      %v3615 = vpop.f32.mrb[0].mxu0
      %v3616 = vadd.f32 0.0, %v3615
      %v3617 = vpop.f32.mrb[0].mxu0
      %3618 = vmatprep.mubr.bf16.mxu0 0
      %3619 = vmatmul.mubr.bf16.gmra.mrb[0].mxu0 %v3455
      %v3620 = vpop.f32.mrb[0].mxu0
      %v3621 = vadd.f32 0.0, %v3620
      %v3622 = vpop.f32.mrb[0].mxu0
      %v3623 = vpop.f32.mrb[0].mxu0
      %v3624 = vadd.f32 0.0, %v3623
      %v3625 = vpop.f32.mrb[0].mxu0
      %3626 = vmatprep.mubr.bf16.mxu0 0
      %3627 = vmatmul.mubr.bf16.gmra.mrb[0].mxu0 %v3458
      %v3628 = vpop.f32.mrb[0].mxu0
      %v3629 = vadd.f32 0.0, %v3628
      %v3630 = vpop.f32.mrb[0].mxu0
      %v3631 = vpop.f32.mrb[0].mxu0
      %v3632 = vadd.f32 0.0, %v3631
      %v3633 = vpop.f32.mrb[0].mxu0
      %3634 = vmatprep.mubr.bf16.mxu0 0
      %3635 = vmatmul.mubr.bf16.gmra.mrb[0].mxu0 %v3461
      %v3636 = vpop.f32.mrb[0].mxu0
      %v3637 = vadd.f32 0.0, %v3636
      %v3638 = vpop.f32.mrb[0].mxu0
      %v3639 = vpop.f32.mrb[0].mxu0
      %v3640 = vadd.f32 0.0, %v3639
      %v3641 = vpop.f32.mrb[0].mxu0
      %3642 = vdwg.mxu0
      %v3643 = vadd.f32 %v3330, %v3501
      %v3644 = vadd.f32 %v3331, %v3504
      %v3645 = vadd.f32 %v3332, %v3509
      %v3646 = vadd.f32 %v3333, %v3512
      %v3647 = vadd.f32 %v3334, %v3517
      %v3648 = vadd.f32 %v3335, %v3520
      %v3649 = vadd.f32 %v3336, %v3525
      %v3650 = vadd.f32 %v3337, %v3528
      %v3651 = vadd.f32 %v3338, %v3533
      %v3652 = vadd.f32 %v3339, %v3536
      %v3653 = vadd.f32 %v3340, %v3541
      %v3654 = vadd.f32 %v3341, %v3544
      %v3655 = vadd.f32 %v3342, %v3549
      %v3656 = vadd.f32 %v3343, %v3552
      %v3657 = vadd.f32 %v3344, %v3557
      %v3658 = vadd.f32 %v3345, %v3560
      %v3659 = vadd.f32 %v3346, %v3565
      %v3660 = vadd.f32 %v3347, %v3568
      %v3661 = vadd.f32 %v3348, %v3573
      %v3662 = vadd.f32 %v3349, %v3576
      %v3663 = vadd.f32 %v3350, %v3581
      %v3664 = vadd.f32 %v3351, %v3584
      %v3665 = vadd.f32 %v3352, %v3589
      %v3666 = vadd.f32 %v3353, %v3592
      %v3667 = vadd.f32 %v3354, %v3597
      %v3668 = vadd.f32 %v3355, %v3600
      %v3669 = vadd.f32 %v3356, %v3605
      %v3670 = vadd.f32 %v3357, %v3608
      %v3671 = vadd.f32 %v3358, %v3613
      %v3672 = vadd.f32 %v3359, %v3616
      %v3673 = vadd.f32 %v3360, %v3621
      %v3674 = vadd.f32 %v3361, %v3624
      %v3675 = vadd.f32 %v3362, %v3629
      %v3676 = vadd.f32 %v3363, %v3632
      %v3677 = vadd.f32 %v3364, %v3637
      %v3678 = vadd.f32 %v3365, %v3640
      %v3679 = vld [vmem:[%s213] sm:$0x1]
      %v3681 = vlaneseq
      %v3682 = vshrl.u32 %v3681, 7
      %v3683 = vsub.s32 0, %v3682
      %v3684 = vrot.slane %v3679, %v3683
      %v3686 = vadd.f32 %v3643, %v3684
      %v3687 = vadd.f32 %v3644, %v3684
      %v3688 = vadd.f32 %v3645, %v3684
      %v3689 = vadd.f32 %v3646, %v3684
      %v3690 = vadd.f32 %v3647, %v3684
      %v3691 = vadd.f32 %v3648, %v3684
      %v3692 = vadd.f32 %v3649, %v3684
      %v3693 = vadd.f32 %v3650, %v3684
      %v3694 = vadd.f32 %v3651, %v3684
      %v3695 = vadd.f32 %v3652, %v3684
      %v3696 = vadd.f32 %v3653, %v3684
      %v3697 = vadd.f32 %v3654, %v3684
      %v3698 = vadd.f32 %v3655, %v3684
      %v3699 = vadd.f32 %v3656, %v3684
      %v3700 = vadd.f32 %v3657, %v3684
      %v3701 = vadd.f32 %v3658, %v3684
      %v3702 = vadd.f32 %v3659, %v3684
      %v3703 = vadd.f32 %v3660, %v3684
      %v3704 = vadd.f32 %v3661, %v3684
      %v3705 = vadd.f32 %v3662, %v3684
      %v3706 = vadd.f32 %v3663, %v3684
      %v3707 = vadd.f32 %v3664, %v3684
      %v3708 = vadd.f32 %v3665, %v3684
      %v3709 = vadd.f32 %v3666, %v3684
      %v3710 = vadd.f32 %v3667, %v3684
      %v3711 = vadd.f32 %v3668, %v3684
      %v3712 = vadd.f32 %v3669, %v3684
      %v3713 = vadd.f32 %v3670, %v3684
      %v3714 = vadd.f32 %v3671, %v3684
      %v3715 = vadd.f32 %v3672, %v3684
      %v3716 = vadd.f32 %v3673, %v3684
      %v3717 = vadd.f32 %v3674, %v3684
      %v3718 = vadd.f32 %v3675, %v3684
      %v3719 = vadd.f32 %v3676, %v3684
      %v3720 = vadd.f32 %v3677, %v3684
      %v3721 = vadd.f32 %v3678, %v3684
      %v3722 = vsub.f32 0.0, %v3686
      %v3723 = vsub.f32 0.0, %v3687
      %v3724 = vsub.f32 0.0, %v3688
      %v3725 = vsub.f32 0.0, %v3689
      %v3726 = vsub.f32 0.0, %v3690
      %v3727 = vsub.f32 0.0, %v3691
      %v3728 = vsub.f32 0.0, %v3692
      %v3729 = vsub.f32 0.0, %v3693
      %v3730 = vsub.f32 0.0, %v3694
      %v3731 = vsub.f32 0.0, %v3695
      %v3732 = vsub.f32 0.0, %v3696
      %v3733 = vsub.f32 0.0, %v3697
      %v3734 = vsub.f32 0.0, %v3698
      %v3735 = vsub.f32 0.0, %v3699
      %v3736 = vsub.f32 0.0, %v3700
      %v3737 = vsub.f32 0.0, %v3701
      %v3738 = vsub.f32 0.0, %v3702
      %v3739 = vsub.f32 0.0, %v3703
      %v3740 = vsub.f32 0.0, %v3704
      %v3741 = vsub.f32 0.0, %v3705
      %v3742 = vsub.f32 0.0, %v3706
      %v3743 = vsub.f32 0.0, %v3707
      %v3744 = vsub.f32 0.0, %v3708
      %v3745 = vsub.f32 0.0, %v3709
      %v3746 = vsub.f32 0.0, %v3710
      %v3747 = vsub.f32 0.0, %v3711
      %v3748 = vsub.f32 0.0, %v3712
      %v3749 = vsub.f32 0.0, %v3713
      %v3750 = vsub.f32 0.0, %v3714
      %v3751 = vsub.f32 0.0, %v3715
      %v3752 = vsub.f32 0.0, %v3716
      %v3753 = vsub.f32 0.0, %v3717
      %v3754 = vsub.f32 0.0, %v3718
      %v3755 = vsub.f32 0.0, %v3719
      %v3756 = vsub.f32 0.0, %v3720
      %v3757 = vsub.f32 0.0, %v3721
      %v3758 = vmul.f32 %v3722, 1.442695
      %v3759 = vpow.pop %v3758
      %v3760 = vmul.f32 %v3723, 1.442695
      %v3761 = vpow.pop %v3760
      %v3762 = vmul.f32 %v3724, 1.442695
      %v3763 = vpow.pop %v3762
      %v3764 = vmul.f32 %v3725, 1.442695
      %v3765 = vpow.pop %v3764
      %v3766 = vmul.f32 %v3726, 1.442695
      %v3767 = vpow.pop %v3766
      %v3768 = vmul.f32 %v3727, 1.442695
      %v3769 = vpow.pop %v3768
      %v3770 = vmul.f32 %v3728, 1.442695
      %v3771 = vpow.pop %v3770
      %v3772 = vmul.f32 %v3729, 1.442695
      %v3773 = vpow.pop %v3772
      %v3774 = vmul.f32 %v3730, 1.442695
      %v3775 = vpow.pop %v3774
      %v3776 = vmul.f32 %v3731, 1.442695
      %v3777 = vpow.pop %v3776
      %v3778 = vmul.f32 %v3732, 1.442695
      %v3779 = vpow.pop %v3778
      %v3780 = vmul.f32 %v3733, 1.442695
      %v3781 = vpow.pop %v3780
      %v3782 = vmul.f32 %v3734, 1.442695
      %v3783 = vpow.pop %v3782
      %v3784 = vmul.f32 %v3735, 1.442695
      %v3785 = vpow.pop %v3784
      %v3786 = vmul.f32 %v3736, 1.442695
      %v3787 = vpow.pop %v3786
      %v3788 = vmul.f32 %v3737, 1.442695
      %v3789 = vpow.pop %v3788
      %v3790 = vmul.f32 %v3738, 1.442695
      %v3791 = vpow.pop %v3790
      %v3792 = vmul.f32 %v3739, 1.442695
      %v3793 = vpow.pop %v3792
      %v3794 = vmul.f32 %v3740, 1.442695
      %v3795 = vpow.pop %v3794
      %v3796 = vmul.f32 %v3741, 1.442695
      %v3797 = vpow.pop %v3796
      %v3798 = vmul.f32 %v3742, 1.442695
      %v3799 = vpow.pop %v3798
      %v3800 = vmul.f32 %v3743, 1.442695
      %v3801 = vpow.pop %v3800
      %v3802 = vmul.f32 %v3744, 1.442695
      %v3803 = vpow.pop %v3802
      %v3804 = vmul.f32 %v3745, 1.442695
      %v3805 = vpow.pop %v3804
      %v3806 = vmul.f32 %v3746, 1.442695
      %v3807 = vpow.pop %v3806
      %v3808 = vmul.f32 %v3747, 1.442695
      %v3809 = vpow.pop %v3808
      %v3810 = vmul.f32 %v3748, 1.442695
      %v3811 = vpow.pop %v3810
      %v3812 = vmul.f32 %v3749, 1.442695
      %v3813 = vpow.pop %v3812
      %v3814 = vmul.f32 %v3750, 1.442695
      %v3815 = vpow.pop %v3814
      %v3816 = vmul.f32 %v3751, 1.442695
      %v3817 = vpow.pop %v3816
      %v3818 = vmul.f32 %v3752, 1.442695
      %v3819 = vpow.pop %v3818
      %v3820 = vmul.f32 %v3753, 1.442695
      %v3821 = vpow.pop %v3820
      %v3822 = vmul.f32 %v3754, 1.442695
      %v3823 = vpow.pop %v3822
      %v3824 = vmul.f32 %v3755, 1.442695
      %v3825 = vpow.pop %v3824
      %v3826 = vmul.f32 %v3756, 1.442695
      %v3827 = vpow.pop %v3826
      %v3828 = vmul.f32 %v3757, 1.442695
      %v3829 = vpow.pop %v3828
      %v3830 = vadd.f32 %v3759, 1.0
      %v3831 = vadd.f32 %v3761, 1.0
      %v3832 = vadd.f32 %v3763, 1.0
      %v3833 = vadd.f32 %v3765, 1.0
      %v3834 = vadd.f32 %v3767, 1.0
      %v3835 = vadd.f32 %v3769, 1.0
      %v3836 = vadd.f32 %v3771, 1.0
      %v3837 = vadd.f32 %v3773, 1.0
      %v3838 = vadd.f32 %v3775, 1.0
      %v3839 = vadd.f32 %v3777, 1.0
      %v3840 = vadd.f32 %v3779, 1.0
      %v3841 = vadd.f32 %v3781, 1.0
      %v3842 = vadd.f32 %v3783, 1.0
      %v3843 = vadd.f32 %v3785, 1.0
      %v3844 = vadd.f32 %v3787, 1.0
      %v3845 = vadd.f32 %v3789, 1.0
      %v3846 = vadd.f32 %v3791, 1.0
      %v3847 = vadd.f32 %v3793, 1.0
      %v3848 = vadd.f32 %v3795, 1.0
      %v3849 = vadd.f32 %v3797, 1.0
      %v3850 = vadd.f32 %v3799, 1.0
      %v3851 = vadd.f32 %v3801, 1.0
      %v3852 = vadd.f32 %v3803, 1.0
      %v3853 = vadd.f32 %v3805, 1.0
      %v3854 = vadd.f32 %v3807, 1.0
      %v3855 = vadd.f32 %v3809, 1.0
      %v3856 = vadd.f32 %v3811, 1.0
      %v3857 = vadd.f32 %v3813, 1.0
      %v3858 = vadd.f32 %v3815, 1.0
      %v3859 = vadd.f32 %v3817, 1.0
      %v3860 = vadd.f32 %v3819, 1.0
      %v3861 = vadd.f32 %v3821, 1.0
      %v3862 = vadd.f32 %v3823, 1.0
      %v3863 = vadd.f32 %v3825, 1.0
      %v3864 = vadd.f32 %v3827, 1.0
      %v3865 = vadd.f32 %v3829, 1.0
      %v3866 = vrcp.pop %v3830
      %v3867 = vrcp.pop %v3831
      %v3868 = vrcp.pop %v3832
      %v3869 = vrcp.pop %v3833
      %v3870 = vrcp.pop %v3834
      %v3871 = vrcp.pop %v3835
      %v3872 = vrcp.pop %v3836
      %v3873 = vrcp.pop %v3837
      %v3874 = vrcp.pop %v3838
      %v3875 = vrcp.pop %v3839
      %v3876 = vrcp.pop %v3840
      %v3877 = vrcp.pop %v3841
      %v3878 = vrcp.pop %v3842
      %v3879 = vrcp.pop %v3843
      %v3880 = vrcp.pop %v3844
      %v3881 = vrcp.pop %v3845
      %v3882 = vrcp.pop %v3846
      %v3883 = vrcp.pop %v3847
      %v3884 = vrcp.pop %v3848
      %v3885 = vrcp.pop %v3849
      %v3886 = vrcp.pop %v3850
      %v3887 = vrcp.pop %v3851
      %v3888 = vrcp.pop %v3852
      %v3889 = vrcp.pop %v3853
      %v3890 = vrcp.pop %v3854
      %v3891 = vrcp.pop %v3855
      %v3892 = vrcp.pop %v3856
      %v3893 = vrcp.pop %v3857
      %v3894 = vrcp.pop %v3858
      %v3895 = vrcp.pop %v3859
      %v3896 = vrcp.pop %v3860
      %v3897 = vrcp.pop %v3861
      %v3898 = vrcp.pop %v3862
      %v3899 = vrcp.pop %v3863
      %v3900 = vrcp.pop %v3864
      %v3901 = vrcp.pop %v3865
      %v3902 = vmul.f32 %v3686, %v3866
      %v3903 = vmul.f32 %v3687, %v3867
      %v3904 = vmul.f32 %v3688, %v3868
      %v3905 = vmul.f32 %v3689, %v3869
      %v3906 = vmul.f32 %v3690, %v3870
      %v3907 = vmul.f32 %v3691, %v3871
      %v3908 = vmul.f32 %v3692, %v3872
      %v3909 = vmul.f32 %v3693, %v3873
      %v3910 = vmul.f32 %v3694, %v3874
      %v3911 = vmul.f32 %v3695, %v3875
      %v3912 = vmul.f32 %v3696, %v3876
      %v3913 = vmul.f32 %v3697, %v3877
      %v3914 = vmul.f32 %v3698, %v3878
      %v3915 = vmul.f32 %v3699, %v3879
      %v3916 = vmul.f32 %v3700, %v3880
      %v3917 = vmul.f32 %v3701, %v3881
      %v3918 = vmul.f32 %v3702, %v3882
      %v3919 = vmul.f32 %v3703, %v3883
      %v3920 = vmul.f32 %v3704, %v3884
      %v3921 = vmul.f32 %v3705, %v3885
      %v3922 = vmul.f32 %v3706, %v3886
      %v3923 = vmul.f32 %v3707, %v3887
      %v3924 = vmul.f32 %v3708, %v3888
      %v3925 = vmul.f32 %v3709, %v3889
      %v3926 = vmul.f32 %v3710, %v3890
      %v3927 = vmul.f32 %v3711, %v3891
      %v3928 = vmul.f32 %v3712, %v3892
      %v3929 = vmul.f32 %v3713, %v3893
      %v3930 = vmul.f32 %v3714, %v3894
      %v3931 = vmul.f32 %v3715, %v3895
      %v3932 = vmul.f32 %v3716, %v3896
      %v3933 = vmul.f32 %v3717, %v3897
      %v3934 = vmul.f32 %v3718, %v3898
      %v3935 = vmul.f32 %v3719, %v3899
      %v3936 = vmul.f32 %v3720, %v3900
      %v3937 = vmul.f32 %v3721, %v3901
      %3938 = vst [vmem:[%s221] sm:$0xff] %v3902
      %3939 = vst [vmem:[%s221 + $0x8] sm:$0xff] %v3903
      %3940 = vst [vmem:[%s221 + $0x10] sm:$0xff] %v3904
      %3941 = vst [vmem:[%s221 + $0x18] sm:$0xff] %v3905
      %3942 = vst [vmem:[%s221 + $0x20] sm:$0xff] %v3906
      %3943 = vst [vmem:[%s221 + $0x28] sm:$0xff] %v3907
      %3944 = vst [vmem:[%s221 + $0x30] sm:$0xff] %v3908
      %3945 = vst [vmem:[%s221 + $0x38] sm:$0xff] %v3909
      %3946 = vst [vmem:[%s221 + $0x40] sm:$0xff] %v3910
      %3947 = vst [vmem:[%s221 + $0x48] sm:$0xff] %v3911
      %3948 = vst [vmem:[%s221 + $0x50] sm:$0xff] %v3912
      %3949 = vst [vmem:[%s221 + $0x58] sm:$0xff] %v3913
      %3950 = vst [vmem:[%s221 + $0x60] sm:$0xff] %v3914
      %3951 = vst [vmem:[%s221 + $0x68] sm:$0xff] %v3915
      %3952 = vst [vmem:[%s221 + $0x70] sm:$0xff] %v3916
      %3953 = vst [vmem:[%s221 + $0x78] sm:$0xff] %v3917
      %3954 = vst [vmem:[%s221 + $0x80] sm:$0xff] %v3918
      %3955 = vst [vmem:[%s221 + $0x88] sm:$0xff] %v3919
      %3956 = vst [vmem:[%s221 + $0x90] sm:$0xff] %v3920
      %3957 = vst [vmem:[%s221 + $0x98] sm:$0xff] %v3921
      %3958 = vst [vmem:[%s221 + $0xa0] sm:$0xff] %v3922
      %3959 = vst [vmem:[%s221 + $0xa8] sm:$0xff] %v3923
      %3960 = vst [vmem:[%s221 + $0xb0] sm:$0xff] %v3924
      %3961 = vst [vmem:[%s221 + $0xb8] sm:$0xff] %v3925
      %3962 = vst [vmem:[%s221 + $0xc0] sm:$0xff] %v3926
      %3963 = vst [vmem:[%s221 + $0xc8] sm:$0xff] %v3927
      %3964 = vst [vmem:[%s221 + $0xd0] sm:$0xff] %v3928
      %3965 = vst [vmem:[%s221 + $0xd8] sm:$0xff] %v3929
      %3966 = vst [vmem:[%s221 + $0xe0] sm:$0xff] %v3930
      %3967 = vst [vmem:[%s221 + $0xe8] sm:$0xff] %v3931
      %3968 = vst [vmem:[%s221 + $0xf0] sm:$0xff] %v3932
      %3969 = vst [vmem:[%s221 + $0xf8] sm:$0xff] %v3933
      %3970 = vst [vmem:[%s221 + $0x100] sm:$0xff] %v3934
      %3971 = vst [vmem:[%s221 + $0x108] sm:$0xff] %v3935
      %3972 = vst [vmem:[%s221 + $0x110] sm:$0xff] %v3936
      %3973 = vst [vmem:[%s221 + $0x118] sm:$0xff] %v3937
      %p3974 = scmp.lt.s32.totalorder %s19, 1
      %s3975 = scalar_select %p3974, %s19, 1
      %p3976 = scmp.lt.s32.totalorder %s18, 0
      %s3977 = scalar_select %p3976, %s18, 0
      %s3978 = smul.addr %s3975, 36
      %s3979 = sadd.s32 %s3977, %s3978
      %s3980 = smul.addr %s3979, 8
      %s3981 = scalar_lea.vmem %s3, %s3980
      // Predicated region
      $region33: #{conv_bn_silu.1} parent=31 // pred_check
        %p3982 = pneg %p124
      $region34: #{conv_bn_silu.1} parent=31 // pred_check_branch
        %3984 = sbr.rel (%p3982) target = $region36
      $region35: #{conv_bn_silu.1} parent=31 // pred_region
        _
      $region36: #{conv_bn_silu.1} parent=31 // pred_fallthru
        _
    $region32: #{conv_bn_silu.1} parent=5 // pred_fallthru
      _
    %p3985 = scmp.le.s32.totalorder 2, %s9
    // Predicated region
    $region37: #{conv_bn_silu.1} parent=5 // pred_check
      %p3986 = pneg %p3985
    $region38: #{conv_bn_silu.1} parent=5 // pred_check_branch
      %3988 = sbr.rel (%p3986) target = $region40
    $region39: #{conv_bn_silu.1} parent=5 // pred_region
      %s3989 = ssub.s32 %s9, 2
      // Predicated region
      $region41: #{conv_bn_silu.1} parent=39 // pred_check
        %p3990 = pneg %p130
      $region42: #{conv_bn_silu.1} parent=39 // pred_check_branch
        %3992 = sbr.rel (%p3990) target = $region44
      $region43: #{conv_bn_silu.1} parent=39 // pred_region
        %p3993 = scmp.lt.s32.totalorder %s21, 1
        %s3994 = scalar_select %p3993, %s21, 1
        %p3995 = scmp.lt.s32.totalorder %s20, 0
        %s3996 = scalar_select %p3995, %s20, 0
        %s3997 = smul.addr %s3994, 36
        %s3998 = sadd.s32 %s3996, %s3997
        %s3999 = smul.addr %s3998, 8
        %s4000 = scalar_lea.vmem %s3, %s3999
      $region44: #{conv_bn_silu.1} parent=39 // pred_fallthru
        _
    $region40: #{conv_bn_silu.1} parent=5 // pred_fallthru
      _
  $region6: #{conv_bn_silu.1} parent=0 // loop_footer
    %s13 = sadd.s32 1, %s9
  $region7: #{conv_bn_silu.1} parent=0 // loop_footer_branch
    %8 = sbr.rel target = $region3
  $region8: #{conv_bn_silu.1} parent=0 // loop_exit
    _

</llo_original>
